<compile_context>
chip_gen: v7x
topology: tpu7x:2x2x1
jax: 0.10.0
libtpu: 0.0.40
codegen_flags: <defaults>
</compile_context>

<pallas_src>
import functools

import numpy as np

import jax
import jax.numpy as jnp
from jax.experimental import pallas as pl
from jax.experimental.pallas import tpu as pltpu


# ----------------------------------------------------------------------------
# Fused forward kernel (one batch tile per grid step)
# ----------------------------------------------------------------------------
def _cnn_cifar_kernel(x_ref, w1_ref, b1_ref, w2_ref, b2_ref,
                      wf1_ref, bf1_ref, wf2_ref, bf2_ref, wf3_ref, bf3_ref,
                      out_ref):
    """Rows are (spatial-row, image) pairs; lanes carry W*C (lane-dense)."""
    tb = x_ref.shape[1]

    # ---- conv1 + bias + ReLU:  5 x (28*tb, 96) @ (96, 168) ----------------
    x = x_ref[...]                                        # (32, tb, 96) bf16
    acc = None
    for kh in range(5):
        slab = x[kh:kh + 28].reshape(28 * tb, 96)         # contiguous slice
        prod = jnp.dot(slab, w1_ref[kh], preferred_element_type=jnp.float32)
        acc = prod if acc is None else acc + prod
    y = jnp.maximum(acc + b1_ref[...], 0.0)               # (28*tb, 168) f32

    # ---- pool1 (2x2): H via sublane-tile pairs, W via column halves -------
    y = y.reshape(14, 2, tb, 168)
    y = jnp.maximum(y[:, 0], y[:, 1])                     # (14, tb, 168)
    p1 = jnp.maximum(y[:, :, :84], y[:, :, 84:])          # (14, tb, 84)
    p1 = p1.astype(jnp.bfloat16)

    # ---- conv2 + bias + ReLU:  5 x (10*tb, 84) @ (84, 160) ----------------
    acc = None
    for kh in range(5):
        slab = p1[kh:kh + 10].reshape(10 * tb, 84)
        prod = jnp.dot(slab, w2_ref[kh], preferred_element_type=jnp.float32)
        acc = prod if acc is None else acc + prod
    y = jnp.maximum(acc + b2_ref[...], 0.0)               # (10*tb, 160) f32

    # ---- pool2 -------------------------------------------------------------
    y = y.reshape(5, 2, tb, 160)
    y = jnp.maximum(y[:, 0], y[:, 1])                     # (5, tb, 160)
    p2 = jnp.maximum(y[:, :, :80], y[:, :, 80:])          # (5, tb, 80)
    p2 = p2.astype(jnp.bfloat16)

    # ---- fc1 (single K=400 matmul) / fc2 / fc3 -----------------------------
    feat = jnp.concatenate([p2[h] for h in range(5)], axis=-1)   # (tb, 400)
    h1 = jnp.dot(feat, wf1_ref[...], preferred_element_type=jnp.float32)
    h1 = jnp.maximum(h1 + bf1_ref[...], 0.0)
    h2 = jnp.dot(h1.astype(jnp.bfloat16), wf2_ref[...],
                 preferred_element_type=jnp.float32)
    h2 = jnp.maximum(h2 + bf2_ref[...], 0.0)
    logits = jnp.dot(h2.astype(jnp.bfloat16), wf3_ref[...],
                     preferred_element_type=jnp.float32) + bf3_ref[...]

    # ---- log_softmax (max-shifted, f32) ------------------------------------
    m = jnp.max(logits, axis=-1, keepdims=True)
    s = logits - m
    lse = jnp.log(jnp.sum(jnp.exp(s), axis=-1, keepdims=True))
    out_ref[...] = (s - lse).astype(out_ref.dtype)


# ----------------------------------------------------------------------------
# Wrapper
# ----------------------------------------------------------------------------
def _const_spec(arr):
    zeros = (0,) * arr.ndim
    return pl.BlockSpec(arr.shape, lambda i, _z=zeros: _z)


def _pick_batch_tile(batch, max_tile=128):
    """Batch rows per grid step (`batch` is already a multiple of 8).

    Big tiles amortize the ~0.35us/step overhead and give the FC matmuls a
    real M dimension; max_tile=128 keeps per-step VMEM within the 32 MiB
    scoped default (and v7x's 64 MiB VMEM).  >=2 grid steps let
    dimension_semantics=("parallel",) shard the grid across v7x's two TCs.
    For tb > 128 on v5e/v6e, pass vmem_limit_bytes to cnn_cifar_forward.
    """
    if batch > max_tile:
        for t in range(max_tile - max_tile % 8, 0, -8):
            if batch % t == 0:
                return t
        return batch                      # no aligned divisor: one big step
    if batch >= 128 and batch % 16 == 0:
        return batch // 2                 # two steps -> megacore sharding
    return batch


def cnn_cifar_forward(x_nchw, kparams, *, batch_tile=None,
                      vmem_limit_bytes=None):
    """Fused CNNCifar forward.  x_nchw: (B, 3, 32, 32) float32.

    Returns (B, num_classes) float32 log-probabilities.
    """
    B, C, H, W = x_nchw.shape
    assert (C, H, W) == (3, 32, 32), "CNNCifar geometry is 3x32x32"
    nc = kparams["wf3"].shape[1]

    # Pad the batch to a multiple of 8 so every batch tile is sublane aligned.
    Bp = ((B + 7) // 8) * 8
    if Bp != B:
        pad = jnp.zeros((Bp - B, C, H, W), x_nchw.dtype)
        x_nchw = jnp.concatenate([x_nchw, pad], axis=0)

    tb = _pick_batch_tile(Bp) if batch_tile is None else int(batch_tile)
    assert Bp % tb == 0 and (tb % 8 == 0 or tb == Bp), \
        f"batch tile {tb} must divide the padded batch {Bp} and be 8-aligned"

    # One-time relayout: NCHW -> lane-dense (H, B, W*C), bf16 for the MXU.
    # TODO(synk): accept NHWC / lane-dense inputs upstream to drop this
    # transpose (one extra HBM round-trip over the 12 KB/image input).
    xl = (jnp.transpose(x_nchw, (2, 0, 3, 1))
          .reshape(H, Bp, W * C).astype(jnp.bfloat16))

    weight_names = ("w1", "b1", "w2", "b2", "wf1", "bf1",
                    "wf2", "bf2", "wf3", "bf3")
    weights = [kparams[k] for k in weight_names]

    flops_img = (2 * 5 * 28 * 96 * 168 + 2 * 5 * 10 * 84 * 160
                 + 2 * (400 * 120 + 120 * 84 + 84 * nc))
    wbytes = sum(int(v.size) * v.dtype.itemsize for v in weights)
    cost = pl.CostEstimate(
        flops=int(Bp * flops_img),
        transcendentals=int(Bp * (nc + 1)),
        bytes_accessed=int(xl.size * 2 + wbytes + Bp * nc * 4))

    cp_kwargs = dict(dimension_semantics=("parallel",))
    if vmem_limit_bytes is not None:          # needed only for tb > ~128
        cp_kwargs["vmem_limit_bytes"] = int(vmem_limit_bytes)

    out = pl.pallas_call(
        _cnn_cifar_kernel,
        out_shape=jax.ShapeDtypeStruct((Bp, nc), jnp.float32),
        grid=(Bp // tb,),
        in_specs=[pl.BlockSpec((H, tb, W * C), lambda i: (0, i, 0))]
                 + [_const_spec(w) for w in weights],
        out_specs=pl.BlockSpec((tb, nc), lambda i: (i, 0)),
        compiler_params=pltpu.CompilerParams(**cp_kwargs),
        cost_estimate=cost,
    )(xl, *weights)
    return out[:B]


# ----------------------------------------------------------------------------
# Parameters: PyTorch-layout init + one-time kernel-layout preparation
# ----------------------------------------------------------------------------
def init_params(key, num_classes=10):
    """PyTorch-layout params with nn.Conv2d / nn.Linear default-init bounds."""
    ks = jax.random.split(key, 10)

    def u(k, shape, fan_in):
        bound = 1.0 / float(fan_in) ** 0.5
        return jax.random.uniform(k, shape, jnp.float32, -bound, bound)

    return {
        "conv1_w": u(ks[0], (6, 3, 5, 5), 3 * 25),      # OIHW
        "conv1_b": u(ks[1], (6,), 3 * 25),
        "conv2_w": u(ks[2], (16, 6, 5, 5), 6 * 25),
        "conv2_b": u(ks[3], (16,), 6 * 25),
        "fc1_w": u(ks[4], (400, 120), 400),             # (in [CHW order], out)
        "fc1_b": u(ks[5], (120,), 400),
        "fc2_w": u(ks[6], (120, 84), 120),
        "fc2_b": u(ks[7], (84,), 120),
        "fc3_w": u(ks[8], (84, num_classes), 84),
        "fc3_b": u(ks[9], (num_classes,), 84),
    }


def _lowered_conv_weight(w_oihw, w_in):
    """Per-kh 'conv as matmul' weights, lowered along W.

    Returns (ksize, w_in*cin, wo*cout) float32 with
        out[kh, (wo+kw)*cin + c, col(wo, o)] = w[o, c, kh, kw]
    and output columns grouped [even wo | odd wo] so the 2x2 max-pool along W
    is just max(left_half, right_half) of the matmul result.
    """
    w = np.asarray(jax.device_get(w_oihw), dtype=np.float32)
    cout, cin, ksize, _ = w.shape
    wo = w_in - ksize + 1
    assert wo % 2 == 0
    half = (wo // 2) * cout
    m = np.zeros((ksize, w_in * cin, wo * cout), np.float32)
    for kh in range(ksize):
        for kw in range(ksize):
            blk = np.ascontiguousarray(w[:, :, kh, kw].T)      # (cin, cout)
            for j in range(wo):
                col = (j % 2) * half + (j // 2) * cout
                m[kh, (j + kw) * cin:(j + kw + 1) * cin, col:col + cout] = blk
    return m


def prepare_params(p):
    """One-time re-layout/cast of the PyTorch-layout params for the kernel."""
    nc = p["fc3_w"].shape[1]
    # Fold PyTorch's CHW flatten (c*25 + h*5 + w) into an (h, w, c)-row-order
    # fc1 weight so the kernel needs no activation transpose.
    wf1 = (np.asarray(jax.device_get(p["fc1_w"]), np.float32)
           .reshape(16, 5, 5, 120)          # (c, h, w, out)
           .transpose(1, 2, 0, 3)           # (h, w, c, out)
           .reshape(400, 120))
    return {
        "w1": jnp.asarray(_lowered_conv_weight(p["conv1_w"], 32), jnp.bfloat16),
        "b1": jnp.tile(p["conv1_b"], 28).reshape(1, 168).astype(jnp.float32),
        "w2": jnp.asarray(_lowered_conv_weight(p["conv2_w"], 14), jnp.bfloat16),
        "b2": jnp.tile(p["conv2_b"], 10).reshape(1, 160).astype(jnp.float32),
        "wf1": jnp.asarray(wf1, jnp.bfloat16),
        "bf1": p["fc1_b"].reshape(1, 120).astype(jnp.float32),
        "wf2": p["fc2_w"].astype(jnp.bfloat16),
        "bf2": p["fc2_b"].reshape(1, 84).astype(jnp.float32),
        "wf3": p["fc3_w"].astype(jnp.bfloat16),
        "bf3": p["fc3_b"].reshape(1, nc).astype(jnp.float32),
    }


# ----------------------------------------------------------------------------
# Pure-JAX f32 reference (PyTorch semantics) for a correctness check
# ----------------------------------------------------------------------------
def reference_forward(x, p):
    dn = ("NCHW", "OIHW", "NCHW")
    hp = jax.lax.Precision.HIGHEST

    def conv(y, w, b):
        y = jax.lax.conv_general_dilated(y, w, (1, 1), "VALID",
                                         dimension_numbers=dn, precision=hp)
        return jax.nn.relu(y + b[None, :, None, None])

    def pool(y):
        B, C, H, W = y.shape
        return y.reshape(B, C, H // 2, 2, W // 2, 2).max(axis=(3, 5))

    y = pool(conv(x, p["conv1_w"], p["conv1_b"]))
    y = pool(conv(y, p["conv2_w"], p["conv2_b"]))
    y = y.reshape(y.shape[0], -1)                        # CHW flatten (view())
    y = jax.nn.relu(jnp.dot(y, p["fc1_w"], precision=hp) + p["fc1_b"])
    y = jax.nn.relu(jnp.dot(y, p["fc2_w"], precision=hp) + p["fc2_b"])
    y = jnp.dot(y, p["fc3_w"], precision=hp) + p["fc3_b"]
    return jax.nn.log_softmax(y, axis=-1)


if __name__ == "__main__":
    key = jax.random.PRNGKey(0)
    kx, kp = jax.random.split(key)
    # CIFAR geometry is forced by the 16*5*5 flatten: 3x32x32 images.
    x = jax.random.normal(kx, (16, 3, 32, 32), jnp.float32)
    params = init_params(kp, num_classes=10)
    kparams = prepare_params(params)          # one-time weight re-layout

    # batch_tile=8 -> a 2-step grid (exercises tiling + "parallel" sharding).
    fwd = jax.jit(functools.partial(cnn_cifar_forward, batch_tile=8))
    out = jax.block_until_ready(fwd(x, kparams))
    assert out.shape == (16, 10)
    assert bool(jnp.all(jnp.isfinite(out)))

    ref = jax.block_until_ready(jax.jit(reference_forward)(x, params))
    max_err = float(jnp.max(jnp.abs(out - ref)))
    # bf16 MXU inputs vs f32-HIGHEST reference: ~1e-2 worst-case expected.
    assert max_err < 3e-2, f"kernel/reference mismatch: {max_err}"

    print("KERNEL_OK")
</pallas_src>

<mosaic_0001>
module attributes {stable_mosaic.version = 11 : i64} {
  func.func @_cnn_cifar_kernel(%arg0: i32, %arg1: memref<32x8x96xbf16, #tpu.memory_space<vmem>>, %arg2: memref<5x96x168xbf16, #tpu.memory_space<vmem>>, %arg3: memref<1x168xf32, #tpu.memory_space<vmem>>, %arg4: memref<5x84x160xbf16, #tpu.memory_space<vmem>>, %arg5: memref<1x160xf32, #tpu.memory_space<vmem>>, %arg6: memref<400x120xbf16, #tpu.memory_space<vmem>>, %arg7: memref<1x120xf32, #tpu.memory_space<vmem>>, %arg8: memref<120x84xbf16, #tpu.memory_space<vmem>>, %arg9: memref<1x84xf32, #tpu.memory_space<vmem>>, %arg10: memref<84x10xbf16, #tpu.memory_space<vmem>>, %arg11: memref<1x10xf32, #tpu.memory_space<vmem>>, %arg12: memref<8x10xf32, #tpu.memory_space<vmem>>) attributes {dimension_semantics = [#tpu.dimension_semantics<parallel>], iteration_bounds = array<i64: 2>, scalar_prefetch = 0 : i64, scratch_operands = 0 : i64, tpu.core_type = #tpu.core_type<tc>, window_params = [{transform_indices = @transform_0, window_bounds = array<i64: 32, 8, 96>}, {pipeline_mode = #tpu.pipeline_mode<synchronous>, transform_indices = @transform_1, window_bounds = array<i64: 5, 96, 168>}, {pipeline_mode = #tpu.pipeline_mode<synchronous>, transform_indices = @transform_2, window_bounds = array<i64: 1, 168>}, {pipeline_mode = #tpu.pipeline_mode<synchronous>, transform_indices = @transform_3, window_bounds = array<i64: 5, 84, 160>}, {pipeline_mode = #tpu.pipeline_mode<synchronous>, transform_indices = @transform_4, window_bounds = array<i64: 1, 160>}, {pipeline_mode = #tpu.pipeline_mode<synchronous>, transform_indices = @transform_5, window_bounds = array<i64: 400, 120>}, {pipeline_mode = #tpu.pipeline_mode<synchronous>, transform_indices = @transform_6, window_bounds = array<i64: 1, 120>}, {pipeline_mode = #tpu.pipeline_mode<synchronous>, transform_indices = @transform_7, window_bounds = array<i64: 120, 84>}, {pipeline_mode = #tpu.pipeline_mode<synchronous>, transform_indices = @transform_8, window_bounds = array<i64: 1, 84>}, {pipeline_mode = #tpu.pipeline_mode<synchronous>, transform_indices = @transform_9, window_bounds = array<i64: 84, 10>}, {pipeline_mode = #tpu.pipeline_mode<synchronous>, transform_indices = @transform_10, window_bounds = array<i64: 1, 10>}, {transform_indices = @transform_11, window_bounds = array<i64: 8, 10>}]} {
    %c0 = arith.constant 0 : index
    %c0_0 = arith.constant 0 : index
    %c0_1 = arith.constant 0 : index
    %0 = vector.load %arg1[%c0, %c0_0, %c0_1] : memref<32x8x96xbf16, #tpu.memory_space<vmem>>, vector<32x8x96xbf16>
    %1 = vector.extract_strided_slice %0 {offsets = [0, 0, 0], sizes = [28, 8, 96], strides = [1, 1, 1]} : vector<32x8x96xbf16> to vector<28x8x96xbf16>
    %2 = vector.shape_cast %1 : vector<28x8x96xbf16> to vector<224x96xbf16>
    %c0_2 = arith.constant 0 : index
    %c0_3 = arith.constant 0 : index
    %c0_4 = arith.constant 0 : index
    %3 = vector.load %arg2[%c0_2, %c0_3, %c0_4] : memref<5x96x168xbf16, #tpu.memory_space<vmem>>, vector<1x96x168xbf16>
    %4 = vector.shape_cast %3 : vector<1x96x168xbf16> to vector<96x168xbf16>
    %cst = arith.constant dense<0.000000e+00> : vector<224x168xf32>
    %5 = tpu.matmul %2, %4, %cst {dimension_numbers = #tpu.dot_dimension_numbers<[1], [0], [0], [1], [0, 0, 1, 1], [], []>} : vector<224x96xbf16>, vector<96x168xbf16>, vector<224x168xf32> -> vector<224x168xf32>
    %6 = vector.extract_strided_slice %0 {offsets = [1, 0, 0], sizes = [28, 8, 96], strides = [1, 1, 1]} : vector<32x8x96xbf16> to vector<28x8x96xbf16>
    %7 = vector.shape_cast %6 : vector<28x8x96xbf16> to vector<224x96xbf16>
    %c1 = arith.constant 1 : index
    %c0_5 = arith.constant 0 : index
    %c0_6 = arith.constant 0 : index
    %8 = vector.load %arg2[%c1, %c0_5, %c0_6] : memref<5x96x168xbf16, #tpu.memory_space<vmem>>, vector<1x96x168xbf16>
    %9 = vector.shape_cast %8 : vector<1x96x168xbf16> to vector<96x168xbf16>
    %cst_7 = arith.constant dense<0.000000e+00> : vector<224x168xf32>
    %10 = tpu.matmul %7, %9, %cst_7 {dimension_numbers = #tpu.dot_dimension_numbers<[1], [0], [0], [1], [0, 0, 1, 1], [], []>} : vector<224x96xbf16>, vector<96x168xbf16>, vector<224x168xf32> -> vector<224x168xf32>
    %11 = arith.addf %5, %10 : vector<224x168xf32>
    %12 = vector.extract_strided_slice %0 {offsets = [2, 0, 0], sizes = [28, 8, 96], strides = [1, 1, 1]} : vector<32x8x96xbf16> to vector<28x8x96xbf16>
    %13 = vector.shape_cast %12 : vector<28x8x96xbf16> to vector<224x96xbf16>
    %c2 = arith.constant 2 : index
    %c0_8 = arith.constant 0 : index
    %c0_9 = arith.constant 0 : index
    %14 = vector.load %arg2[%c2, %c0_8, %c0_9] : memref<5x96x168xbf16, #tpu.memory_space<vmem>>, vector<1x96x168xbf16>
    %15 = vector.shape_cast %14 : vector<1x96x168xbf16> to vector<96x168xbf16>
    %cst_10 = arith.constant dense<0.000000e+00> : vector<224x168xf32>
    %16 = tpu.matmul %13, %15, %cst_10 {dimension_numbers = #tpu.dot_dimension_numbers<[1], [0], [0], [1], [0, 0, 1, 1], [], []>} : vector<224x96xbf16>, vector<96x168xbf16>, vector<224x168xf32> -> vector<224x168xf32>
    %17 = arith.addf %11, %16 : vector<224x168xf32>
    %18 = vector.extract_strided_slice %0 {offsets = [3, 0, 0], sizes = [28, 8, 96], strides = [1, 1, 1]} : vector<32x8x96xbf16> to vector<28x8x96xbf16>
    %19 = vector.shape_cast %18 : vector<28x8x96xbf16> to vector<224x96xbf16>
    %c3 = arith.constant 3 : index
    %c0_11 = arith.constant 0 : index
    %c0_12 = arith.constant 0 : index
    %20 = vector.load %arg2[%c3, %c0_11, %c0_12] : memref<5x96x168xbf16, #tpu.memory_space<vmem>>, vector<1x96x168xbf16>
    %21 = vector.shape_cast %20 : vector<1x96x168xbf16> to vector<96x168xbf16>
    %cst_13 = arith.constant dense<0.000000e+00> : vector<224x168xf32>
    %22 = tpu.matmul %19, %21, %cst_13 {dimension_numbers = #tpu.dot_dimension_numbers<[1], [0], [0], [1], [0, 0, 1, 1], [], []>} : vector<224x96xbf16>, vector<96x168xbf16>, vector<224x168xf32> -> vector<224x168xf32>
    %23 = arith.addf %17, %22 : vector<224x168xf32>
    %24 = vector.extract_strided_slice %0 {offsets = [4, 0, 0], sizes = [28, 8, 96], strides = [1, 1, 1]} : vector<32x8x96xbf16> to vector<28x8x96xbf16>
    %25 = vector.shape_cast %24 : vector<28x8x96xbf16> to vector<224x96xbf16>
    %c4 = arith.constant 4 : index
    %c0_14 = arith.constant 0 : index
    %c0_15 = arith.constant 0 : index
    %26 = vector.load %arg2[%c4, %c0_14, %c0_15] : memref<5x96x168xbf16, #tpu.memory_space<vmem>>, vector<1x96x168xbf16>
    %27 = vector.shape_cast %26 : vector<1x96x168xbf16> to vector<96x168xbf16>
    %cst_16 = arith.constant dense<0.000000e+00> : vector<224x168xf32>
    %28 = tpu.matmul %25, %27, %cst_16 {dimension_numbers = #tpu.dot_dimension_numbers<[1], [0], [0], [1], [0, 0, 1, 1], [], []>} : vector<224x96xbf16>, vector<96x168xbf16>, vector<224x168xf32> -> vector<224x168xf32>
    %29 = arith.addf %23, %28 : vector<224x168xf32>
    %c0_17 = arith.constant 0 : index
    %c0_18 = arith.constant 0 : index
    %30 = vector.load %arg3[%c0_17, %c0_18] : memref<1x168xf32, #tpu.memory_space<vmem>>, vector<1x168xf32>
    %31 = vector.broadcast %30 : vector<1x168xf32> to vector<224x168xf32>
    %32 = arith.addf %29, %31 : vector<224x168xf32>
    %cst_19 = arith.constant 0.000000e+00 : f32
    %33 = vector.broadcast %cst_19 : f32 to vector<224x168xf32>
    %34 = arith.maximumf %32, %33 : vector<224x168xf32>
    %35 = vector.shape_cast %34 : vector<224x168xf32> to vector<14x2x8x168xf32>
    %36 = vector.extract_strided_slice %35 {offsets = [0, 0, 0, 0], sizes = [14, 1, 8, 168], strides = [1, 1, 1, 1]} : vector<14x2x8x168xf32> to vector<14x1x8x168xf32>
    %37 = vector.shape_cast %36 : vector<14x1x8x168xf32> to vector<14x8x168xf32>
    %38 = vector.extract_strided_slice %35 {offsets = [0, 1, 0, 0], sizes = [14, 1, 8, 168], strides = [1, 1, 1, 1]} : vector<14x2x8x168xf32> to vector<14x1x8x168xf32>
    %39 = vector.shape_cast %38 : vector<14x1x8x168xf32> to vector<14x8x168xf32>
    %40 = arith.maximumf %37, %39 : vector<14x8x168xf32>
    %41 = vector.extract_strided_slice %40 {offsets = [0, 0, 0], sizes = [14, 8, 84], strides = [1, 1, 1]} : vector<14x8x168xf32> to vector<14x8x84xf32>
    %42 = vector.extract_strided_slice %40 {offsets = [0, 0, 84], sizes = [14, 8, 84], strides = [1, 1, 1]} : vector<14x8x168xf32> to vector<14x8x84xf32>
    %43 = arith.maximumf %41, %42 : vector<14x8x84xf32>
    %44 = arith.truncf %43 : vector<14x8x84xf32> to vector<14x8x84xbf16>
    %45 = vector.extract_strided_slice %44 {offsets = [0, 0, 0], sizes = [10, 8, 84], strides = [1, 1, 1]} : vector<14x8x84xbf16> to vector<10x8x84xbf16>
    %46 = vector.shape_cast %45 : vector<10x8x84xbf16> to vector<80x84xbf16>
    %c0_20 = arith.constant 0 : index
    %c0_21 = arith.constant 0 : index
    %c0_22 = arith.constant 0 : index
    %47 = vector.load %arg4[%c0_20, %c0_21, %c0_22] : memref<5x84x160xbf16, #tpu.memory_space<vmem>>, vector<1x84x160xbf16>
    %48 = vector.shape_cast %47 : vector<1x84x160xbf16> to vector<84x160xbf16>
    %cst_23 = arith.constant dense<0.000000e+00> : vector<80x160xf32>
    %49 = tpu.matmul %46, %48, %cst_23 {dimension_numbers = #tpu.dot_dimension_numbers<[1], [0], [0], [1], [0, 0, 1, 1], [], []>} : vector<80x84xbf16>, vector<84x160xbf16>, vector<80x160xf32> -> vector<80x160xf32>
    %50 = vector.extract_strided_slice %44 {offsets = [1, 0, 0], sizes = [10, 8, 84], strides = [1, 1, 1]} : vector<14x8x84xbf16> to vector<10x8x84xbf16>
    %51 = vector.shape_cast %50 : vector<10x8x84xbf16> to vector<80x84xbf16>
    %c1_24 = arith.constant 1 : index
    %c0_25 = arith.constant 0 : index
    %c0_26 = arith.constant 0 : index
    %52 = vector.load %arg4[%c1_24, %c0_25, %c0_26] : memref<5x84x160xbf16, #tpu.memory_space<vmem>>, vector<1x84x160xbf16>
    %53 = vector.shape_cast %52 : vector<1x84x160xbf16> to vector<84x160xbf16>
    %cst_27 = arith.constant dense<0.000000e+00> : vector<80x160xf32>
    %54 = tpu.matmul %51, %53, %cst_27 {dimension_numbers = #tpu.dot_dimension_numbers<[1], [0], [0], [1], [0, 0, 1, 1], [], []>} : vector<80x84xbf16>, vector<84x160xbf16>, vector<80x160xf32> -> vector<80x160xf32>
    %55 = arith.addf %49, %54 : vector<80x160xf32>
    %56 = vector.extract_strided_slice %44 {offsets = [2, 0, 0], sizes = [10, 8, 84], strides = [1, 1, 1]} : vector<14x8x84xbf16> to vector<10x8x84xbf16>
    %57 = vector.shape_cast %56 : vector<10x8x84xbf16> to vector<80x84xbf16>
    %c2_28 = arith.constant 2 : index
    %c0_29 = arith.constant 0 : index
    %c0_30 = arith.constant 0 : index
    %58 = vector.load %arg4[%c2_28, %c0_29, %c0_30] : memref<5x84x160xbf16, #tpu.memory_space<vmem>>, vector<1x84x160xbf16>
    %59 = vector.shape_cast %58 : vector<1x84x160xbf16> to vector<84x160xbf16>
    %cst_31 = arith.constant dense<0.000000e+00> : vector<80x160xf32>
    %60 = tpu.matmul %57, %59, %cst_31 {dimension_numbers = #tpu.dot_dimension_numbers<[1], [0], [0], [1], [0, 0, 1, 1], [], []>} : vector<80x84xbf16>, vector<84x160xbf16>, vector<80x160xf32> -> vector<80x160xf32>
    %61 = arith.addf %55, %60 : vector<80x160xf32>
    %62 = vector.extract_strided_slice %44 {offsets = [3, 0, 0], sizes = [10, 8, 84], strides = [1, 1, 1]} : vector<14x8x84xbf16> to vector<10x8x84xbf16>
    %63 = vector.shape_cast %62 : vector<10x8x84xbf16> to vector<80x84xbf16>
    %c3_32 = arith.constant 3 : index
    %c0_33 = arith.constant 0 : index
    %c0_34 = arith.constant 0 : index
    %64 = vector.load %arg4[%c3_32, %c0_33, %c0_34] : memref<5x84x160xbf16, #tpu.memory_space<vmem>>, vector<1x84x160xbf16>
    %65 = vector.shape_cast %64 : vector<1x84x160xbf16> to vector<84x160xbf16>
    %cst_35 = arith.constant dense<0.000000e+00> : vector<80x160xf32>
    %66 = tpu.matmul %63, %65, %cst_35 {dimension_numbers = #tpu.dot_dimension_numbers<[1], [0], [0], [1], [0, 0, 1, 1], [], []>} : vector<80x84xbf16>, vector<84x160xbf16>, vector<80x160xf32> -> vector<80x160xf32>
    %67 = arith.addf %61, %66 : vector<80x160xf32>
    %68 = vector.extract_strided_slice %44 {offsets = [4, 0, 0], sizes = [10, 8, 84], strides = [1, 1, 1]} : vector<14x8x84xbf16> to vector<10x8x84xbf16>
    %69 = vector.shape_cast %68 : vector<10x8x84xbf16> to vector<80x84xbf16>
    %c4_36 = arith.constant 4 : index
    %c0_37 = arith.constant 0 : index
    %c0_38 = arith.constant 0 : index
    %70 = vector.load %arg4[%c4_36, %c0_37, %c0_38] : memref<5x84x160xbf16, #tpu.memory_space<vmem>>, vector<1x84x160xbf16>
    %71 = vector.shape_cast %70 : vector<1x84x160xbf16> to vector<84x160xbf16>
    %cst_39 = arith.constant dense<0.000000e+00> : vector<80x160xf32>
    %72 = tpu.matmul %69, %71, %cst_39 {dimension_numbers = #tpu.dot_dimension_numbers<[1], [0], [0], [1], [0, 0, 1, 1], [], []>} : vector<80x84xbf16>, vector<84x160xbf16>, vector<80x160xf32> -> vector<80x160xf32>
    %73 = arith.addf %67, %72 : vector<80x160xf32>
    %c0_40 = arith.constant 0 : index
    %c0_41 = arith.constant 0 : index
    %74 = vector.load %arg5[%c0_40, %c0_41] : memref<1x160xf32, #tpu.memory_space<vmem>>, vector<1x160xf32>
    %75 = vector.broadcast %74 : vector<1x160xf32> to vector<80x160xf32>
    %76 = arith.addf %73, %75 : vector<80x160xf32>
    %cst_42 = arith.constant 0.000000e+00 : f32
    %77 = vector.broadcast %cst_42 : f32 to vector<80x160xf32>
    %78 = arith.maximumf %76, %77 : vector<80x160xf32>
    %79 = vector.shape_cast %78 : vector<80x160xf32> to vector<5x2x8x160xf32>
    %80 = vector.extract_strided_slice %79 {offsets = [0, 0, 0, 0], sizes = [5, 1, 8, 160], strides = [1, 1, 1, 1]} : vector<5x2x8x160xf32> to vector<5x1x8x160xf32>
    %81 = vector.shape_cast %80 : vector<5x1x8x160xf32> to vector<5x8x160xf32>
    %82 = vector.extract_strided_slice %79 {offsets = [0, 1, 0, 0], sizes = [5, 1, 8, 160], strides = [1, 1, 1, 1]} : vector<5x2x8x160xf32> to vector<5x1x8x160xf32>
    %83 = vector.shape_cast %82 : vector<5x1x8x160xf32> to vector<5x8x160xf32>
    %84 = arith.maximumf %81, %83 : vector<5x8x160xf32>
    %85 = vector.extract_strided_slice %84 {offsets = [0, 0, 0], sizes = [5, 8, 80], strides = [1, 1, 1]} : vector<5x8x160xf32> to vector<5x8x80xf32>
    %86 = vector.extract_strided_slice %84 {offsets = [0, 0, 80], sizes = [5, 8, 80], strides = [1, 1, 1]} : vector<5x8x160xf32> to vector<5x8x80xf32>
    %87 = arith.maximumf %85, %86 : vector<5x8x80xf32>
    %88 = arith.truncf %87 : vector<5x8x80xf32> to vector<5x8x80xbf16>
    %89 = vector.extract_strided_slice %88 {offsets = [0, 0, 0], sizes = [1, 8, 80], strides = [1, 1, 1]} : vector<5x8x80xbf16> to vector<1x8x80xbf16>
    %90 = vector.shape_cast %89 : vector<1x8x80xbf16> to vector<8x80xbf16>
    %91 = vector.extract_strided_slice %88 {offsets = [1, 0, 0], sizes = [1, 8, 80], strides = [1, 1, 1]} : vector<5x8x80xbf16> to vector<1x8x80xbf16>
    %92 = vector.shape_cast %91 : vector<1x8x80xbf16> to vector<8x80xbf16>
    %93 = vector.extract_strided_slice %88 {offsets = [2, 0, 0], sizes = [1, 8, 80], strides = [1, 1, 1]} : vector<5x8x80xbf16> to vector<1x8x80xbf16>
    %94 = vector.shape_cast %93 : vector<1x8x80xbf16> to vector<8x80xbf16>
    %95 = vector.extract_strided_slice %88 {offsets = [3, 0, 0], sizes = [1, 8, 80], strides = [1, 1, 1]} : vector<5x8x80xbf16> to vector<1x8x80xbf16>
    %96 = vector.shape_cast %95 : vector<1x8x80xbf16> to vector<8x80xbf16>
    %97 = vector.extract_strided_slice %88 {offsets = [4, 0, 0], sizes = [1, 8, 80], strides = [1, 1, 1]} : vector<5x8x80xbf16> to vector<1x8x80xbf16>
    %98 = vector.shape_cast %97 : vector<1x8x80xbf16> to vector<8x80xbf16>
    %99 = tpu.concatenate %90, %92, %94, %96, %98 in 1 : vector<8x80xbf16>, vector<8x80xbf16>, vector<8x80xbf16>, vector<8x80xbf16>, vector<8x80xbf16> -> vector<8x400xbf16>
    %c0_43 = arith.constant 0 : index
    %c0_44 = arith.constant 0 : index
    %100 = vector.load %arg6[%c0_43, %c0_44] : memref<400x120xbf16, #tpu.memory_space<vmem>>, vector<400x120xbf16>
    %cst_45 = arith.constant dense<0.000000e+00> : vector<8x120xf32>
    %101 = tpu.matmul %99, %100, %cst_45 {dimension_numbers = #tpu.dot_dimension_numbers<[1], [0], [0], [1], [0, 0, 1, 1], [], []>} : vector<8x400xbf16>, vector<400x120xbf16>, vector<8x120xf32> -> vector<8x120xf32>
    %c0_46 = arith.constant 0 : index
    %c0_47 = arith.constant 0 : index
    %102 = vector.load %arg7[%c0_46, %c0_47] : memref<1x120xf32, #tpu.memory_space<vmem>>, vector<1x120xf32>
    %103 = vector.broadcast %102 : vector<1x120xf32> to vector<8x120xf32>
    %104 = arith.addf %101, %103 : vector<8x120xf32>
    %cst_48 = arith.constant 0.000000e+00 : f32
    %105 = vector.broadcast %cst_48 : f32 to vector<8x120xf32>
    %106 = arith.maximumf %104, %105 : vector<8x120xf32>
    %107 = arith.truncf %106 : vector<8x120xf32> to vector<8x120xbf16>
    %c0_49 = arith.constant 0 : index
    %c0_50 = arith.constant 0 : index
    %108 = vector.load %arg8[%c0_49, %c0_50] : memref<120x84xbf16, #tpu.memory_space<vmem>>, vector<120x84xbf16>
    %cst_51 = arith.constant dense<0.000000e+00> : vector<8x84xf32>
    %109 = tpu.matmul %107, %108, %cst_51 {dimension_numbers = #tpu.dot_dimension_numbers<[1], [0], [0], [1], [0, 0, 1, 1], [], []>} : vector<8x120xbf16>, vector<120x84xbf16>, vector<8x84xf32> -> vector<8x84xf32>
    %c0_52 = arith.constant 0 : index
    %c0_53 = arith.constant 0 : index
    %110 = vector.load %arg9[%c0_52, %c0_53] : memref<1x84xf32, #tpu.memory_space<vmem>>, vector<1x84xf32>
    %111 = vector.broadcast %110 : vector<1x84xf32> to vector<8x84xf32>
    %112 = arith.addf %109, %111 : vector<8x84xf32>
    %cst_54 = arith.constant 0.000000e+00 : f32
    %113 = vector.broadcast %cst_54 : f32 to vector<8x84xf32>
    %114 = arith.maximumf %112, %113 : vector<8x84xf32>
    %115 = arith.truncf %114 : vector<8x84xf32> to vector<8x84xbf16>
    %c0_55 = arith.constant 0 : index
    %c0_56 = arith.constant 0 : index
    %116 = vector.load %arg10[%c0_55, %c0_56] : memref<84x10xbf16, #tpu.memory_space<vmem>>, vector<84x10xbf16>
    %cst_57 = arith.constant dense<0.000000e+00> : vector<8x10xf32>
    %117 = tpu.matmul %115, %116, %cst_57 {dimension_numbers = #tpu.dot_dimension_numbers<[1], [0], [0], [1], [0, 0, 1, 1], [], []>} : vector<8x84xbf16>, vector<84x10xbf16>, vector<8x10xf32> -> vector<8x10xf32>
    %c0_58 = arith.constant 0 : index
    %c0_59 = arith.constant 0 : index
    %118 = vector.load %arg11[%c0_58, %c0_59] : memref<1x10xf32, #tpu.memory_space<vmem>>, vector<1x10xf32>
    %119 = vector.broadcast %118 : vector<1x10xf32> to vector<8x10xf32>
    %120 = arith.addf %117, %119 : vector<8x10xf32>
    %cst_60 = arith.constant dense<0xFF800000> : vector<8xf32>
    %121 = vector.multi_reduction <maximumf>, %120, %cst_60 [1] : vector<8x10xf32> to vector<8xf32>
    %122 = vector.shape_cast %121 : vector<8xf32> to vector<8x1xf32>
    %123 = vector.broadcast %122 : vector<8x1xf32> to vector<8x10xf32>
    %124 = arith.subf %120, %123 : vector<8x10xf32>
    %125 = math.exp %124 : vector<8x10xf32>
    %cst_61 = arith.constant dense<0.000000e+00> : vector<8xf32>
    %126 = vector.multi_reduction <add>, %125, %cst_61 [1] : vector<8x10xf32> to vector<8xf32>
    %127 = vector.shape_cast %126 : vector<8xf32> to vector<8x1xf32>
    %128 = math.log %127 : vector<8x1xf32>
    %129 = vector.broadcast %128 : vector<8x1xf32> to vector<8x10xf32>
    %130 = arith.subf %124, %129 : vector<8x10xf32>
    %c0_62 = arith.constant 0 : index
    %c0_63 = arith.constant 0 : index
    %131 = vector.load %arg12[%c0_62, %c0_63] : memref<8x10xf32, #tpu.memory_space<vmem>>, vector<8x10xf32>
    tpu.vector_store %arg12[%c0_62, %c0_63], %130 {strides = array<i32>} : memref<8x10xf32, #tpu.memory_space<vmem>>, vector<8x10xf32>,
    return
  }
  func.func @transform_0(%arg0: i32) -> (i32, i32, i32) {
    %c0_i32 = arith.constant 0 : i32
    %c0_i32_0 = arith.constant 0 : i32
    %c0_i32_1 = arith.constant 0 : i32
    return %c0_i32, %arg0, %c0_i32_0 : i32, i32, i32
  }
  func.func @transform_1(%arg0: i32) -> (i32, i32, i32) {
    %c0_i32 = arith.constant 0 : i32
    %c0_i32_0 = arith.constant 0 : i32
    %c0_i32_1 = arith.constant 0 : i32
    %c0_i32_2 = arith.constant 0 : i32
    return %c0_i32, %c0_i32_0, %c0_i32_1 : i32, i32, i32
  }
  func.func @transform_2(%arg0: i32) -> (i32, i32) {
    %c0_i32 = arith.constant 0 : i32
    %c0_i32_0 = arith.constant 0 : i32
    %c0_i32_1 = arith.constant 0 : i32
    return %c0_i32, %c0_i32_0 : i32, i32
  }
  func.func @transform_3(%arg0: i32) -> (i32, i32, i32) {
    %c0_i32 = arith.constant 0 : i32
    %c0_i32_0 = arith.constant 0 : i32
    %c0_i32_1 = arith.constant 0 : i32
    %c0_i32_2 = arith.constant 0 : i32
    return %c0_i32, %c0_i32_0, %c0_i32_1 : i32, i32, i32
  }
  func.func @transform_4(%arg0: i32) -> (i32, i32) {
    %c0_i32 = arith.constant 0 : i32
    %c0_i32_0 = arith.constant 0 : i32
    %c0_i32_1 = arith.constant 0 : i32
    return %c0_i32, %c0_i32_0 : i32, i32
  }
  func.func @transform_5(%arg0: i32) -> (i32, i32) {
    %c0_i32 = arith.constant 0 : i32
    %c0_i32_0 = arith.constant 0 : i32
    %c0_i32_1 = arith.constant 0 : i32
    return %c0_i32, %c0_i32_0 : i32, i32
  }
  func.func @transform_6(%arg0: i32) -> (i32, i32) {
    %c0_i32 = arith.constant 0 : i32
    %c0_i32_0 = arith.constant 0 : i32
    %c0_i32_1 = arith.constant 0 : i32
    return %c0_i32, %c0_i32_0 : i32, i32
  }
  func.func @transform_7(%arg0: i32) -> (i32, i32) {
    %c0_i32 = arith.constant 0 : i32
    %c0_i32_0 = arith.constant 0 : i32
    %c0_i32_1 = arith.constant 0 : i32
    return %c0_i32, %c0_i32_0 : i32, i32
  }
  func.func @transform_8(%arg0: i32) -> (i32, i32) {
    %c0_i32 = arith.constant 0 : i32
    %c0_i32_0 = arith.constant 0 : i32
    %c0_i32_1 = arith.constant 0 : i32
    return %c0_i32, %c0_i32_0 : i32, i32
  }
  func.func @transform_9(%arg0: i32) -> (i32, i32) {
    %c0_i32 = arith.constant 0 : i32
    %c0_i32_0 = arith.constant 0 : i32
    %c0_i32_1 = arith.constant 0 : i32
    return %c0_i32, %c0_i32_0 : i32, i32
  }
  func.func @transform_10(%arg0: i32) -> (i32, i32) {
    %c0_i32 = arith.constant 0 : i32
    %c0_i32_0 = arith.constant 0 : i32
    %c0_i32_1 = arith.constant 0 : i32
    return %c0_i32, %c0_i32_0 : i32, i32
  }
  func.func @transform_11(%arg0: i32) -> (i32, i32) {
    %c0_i32 = arith.constant 0 : i32
    %c0_i32_0 = arith.constant 0 : i32
    return %arg0, %c0_i32 : i32, i32
  }
}

</mosaic_0001>

<llo_original>
// kernel: cnn_cifar_forward.1
$region0: #{cnn_cifar_forward.1}
  #allocation0 [shape = 'u32[]', space=smem, size = 0x4, offset = 0x4, fixed_abs, tag = 'smem constant byte address 0x4 - core index']
  #allocation1 [shape = 'u32[144,128]{1,0:T(1,128)}', space=vmem, size = 0x12000, scoped, tag = 'internal scratch']
  %s0 = inlined_call_operand.vmem [shape: bf16[32,16,96], index: 0, kind: input, shape index: {}]
  %s1 = inlined_call_operand.vmem [shape: bf16[5,96,168], index: 1, kind: input, shape index: {}]
  %s2 = inlined_call_operand.vmem [shape: f32[1,168], index: 2, kind: input, shape index: {}]
  %s3 = inlined_call_operand.vmem [shape: bf16[5,84,160], index: 3, kind: input, shape index: {}]
  %s4 = inlined_call_operand.vmem [shape: f32[1,160], index: 4, kind: input, shape index: {}]
  %s5 = inlined_call_operand.vmem [shape: bf16[400,120], index: 5, kind: input, shape index: {}]
  %s6 = inlined_call_operand.vmem [shape: f32[1,120], index: 6, kind: input, shape index: {}]
  %s7 = inlined_call_operand.vmem [shape: bf16[120,84], index: 7, kind: input, shape index: {}]
  %s8 = inlined_call_operand.vmem [shape: f32[1,84], index: 8, kind: input, shape index: {}]
  %s9 = inlined_call_operand.vmem [shape: bf16[84,10], index: 9, kind: input, shape index: {}]
  %s10 = inlined_call_operand.vmem [shape: f32[1,10], index: 10, kind: input, shape index: {}]
  %s11 = inlined_call_operand.hbm [shape: f32[16,10], index: 11, kind: output, shape index: {}]
  %s12 = sld [smem:[#allocation0]]
  $region118: #{cnn_cifar_forward.1} parent=0
    _
  %s14 = ssub.s32 1, %s12
  %s15 = scalar_select 0, %s14, %s12
  $region1: #{cnn_cifar_forward.1} parent=0
    #allocation2 [shape = 'u8[131072]{0}', space=vmem, size = 0x20000, scoped, tag = 'input window, operand 0']
    #allocation3 [shape = 'u8[8192]{0}', space=vmem, size = 0x2000, scoped, tag = 'output window, operand 0']
    #allocation4 [shape = 's32[2]{0}', space=sflag, size = 0x8, scoped, tag = 'scoped memory for cnn_cifar_forward.1']
    %16 = vsyncpa [#allocation4], 0
    %s17 = scalar_lea.sflag [#allocation4], 1
    %18 = vsyncpa %s17, 0
    loop: start=0, step=1, limit=4
    $region2: #{cnn_cifar_forward.1} parent=1 // loop_pre_header
      _
    $region3: #{cnn_cifar_forward.1} parent=1 // loop_header
      %s20 = sphi 0, %s24
      %p21 = scmp.ge.s32.totalorder %s20, 4
      %s30 = sphi 0, %s32
      %s33 = sphi 0, %s30
      %s34 = sphi 0, %s33
      %s50 = sphi 0, %s34
      %s54 = sphi 0, %s54
      %s56 = sphi 0, %s54
      %s57 = sphi 0, %s56
      %s71 = sphi 0, %s57
      %s75 = sphi 0, %s75
      %s77 = sphi 0, %s75
      %s78 = sphi 0, %s77
      %s92 = sphi 0, %s78
      %s96 = sphi 0, %s96
      %s98 = sphi 0, %s96
      %s99 = sphi 0, %s98
      %s113 = sphi 0, %s99
      %s117 = sphi 0, %s117
      %s119 = sphi 0, %s117
      %s120 = sphi 0, %s119
      %s134 = sphi 0, %s120
      %s138 = sphi 0, %s138
      %s140 = sphi 0, %s138
      %s141 = sphi 0, %s140
      %s155 = sphi 0, %s141
      %s159 = sphi 0, %s159
      %s161 = sphi 0, %s159
      %s162 = sphi 0, %s161
      %s176 = sphi 0, %s162
      %s180 = sphi 0, %s180
      %s182 = sphi 0, %s180
      %s183 = sphi 0, %s182
      %s197 = sphi 0, %s183
      %s201 = sphi 0, %s201
      %s203 = sphi 0, %s201
      %s204 = sphi 0, %s203
      %s218 = sphi 0, %s204
      %s222 = sphi 0, %s222
      %s224 = sphi 0, %s222
      %s225 = sphi 0, %s224
      %s239 = sphi 0, %s225
      %s243 = sphi 0, %s243
      %s245 = sphi 0, %s243
      %s246 = sphi 0, %s245
      %s260 = sphi 0, %s246
      %s266 = sphi 0, %s268
      %s269 = sphi 0, %s266
      %s270 = sphi 0, %s269
      %s286 = sphi 0, %s270
    $region4: #{cnn_cifar_forward.1} parent=1 // loop_header_branch
      %23 = sbr.rel (%p21) target = $region8
    $region5: #{cnn_cifar_forward.1} parent=1 // loop_body
      %s25 = ssub.s32 %s20, 1
      %s26 = ssub.s32 %s20, 2
      %s27 = sadd.s32 %s20, 1
      %s28 = ssub.s32 %s20, %s27
      %p29 = scmp.eq.s32.totalorder %s28, 0
      %s31 = sadd.s32 %s30, 1
      %s32 = scalar_select %p29, %s30, %s31
      %p35 = pneg %p29
      %p36 = scmp.eq.s32.totalorder %s20, 1
      %p37 = por %p35, %p36
      %p38 = scmp.ne.s32.totalorder %s30, %s33
      %p39 = scmp.eq.s32.totalorder %s20, 0
      %p40 = por %p38, %p39
      %p41 = scmp.ne.s32.totalorder %s30, %s33
      %p42 = scmp.eq.s32.totalorder %s25, 1
      %p43 = por %p41, %p42
      %p44 = scmp.ne.s32.totalorder %s33, %s34
      %p45 = scmp.eq.s32.totalorder %s25, 0
      %p46 = por %p44, %p45
      %p47 = scmp.ne.s32.totalorder %s33, %s34
      %p48 = scmp.eq.s32.totalorder %s26, 1
      %p49 = por %p47, %p48
      %p51 = scmp.ne.s32.totalorder %s34, %s50
      %p52 = scmp.eq.s32.totalorder %s26, 0
      %p53 = por %p51, %p52
      %s55 = sadd.s32 %s54, 1
      %p58 = scmp.eq.s32.totalorder %s20, 1
      %p59 = scmp.ne.s32.totalorder %s54, %s56
      %p60 = scmp.eq.s32.totalorder %s20, 0
      %p61 = por %p59, %p60
      %p62 = scmp.ne.s32.totalorder %s54, %s56
      %p63 = scmp.eq.s32.totalorder %s25, 1
      %p64 = por %p62, %p63
      %p65 = scmp.ne.s32.totalorder %s56, %s57
      %p66 = scmp.eq.s32.totalorder %s25, 0
      %p67 = por %p65, %p66
      %p68 = scmp.ne.s32.totalorder %s56, %s57
      %p69 = scmp.eq.s32.totalorder %s26, 1
      %p70 = por %p68, %p69
      %p72 = scmp.ne.s32.totalorder %s57, %s71
      %p73 = scmp.eq.s32.totalorder %s26, 0
      %p74 = por %p72, %p73
      %s76 = sadd.s32 %s75, 1
      %p79 = scmp.eq.s32.totalorder %s20, 1
      %p80 = scmp.ne.s32.totalorder %s75, %s77
      %p81 = scmp.eq.s32.totalorder %s20, 0
      %p82 = por %p80, %p81
      %p83 = scmp.ne.s32.totalorder %s75, %s77
      %p84 = scmp.eq.s32.totalorder %s25, 1
      %p85 = por %p83, %p84
      %p86 = scmp.ne.s32.totalorder %s77, %s78
      %p87 = scmp.eq.s32.totalorder %s25, 0
      %p88 = por %p86, %p87
      %p89 = scmp.ne.s32.totalorder %s77, %s78
      %p90 = scmp.eq.s32.totalorder %s26, 1
      %p91 = por %p89, %p90
      %p93 = scmp.ne.s32.totalorder %s78, %s92
      %p94 = scmp.eq.s32.totalorder %s26, 0
      %p95 = por %p93, %p94
      %s97 = sadd.s32 %s96, 1
      %p100 = scmp.eq.s32.totalorder %s20, 1
      %p101 = scmp.ne.s32.totalorder %s96, %s98
      %p102 = scmp.eq.s32.totalorder %s20, 0
      %p103 = por %p101, %p102
      %p104 = scmp.ne.s32.totalorder %s96, %s98
      %p105 = scmp.eq.s32.totalorder %s25, 1
      %p106 = por %p104, %p105
      %p107 = scmp.ne.s32.totalorder %s98, %s99
      %p108 = scmp.eq.s32.totalorder %s25, 0
      %p109 = por %p107, %p108
      %p110 = scmp.ne.s32.totalorder %s98, %s99
      %p111 = scmp.eq.s32.totalorder %s26, 1
      %p112 = por %p110, %p111
      %p114 = scmp.ne.s32.totalorder %s99, %s113
      %p115 = scmp.eq.s32.totalorder %s26, 0
      %p116 = por %p114, %p115
      %s118 = sadd.s32 %s117, 1
      %p121 = scmp.eq.s32.totalorder %s20, 1
      %p122 = scmp.ne.s32.totalorder %s117, %s119
      %p123 = scmp.eq.s32.totalorder %s20, 0
      %p124 = por %p122, %p123
      %p125 = scmp.ne.s32.totalorder %s117, %s119
      %p126 = scmp.eq.s32.totalorder %s25, 1
      %p127 = por %p125, %p126
      %p128 = scmp.ne.s32.totalorder %s119, %s120
      %p129 = scmp.eq.s32.totalorder %s25, 0
      %p130 = por %p128, %p129
      %p131 = scmp.ne.s32.totalorder %s119, %s120
      %p132 = scmp.eq.s32.totalorder %s26, 1
      %p133 = por %p131, %p132
      %p135 = scmp.ne.s32.totalorder %s120, %s134
      %p136 = scmp.eq.s32.totalorder %s26, 0
      %p137 = por %p135, %p136
      %s139 = sadd.s32 %s138, 1
      %p142 = scmp.eq.s32.totalorder %s20, 1
      %p143 = scmp.ne.s32.totalorder %s138, %s140
      %p144 = scmp.eq.s32.totalorder %s20, 0
      %p145 = por %p143, %p144
      %p146 = scmp.ne.s32.totalorder %s138, %s140
      %p147 = scmp.eq.s32.totalorder %s25, 1
      %p148 = por %p146, %p147
      %p149 = scmp.ne.s32.totalorder %s140, %s141
      %p150 = scmp.eq.s32.totalorder %s25, 0
      %p151 = por %p149, %p150
      %p152 = scmp.ne.s32.totalorder %s140, %s141
      %p153 = scmp.eq.s32.totalorder %s26, 1
      %p154 = por %p152, %p153
      %p156 = scmp.ne.s32.totalorder %s141, %s155
      %p157 = scmp.eq.s32.totalorder %s26, 0
      %p158 = por %p156, %p157
      %s160 = sadd.s32 %s159, 1
      %p163 = scmp.eq.s32.totalorder %s20, 1
      %p164 = scmp.ne.s32.totalorder %s159, %s161
      %p165 = scmp.eq.s32.totalorder %s20, 0
      %p166 = por %p164, %p165
      %p167 = scmp.ne.s32.totalorder %s159, %s161
      %p168 = scmp.eq.s32.totalorder %s25, 1
      %p169 = por %p167, %p168
      %p170 = scmp.ne.s32.totalorder %s161, %s162
      %p171 = scmp.eq.s32.totalorder %s25, 0
      %p172 = por %p170, %p171
      %p173 = scmp.ne.s32.totalorder %s161, %s162
      %p174 = scmp.eq.s32.totalorder %s26, 1
      %p175 = por %p173, %p174
      %p177 = scmp.ne.s32.totalorder %s162, %s176
      %p178 = scmp.eq.s32.totalorder %s26, 0
      %p179 = por %p177, %p178
      %s181 = sadd.s32 %s180, 1
      %p184 = scmp.eq.s32.totalorder %s20, 1
      %p185 = scmp.ne.s32.totalorder %s180, %s182
      %p186 = scmp.eq.s32.totalorder %s20, 0
      %p187 = por %p185, %p186
      %p188 = scmp.ne.s32.totalorder %s180, %s182
      %p189 = scmp.eq.s32.totalorder %s25, 1
      %p190 = por %p188, %p189
      %p191 = scmp.ne.s32.totalorder %s182, %s183
      %p192 = scmp.eq.s32.totalorder %s25, 0
      %p193 = por %p191, %p192
      %p194 = scmp.ne.s32.totalorder %s182, %s183
      %p195 = scmp.eq.s32.totalorder %s26, 1
      %p196 = por %p194, %p195
      %p198 = scmp.ne.s32.totalorder %s183, %s197
      %p199 = scmp.eq.s32.totalorder %s26, 0
      %p200 = por %p198, %p199
      %s202 = sadd.s32 %s201, 1
      %p205 = scmp.eq.s32.totalorder %s20, 1
      %p206 = scmp.ne.s32.totalorder %s201, %s203
      %p207 = scmp.eq.s32.totalorder %s20, 0
      %p208 = por %p206, %p207
      %p209 = scmp.ne.s32.totalorder %s201, %s203
      %p210 = scmp.eq.s32.totalorder %s25, 1
      %p211 = por %p209, %p210
      %p212 = scmp.ne.s32.totalorder %s203, %s204
      %p213 = scmp.eq.s32.totalorder %s25, 0
      %p214 = por %p212, %p213
      %p215 = scmp.ne.s32.totalorder %s203, %s204
      %p216 = scmp.eq.s32.totalorder %s26, 1
      %p217 = por %p215, %p216
      %p219 = scmp.ne.s32.totalorder %s204, %s218
      %p220 = scmp.eq.s32.totalorder %s26, 0
      %p221 = por %p219, %p220
      %s223 = sadd.s32 %s222, 1
      %p226 = scmp.eq.s32.totalorder %s20, 1
      %p227 = scmp.ne.s32.totalorder %s222, %s224
      %p228 = scmp.eq.s32.totalorder %s20, 0
      %p229 = por %p227, %p228
      %p230 = scmp.ne.s32.totalorder %s222, %s224
      %p231 = scmp.eq.s32.totalorder %s25, 1
      %p232 = por %p230, %p231
      %p233 = scmp.ne.s32.totalorder %s224, %s225
      %p234 = scmp.eq.s32.totalorder %s25, 0
      %p235 = por %p233, %p234
      %p236 = scmp.ne.s32.totalorder %s224, %s225
      %p237 = scmp.eq.s32.totalorder %s26, 1
      %p238 = por %p236, %p237
      %p240 = scmp.ne.s32.totalorder %s225, %s239
      %p241 = scmp.eq.s32.totalorder %s26, 0
      %p242 = por %p240, %p241
      %s244 = sadd.s32 %s243, 1
      %p247 = scmp.eq.s32.totalorder %s20, 1
      %p248 = scmp.ne.s32.totalorder %s243, %s245
      %p249 = scmp.eq.s32.totalorder %s20, 0
      %p250 = por %p248, %p249
      %p251 = scmp.ne.s32.totalorder %s243, %s245
      %p252 = scmp.eq.s32.totalorder %s25, 1
      %p253 = por %p251, %p252
      %p254 = scmp.ne.s32.totalorder %s245, %s246
      %p255 = scmp.eq.s32.totalorder %s25, 0
      %p256 = por %p254, %p255
      %p257 = scmp.ne.s32.totalorder %s245, %s246
      %p258 = scmp.eq.s32.totalorder %s26, 1
      %p259 = por %p257, %p258
      %p261 = scmp.ne.s32.totalorder %s246, %s260
      %p262 = scmp.eq.s32.totalorder %s26, 0
      %p263 = por %p261, %p262
      %s264 = ssub.s32 %s20, %s27
      %p265 = scmp.eq.s32.totalorder %s264, 0
      %s267 = sadd.s32 %s266, 1
      %s268 = scalar_select %p265, %s266, %s267
      %p271 = pneg %p265
      %p272 = scmp.eq.s32.totalorder %s20, 1
      %p273 = por %p271, %p272
      %p274 = scmp.ne.s32.totalorder %s266, %s269
      %p275 = scmp.eq.s32.totalorder %s20, 0
      %p276 = por %p274, %p275
      %p277 = scmp.ne.s32.totalorder %s266, %s269
      %p278 = scmp.eq.s32.totalorder %s25, 1
      %p279 = por %p277, %p278
      %p280 = scmp.ne.s32.totalorder %s269, %s270
      %p281 = scmp.eq.s32.totalorder %s25, 0
      %p282 = por %p280, %p281
      %p283 = scmp.ne.s32.totalorder %s269, %s270
      %p284 = scmp.eq.s32.totalorder %s26, 1
      %p285 = por %p283, %p284
      %p287 = scmp.ne.s32.totalorder %s270, %s286
      %p288 = scmp.eq.s32.totalorder %s26, 0
      %p289 = por %p287, %p288
      %p290 = scmp.le.s32.totalorder 1, %s20
      %p291 = scmp.lt.s32.totalorder %s20, 3
      %p292 = pnand %p290, %p291
      %p293 = pneg %p292
      // Predicated region
      $region9: #{cnn_cifar_forward.1} parent=5 // pred_check
        _
      $region10: #{cnn_cifar_forward.1} parent=5 // pred_check_branch
        %295 = sbr.rel (%p292) target = $region12
      $region11: #{cnn_cifar_forward.1} parent=5 // pred_region
        %s296 = ssub.s32 %s20, 1
        // Predicated region
        $region13: #{cnn_cifar_forward.1} parent=11 // pred_check
          %p297 = pneg %p67
        $region14: #{cnn_cifar_forward.1} parent=11 // pred_check_branch
          %299 = sbr.rel (%p297) target = $region16
        $region15: #{cnn_cifar_forward.1} parent=11 // pred_region
          _
        $region16: #{cnn_cifar_forward.1} parent=11 // pred_fallthru
          _
        // Predicated region
        $region17: #{cnn_cifar_forward.1} parent=11 // pred_check
          %p300 = pneg %p88
        $region18: #{cnn_cifar_forward.1} parent=11 // pred_check_branch
          %302 = sbr.rel (%p300) target = $region20
        $region19: #{cnn_cifar_forward.1} parent=11 // pred_region
          _
        $region20: #{cnn_cifar_forward.1} parent=11 // pred_fallthru
          _
        // Predicated region
        $region21: #{cnn_cifar_forward.1} parent=11 // pred_check
          %p303 = pneg %p109
        $region22: #{cnn_cifar_forward.1} parent=11 // pred_check_branch
          %305 = sbr.rel (%p303) target = $region24
        $region23: #{cnn_cifar_forward.1} parent=11 // pred_region
          _
        $region24: #{cnn_cifar_forward.1} parent=11 // pred_fallthru
          _
        // Predicated region
        $region25: #{cnn_cifar_forward.1} parent=11 // pred_check
          %p306 = pneg %p130
        $region26: #{cnn_cifar_forward.1} parent=11 // pred_check_branch
          %308 = sbr.rel (%p306) target = $region28
        $region27: #{cnn_cifar_forward.1} parent=11 // pred_region
          _
        $region28: #{cnn_cifar_forward.1} parent=11 // pred_fallthru
          _
        // Predicated region
        $region29: #{cnn_cifar_forward.1} parent=11 // pred_check
          %p309 = pneg %p151
        $region30: #{cnn_cifar_forward.1} parent=11 // pred_check_branch
          %311 = sbr.rel (%p309) target = $region32
        $region31: #{cnn_cifar_forward.1} parent=11 // pred_region
          _
        $region32: #{cnn_cifar_forward.1} parent=11 // pred_fallthru
          _
        // Predicated region
        $region33: #{cnn_cifar_forward.1} parent=11 // pred_check
          %p312 = pneg %p172
        $region34: #{cnn_cifar_forward.1} parent=11 // pred_check_branch
          %314 = sbr.rel (%p312) target = $region36
        $region35: #{cnn_cifar_forward.1} parent=11 // pred_region
          _
        $region36: #{cnn_cifar_forward.1} parent=11 // pred_fallthru
          _
        // Predicated region
        $region37: #{cnn_cifar_forward.1} parent=11 // pred_check
          %p315 = pneg %p193
        $region38: #{cnn_cifar_forward.1} parent=11 // pred_check_branch
          %317 = sbr.rel (%p315) target = $region40
        $region39: #{cnn_cifar_forward.1} parent=11 // pred_region
          _
        $region40: #{cnn_cifar_forward.1} parent=11 // pred_fallthru
          _
        // Predicated region
        $region41: #{cnn_cifar_forward.1} parent=11 // pred_check
          %p318 = pneg %p214
        $region42: #{cnn_cifar_forward.1} parent=11 // pred_check_branch
          %320 = sbr.rel (%p318) target = $region44
        $region43: #{cnn_cifar_forward.1} parent=11 // pred_region
          _
        $region44: #{cnn_cifar_forward.1} parent=11 // pred_fallthru
          _
        // Predicated region
        $region45: #{cnn_cifar_forward.1} parent=11 // pred_check
          %p321 = pneg %p235
        $region46: #{cnn_cifar_forward.1} parent=11 // pred_check_branch
          %323 = sbr.rel (%p321) target = $region48
        $region47: #{cnn_cifar_forward.1} parent=11 // pred_region
          _
        $region48: #{cnn_cifar_forward.1} parent=11 // pred_fallthru
          _
        // Predicated region
        $region49: #{cnn_cifar_forward.1} parent=11 // pred_check
          %p324 = pneg %p256
        $region50: #{cnn_cifar_forward.1} parent=11 // pred_check_branch
          %326 = sbr.rel (%p324) target = $region52
        $region51: #{cnn_cifar_forward.1} parent=11 // pred_region
          _
        $region52: #{cnn_cifar_forward.1} parent=11 // pred_fallthru
          _
      $region12: #{cnn_cifar_forward.1} parent=5 // pred_fallthru
        _
      %p327 = scmp.lt.s32.totalorder %s20, 2
      // Predicated region
      $region53: #{cnn_cifar_forward.1} parent=5 // pred_check
        %p328 = pneg %p327
      $region54: #{cnn_cifar_forward.1} parent=5 // pred_check_branch
        %330 = sbr.rel (%p328) target = $region56
      $region55: #{cnn_cifar_forward.1} parent=5 // pred_region
        // Predicated region
        $region57: #{cnn_cifar_forward.1} parent=55 // pred_check
          %p331 = pneg %p40
        $region58: #{cnn_cifar_forward.1} parent=55 // pred_check_branch
          %333 = sbr.rel (%p331) target = $region60
        $region59: #{cnn_cifar_forward.1} parent=55 // pred_region
          %s334 = sand.u32 %s30, 1
          %s335 = sand.u32 %s30, 1
          %s336 = smul.addr %s335, 128
          %s337 = scalar_lea.vmem [#allocation2], %s336
          %s338 = smul.addr %s20, 4
          %s339 = scalar_lea.vmem %s0, %s338
          // Predicated region
          $region61: #{cnn_cifar_forward.1} parent=59 // pred_check
            _
          $region62: #{cnn_cifar_forward.1} parent=59 // pred_check_branch
            %341 = sbr.rel (0) target = $region64
          $region63: #{cnn_cifar_forward.1} parent=59 // pred_region
            // Predicated region
            $region65: #{cnn_cifar_forward.1} parent=63 // pred_check
              _
            $region66: #{cnn_cifar_forward.1} parent=63 // pred_check_branch
              %343 = sbr.rel target = $region68
            $region67: #{cnn_cifar_forward.1} parent=63 // pred_region
              // Predicated region
              $region80: #{cnn_cifar_forward.1} parent=67 // pred_check
                _
              $region81: #{cnn_cifar_forward.1} parent=67 // pred_check_branch
                %420 = sbr.rel (0) target = $region83
              $region82: #{cnn_cifar_forward.1} parent=67 // pred_region
                loop: start=0, step=1, limit=1
                $region84: #{cnn_cifar_forward.1} parent=82 // loop_pre_header
                  _
                $region85: #{cnn_cifar_forward.1} parent=82 // loop_header
                  %s422 = sphi 0, %s426
                  %p423 = scmp.ge.s32.totalorder %s422, 1
                  %s427 = sphi %s339, %s339
                  %s428 = sphi %s337, %s337
                $region86: #{cnn_cifar_forward.1} parent=82 // loop_header_branch
                  %425 = sbr.rel (%p423) target = $region90
                $region87: #{cnn_cifar_forward.1} parent=82 // loop_body
                  _
                $region88: #{cnn_cifar_forward.1} parent=82 // loop_footer
                  %s426 = sadd.s32 1, %s422
                $region89: #{cnn_cifar_forward.1} parent=82 // loop_footer_branch
                  %421 = sbr.rel target = $region85
                $region90: #{cnn_cifar_forward.1} parent=82 // loop_exit
                  _
                loop: start=0, step=1, limit=1
                $region91: #{cnn_cifar_forward.1} parent=82 // loop_pre_header
                  _
                $region92: #{cnn_cifar_forward.1} parent=82 // loop_header
                  %s431 = sphi 0, %s435
                  %p432 = scmp.ge.s32.totalorder %s431, 1
                  %s436 = sphi %s339, %s339
                  %s437 = sphi %s337, %s337
                $region93: #{cnn_cifar_forward.1} parent=82 // loop_header_branch
                  %434 = sbr.rel (%p432) target = $region97
                $region94: #{cnn_cifar_forward.1} parent=82 // loop_body
                  %v438 = vld [vmem:[%s436] sm:$0xf]
                  %439 = vst [vmem:[%s437] sm:$0xf] %v438
                  %v440 = vld [vmem:[%s436 + $0x8] sm:$0xf]
                  %441 = vst [vmem:[%s437 + $0x4] sm:$0xf] %v440
                  %v442 = vld [vmem:[%s436 + $0x10] sm:$0xf]
                  %443 = vst [vmem:[%s437 + $0x8] sm:$0xf] %v442
                  %v444 = vld [vmem:[%s436 + $0x18] sm:$0xf]
                  %445 = vst [vmem:[%s437 + $0xc] sm:$0xf] %v444
                  %v446 = vld [vmem:[%s436 + $0x20] sm:$0xf]
                  %447 = vst [vmem:[%s437 + $0x10] sm:$0xf] %v446
                  %v448 = vld [vmem:[%s436 + $0x28] sm:$0xf]
                  %449 = vst [vmem:[%s437 + $0x14] sm:$0xf] %v448
                  %v450 = vld [vmem:[%s436 + $0x30] sm:$0xf]
                  %451 = vst [vmem:[%s437 + $0x18] sm:$0xf] %v450
                  %v452 = vld [vmem:[%s436 + $0x38] sm:$0xf]
                  %453 = vst [vmem:[%s437 + $0x1c] sm:$0xf] %v452
                  %v454 = vld [vmem:[%s436 + $0x40] sm:$0xf]
                  %455 = vst [vmem:[%s437 + $0x20] sm:$0xf] %v454
                  %v456 = vld [vmem:[%s436 + $0x48] sm:$0xf]
                  %457 = vst [vmem:[%s437 + $0x24] sm:$0xf] %v456
                  %v458 = vld [vmem:[%s436 + $0x50] sm:$0xf]
                  %459 = vst [vmem:[%s437 + $0x28] sm:$0xf] %v458
                  %v460 = vld [vmem:[%s436 + $0x58] sm:$0xf]
                  %461 = vst [vmem:[%s437 + $0x2c] sm:$0xf] %v460
                  %v462 = vld [vmem:[%s436 + $0x60] sm:$0xf]
                  %463 = vst [vmem:[%s437 + $0x30] sm:$0xf] %v462
                  %v464 = vld [vmem:[%s436 + $0x68] sm:$0xf]
                  %465 = vst [vmem:[%s437 + $0x34] sm:$0xf] %v464
                  %v466 = vld [vmem:[%s436 + $0x70] sm:$0xf]
                  %467 = vst [vmem:[%s437 + $0x38] sm:$0xf] %v466
                  %v468 = vld [vmem:[%s436 + $0x78] sm:$0xf]
                  %469 = vst [vmem:[%s437 + $0x3c] sm:$0xf] %v468
                  %v470 = vld [vmem:[%s436 + $0x80] sm:$0xf]
                  %471 = vst [vmem:[%s437 + $0x40] sm:$0xf] %v470
                  %v472 = vld [vmem:[%s436 + $0x88] sm:$0xf]
                  %473 = vst [vmem:[%s437 + $0x44] sm:$0xf] %v472
                  %v474 = vld [vmem:[%s436 + $0x90] sm:$0xf]
                  %475 = vst [vmem:[%s437 + $0x48] sm:$0xf] %v474
                  %v476 = vld [vmem:[%s436 + $0x98] sm:$0xf]
                  %477 = vst [vmem:[%s437 + $0x4c] sm:$0xf] %v476
                  %v478 = vld [vmem:[%s436 + $0xa0] sm:$0xf]
                  %479 = vst [vmem:[%s437 + $0x50] sm:$0xf] %v478
                  %v480 = vld [vmem:[%s436 + $0xa8] sm:$0xf]
                  %481 = vst [vmem:[%s437 + $0x54] sm:$0xf] %v480
                  %v482 = vld [vmem:[%s436 + $0xb0] sm:$0xf]
                  %483 = vst [vmem:[%s437 + $0x58] sm:$0xf] %v482
                  %v484 = vld [vmem:[%s436 + $0xb8] sm:$0xf]
                  %485 = vst [vmem:[%s437 + $0x5c] sm:$0xf] %v484
                  %v486 = vld [vmem:[%s436 + $0xc0] sm:$0xf]
                  %487 = vst [vmem:[%s437 + $0x60] sm:$0xf] %v486
                  %v488 = vld [vmem:[%s436 + $0xc8] sm:$0xf]
                  %489 = vst [vmem:[%s437 + $0x64] sm:$0xf] %v488
                  %v490 = vld [vmem:[%s436 + $0xd0] sm:$0xf]
                  %491 = vst [vmem:[%s437 + $0x68] sm:$0xf] %v490
                  %v492 = vld [vmem:[%s436 + $0xd8] sm:$0xf]
                  %493 = vst [vmem:[%s437 + $0x6c] sm:$0xf] %v492
                  %v494 = vld [vmem:[%s436 + $0xe0] sm:$0xf]
                  %495 = vst [vmem:[%s437 + $0x70] sm:$0xf] %v494
                  %v496 = vld [vmem:[%s436 + $0xe8] sm:$0xf]
                  %497 = vst [vmem:[%s437 + $0x74] sm:$0xf] %v496
                  %v498 = vld [vmem:[%s436 + $0xf0] sm:$0xf]
                  %499 = vst [vmem:[%s437 + $0x78] sm:$0xf] %v498
                  %v500 = vld [vmem:[%s436 + $0xf8] sm:$0xf]
                  %501 = vst [vmem:[%s437 + $0x7c] sm:$0xf] %v500
                $region95: #{cnn_cifar_forward.1} parent=82 // loop_footer
                  %s435 = sadd.s32 1, %s431
                $region96: #{cnn_cifar_forward.1} parent=82 // loop_footer_branch
                  %430 = sbr.rel target = $region92
                $region97: #{cnn_cifar_forward.1} parent=82 // loop_exit
                  _
              $region83: #{cnn_cifar_forward.1} parent=67 // pred_fallthru
                _
            $region68: #{cnn_cifar_forward.1} parent=63 // pred_fallthru
              _
            // Predicated region
            $region69: #{cnn_cifar_forward.1} parent=63 // pred_check
              _
            $region70: #{cnn_cifar_forward.1} parent=63 // pred_check_branch
              %345 = sbr.rel (0) target = $region72
            $region71: #{cnn_cifar_forward.1} parent=63 // pred_region
              loop: start=0, step=1, limit=1
              $region73: #{cnn_cifar_forward.1} parent=71 // loop_pre_header
                _
              $region74: #{cnn_cifar_forward.1} parent=71 // loop_header
                %s348 = sphi 0, %s352
                %p349 = scmp.ge.s32.totalorder %s348, 1
                %s353 = sphi %s339, %s339
                %s354 = sphi %s337, %s337
              $region75: #{cnn_cifar_forward.1} parent=71 // loop_header_branch
                %351 = sbr.rel (%p349) target = $region79
              $region76: #{cnn_cifar_forward.1} parent=71 // loop_body
                %v355 = vld [vmem:[%s353] sm:$0xf]
                %356 = vst [vmem:[%s354] sm:$0xf] %v355
                %v357 = vld [vmem:[%s353 + $0x8] sm:$0xf]
                %358 = vst [vmem:[%s354 + $0x4] sm:$0xf] %v357
                %v359 = vld [vmem:[%s353 + $0x10] sm:$0xf]
                %360 = vst [vmem:[%s354 + $0x8] sm:$0xf] %v359
                %v361 = vld [vmem:[%s353 + $0x18] sm:$0xf]
                %362 = vst [vmem:[%s354 + $0xc] sm:$0xf] %v361
                %v363 = vld [vmem:[%s353 + $0x20] sm:$0xf]
                %364 = vst [vmem:[%s354 + $0x10] sm:$0xf] %v363
                %v365 = vld [vmem:[%s353 + $0x28] sm:$0xf]
                %366 = vst [vmem:[%s354 + $0x14] sm:$0xf] %v365
                %v367 = vld [vmem:[%s353 + $0x30] sm:$0xf]
                %368 = vst [vmem:[%s354 + $0x18] sm:$0xf] %v367
                %v369 = vld [vmem:[%s353 + $0x38] sm:$0xf]
                %370 = vst [vmem:[%s354 + $0x1c] sm:$0xf] %v369
                %v371 = vld [vmem:[%s353 + $0x40] sm:$0xf]
                %372 = vst [vmem:[%s354 + $0x20] sm:$0xf] %v371
                %v373 = vld [vmem:[%s353 + $0x48] sm:$0xf]
                %374 = vst [vmem:[%s354 + $0x24] sm:$0xf] %v373
                %v375 = vld [vmem:[%s353 + $0x50] sm:$0xf]
                %376 = vst [vmem:[%s354 + $0x28] sm:$0xf] %v375
                %v377 = vld [vmem:[%s353 + $0x58] sm:$0xf]
                %378 = vst [vmem:[%s354 + $0x2c] sm:$0xf] %v377
                %v379 = vld [vmem:[%s353 + $0x60] sm:$0xf]
                %380 = vst [vmem:[%s354 + $0x30] sm:$0xf] %v379
                %v381 = vld [vmem:[%s353 + $0x68] sm:$0xf]
                %382 = vst [vmem:[%s354 + $0x34] sm:$0xf] %v381
                %v383 = vld [vmem:[%s353 + $0x70] sm:$0xf]
                %384 = vst [vmem:[%s354 + $0x38] sm:$0xf] %v383
                %v385 = vld [vmem:[%s353 + $0x78] sm:$0xf]
                %386 = vst [vmem:[%s354 + $0x3c] sm:$0xf] %v385
                %v387 = vld [vmem:[%s353 + $0x80] sm:$0xf]
                %388 = vst [vmem:[%s354 + $0x40] sm:$0xf] %v387
                %v389 = vld [vmem:[%s353 + $0x88] sm:$0xf]
                %390 = vst [vmem:[%s354 + $0x44] sm:$0xf] %v389
                %v391 = vld [vmem:[%s353 + $0x90] sm:$0xf]
                %392 = vst [vmem:[%s354 + $0x48] sm:$0xf] %v391
                %v393 = vld [vmem:[%s353 + $0x98] sm:$0xf]
                %394 = vst [vmem:[%s354 + $0x4c] sm:$0xf] %v393
                %v395 = vld [vmem:[%s353 + $0xa0] sm:$0xf]
                %396 = vst [vmem:[%s354 + $0x50] sm:$0xf] %v395
                %v397 = vld [vmem:[%s353 + $0xa8] sm:$0xf]
                %398 = vst [vmem:[%s354 + $0x54] sm:$0xf] %v397
                %v399 = vld [vmem:[%s353 + $0xb0] sm:$0xf]
                %400 = vst [vmem:[%s354 + $0x58] sm:$0xf] %v399
                %v401 = vld [vmem:[%s353 + $0xb8] sm:$0xf]
                %402 = vst [vmem:[%s354 + $0x5c] sm:$0xf] %v401
                %v403 = vld [vmem:[%s353 + $0xc0] sm:$0xf]
                %404 = vst [vmem:[%s354 + $0x60] sm:$0xf] %v403
                %v405 = vld [vmem:[%s353 + $0xc8] sm:$0xf]
                %406 = vst [vmem:[%s354 + $0x64] sm:$0xf] %v405
                %v407 = vld [vmem:[%s353 + $0xd0] sm:$0xf]
                %408 = vst [vmem:[%s354 + $0x68] sm:$0xf] %v407
                %v409 = vld [vmem:[%s353 + $0xd8] sm:$0xf]
                %410 = vst [vmem:[%s354 + $0x6c] sm:$0xf] %v409
                %v411 = vld [vmem:[%s353 + $0xe0] sm:$0xf]
                %412 = vst [vmem:[%s354 + $0x70] sm:$0xf] %v411
                %v413 = vld [vmem:[%s353 + $0xe8] sm:$0xf]
                %414 = vst [vmem:[%s354 + $0x74] sm:$0xf] %v413
                %v415 = vld [vmem:[%s353 + $0xf0] sm:$0xf]
                %416 = vst [vmem:[%s354 + $0x78] sm:$0xf] %v415
                %v417 = vld [vmem:[%s353 + $0xf8] sm:$0xf]
                %418 = vst [vmem:[%s354 + $0x7c] sm:$0xf] %v417
              $region77: #{cnn_cifar_forward.1} parent=71 // loop_footer
                %s352 = sadd.s32 1, %s348
              $region78: #{cnn_cifar_forward.1} parent=71 // loop_footer_branch
                %347 = sbr.rel target = $region74
              $region79: #{cnn_cifar_forward.1} parent=71 // loop_exit
                _
            $region72: #{cnn_cifar_forward.1} parent=63 // pred_fallthru
              _
          $region64: #{cnn_cifar_forward.1} parent=59 // pred_fallthru
            _
          %502 = vnop
        $region60: #{cnn_cifar_forward.1} parent=55 // pred_fallthru
          _
      $region56: #{cnn_cifar_forward.1} parent=5 // pred_fallthru
        _
      %p503 = scmp.le.s32.totalorder 1, %s20
      %p504 = scmp.lt.s32.totalorder %s20, 3
      %p505 = pnand %p503, %p504
      %p506 = pneg %p505
      // Predicated region
      $region98: #{cnn_cifar_forward.1} parent=5 // pred_check
        _
      $region99: #{cnn_cifar_forward.1} parent=5 // pred_check_branch
        %508 = sbr.rel (%p505) target = $region101
      $region100: #{cnn_cifar_forward.1} parent=5 // pred_region
        %s509 = ssub.s32 %s20, 1
        %s510 = sand.u32 %s33, 1
        %s511 = sand.u32 %s33, 1
        %s512 = smul.addr %s511, 128
        %s513 = scalar_lea.vmem [#allocation2], %s512
        // Predicated region
        $region102: #{cnn_cifar_forward.1} parent=100 // pred_check
          %p514 = pneg %p46
        $region103: #{cnn_cifar_forward.1} parent=100 // pred_check_branch
          %516 = sbr.rel (%p514) target = $region105
        $region104: #{cnn_cifar_forward.1} parent=100 // pred_region
          _
        $region105: #{cnn_cifar_forward.1} parent=100 // pred_fallthru
          _
        %s517 = sand.u32 %s33, 1
        %s518 = sand.u32 %s33, 1
        %s519 = smul.addr %s518, 128
        %s520 = scalar_lea.vmem [#allocation2], %s519
        %p521 = pneg %p46
        %p522 = pneg %p43
        %p523 = pneg %p67
        %p524 = pneg %p64
        %p525 = pneg %p88
        %p526 = pneg %p85
        %p527 = pneg %p109
        %p528 = pneg %p106
        %p529 = pneg %p130
        %p530 = pneg %p127
        %p531 = pneg %p151
        %p532 = pneg %p148
        %p533 = pneg %p172
        %p534 = pneg %p169
        %p535 = pneg %p193
        %p536 = pneg %p190
        %p537 = pneg %p214
        %p538 = pneg %p211
        %p539 = pneg %p235
        %p540 = pneg %p232
        %p541 = pneg %p256
        %p542 = pneg %p253
        %p543 = pneg %p282
        %p544 = pneg %p279
        %s545 = sand.u32 %s269, 1
        %s546 = scalar_lea.sflag [#allocation4], %s545
        %s547 = sand.u32 %s269, 1
        %s548 = smul.addr %s547, 8
        %s549 = scalar_lea.vmem [#allocation3], %s548
        %v551 = vld [vmem:[%s513] sm:$0xf]
        %v552 = vld [vmem:[%s513 + $0x4] sm:$0xf]
        %v553 = vld [vmem:[%s513 + $0x8] sm:$0xf]
        %v554 = vld [vmem:[%s513 + $0xc] sm:$0xf]
        %v555 = vld [vmem:[%s513 + $0x10] sm:$0xf]
        %v556 = vld [vmem:[%s513 + $0x14] sm:$0xf]
        %v557 = vld [vmem:[%s513 + $0x18] sm:$0xf]
        %v558 = vld [vmem:[%s513 + $0x1c] sm:$0xf]
        %v559 = vld [vmem:[%s513 + $0x20] sm:$0xf]
        %v560 = vld [vmem:[%s513 + $0x24] sm:$0xf]
        %v561 = vld [vmem:[%s513 + $0x28] sm:$0xf]
        %v562 = vld [vmem:[%s513 + $0x2c] sm:$0xf]
        %v563 = vld [vmem:[%s513 + $0x30] sm:$0xf]
        %v564 = vld [vmem:[%s513 + $0x34] sm:$0xf]
        %v565 = vld [vmem:[%s513 + $0x38] sm:$0xf]
        %v566 = vld [vmem:[%s513 + $0x3c] sm:$0xf]
        %v567 = vld [vmem:[%s513 + $0x40] sm:$0xf]
        %v568 = vld [vmem:[%s513 + $0x44] sm:$0xf]
        %v569 = vld [vmem:[%s513 + $0x48] sm:$0xf]
        %v570 = vld [vmem:[%s513 + $0x4c] sm:$0xf]
        %v571 = vld [vmem:[%s513 + $0x50] sm:$0xf]
        %v572 = vld [vmem:[%s513 + $0x54] sm:$0xf]
        %v573 = vld [vmem:[%s513 + $0x58] sm:$0xf]
        %v574 = vld [vmem:[%s513 + $0x5c] sm:$0xf]
        %v575 = vld [vmem:[%s513 + $0x60] sm:$0xf]
        %v576 = vld [vmem:[%s513 + $0x64] sm:$0xf]
        %v577 = vld [vmem:[%s513 + $0x68] sm:$0xf]
        %v578 = vld [vmem:[%s513 + $0x6c] sm:$0xf]
        %v579 = vld [vmem:[%s513 + $0x70] sm:$0xf]
        %v580 = vld [vmem:[%s513 + $0x74] sm:$0xf]
        %v581 = vld [vmem:[%s513 + $0x78] sm:$0xf]
        %v582 = vld [vmem:[%s513 + $0x7c] sm:$0xf]
        %v583 = vld [vmem:[%s1] sm:$0xff]
        %v584 = vld [vmem:[%s1 + $0x8] sm:$0xff]
        %v585 = vld [vmem:[%s1 + $0x10] sm:$0xff]
        %v586 = vld [vmem:[%s1 + $0x18] sm:$0xff]
        %v587 = vld [vmem:[%s1 + $0x20] sm:$0xff]
        %v588 = vld [vmem:[%s1 + $0x28] sm:$0xff]
        %v589 = vld [vmem:[%s1 + $0x30] sm:$0xff]
        %v590 = vld [vmem:[%s1 + $0x38] sm:$0xff]
        %v591 = vld [vmem:[%s1 + $0x40] sm:$0xff]
        %v592 = vld [vmem:[%s1 + $0x48] sm:$0xff]
        %v593 = vld [vmem:[%s1 + $0x50] sm:$0xff]
        %v594 = vld [vmem:[%s1 + $0x58] sm:$0xff]
        %s595 = scalar_lea.vmem %s1, 96
        %v596 = vld [vmem:[%s595] sm:$0xff]
        %v597 = vld [vmem:[%s595 + $0x8] sm:$0xff]
        %v598 = vld [vmem:[%s595 + $0x10] sm:$0xff]
        %v599 = vld [vmem:[%s595 + $0x18] sm:$0xff]
        %v600 = vld [vmem:[%s595 + $0x20] sm:$0xff]
        %v601 = vld [vmem:[%s595 + $0x28] sm:$0xff]
        %v602 = vld [vmem:[%s595 + $0x30] sm:$0xff]
        %v603 = vld [vmem:[%s595 + $0x38] sm:$0xff]
        %v604 = vld [vmem:[%s595 + $0x40] sm:$0xff]
        %v605 = vld [vmem:[%s595 + $0x48] sm:$0xff]
        %v606 = vld [vmem:[%s595 + $0x50] sm:$0xff]
        %v607 = vld [vmem:[%s595 + $0x58] sm:$0xff]
        %v636 = vunpack.c.l.b16 %v552
        %v637 = vunpack.c.l.b16 %v553
        %v638 = vunpack.c.l.b16 %v554
        %v639 = vunpack.c.l.b16 %v555
        %v640 = vunpack.c.l.b16 %v556
        %v641 = vunpack.c.l.b16 %v557
        %v642 = vunpack.c.l.b16 %v558
        %v643 = vunpack.c.l.b16 %v559
        %v644 = vunpack.c.l.b16 %v560
        %v645 = vunpack.c.l.b16 %v561
        %v646 = vunpack.c.l.b16 %v562
        %v647 = vunpack.c.l.b16 %v563
        %v648 = vunpack.c.l.b16 %v564
        %v649 = vunpack.c.l.b16 %v565
        %v650 = vunpack.c.l.b16 %v566
        %v651 = vunpack.c.l.b16 %v567
        %v652 = vunpack.c.l.b16 %v568
        %v653 = vunpack.c.l.b16 %v569
        %v654 = vunpack.c.l.b16 %v570
        %v655 = vunpack.c.l.b16 %v571
        %v656 = vunpack.c.l.b16 %v572
        %v657 = vunpack.c.l.b16 %v573
        %v658 = vunpack.c.l.b16 %v574
        %v659 = vunpack.c.l.b16 %v575
        %v660 = vunpack.c.l.b16 %v576
        %v661 = vunpack.c.l.b16 %v577
        %v662 = vunpack.c.l.b16 %v578
        %v663 = vunpack.c.l.b16 %v579
        %v664 = vpack.c.b16 %v637, %v636
        %v665 = vpack.c.b16 %v639, %v638
        %v666 = vpack.c.b16 %v641, %v640
        %v667 = vpack.c.b16 %v643, %v642
        %v668 = vpack.c.b16 %v645, %v644
        %v669 = vpack.c.b16 %v647, %v646
        %v670 = vpack.c.b16 %v649, %v648
        %v671 = vpack.c.b16 %v651, %v650
        %v672 = vpack.c.b16 %v653, %v652
        %v673 = vpack.c.b16 %v655, %v654
        %v674 = vpack.c.b16 %v657, %v656
        %v675 = vpack.c.b16 %v659, %v658
        %v676 = vpack.c.b16 %v661, %v660
        %v677 = vpack.c.b16 %v663, %v662
        %v690 = vunpack.c.l.b16 %v596
        %v691 = vunpack.c.h.b16 %v596
        %v692 = vunpack.c.l.b16 %v597
        %v693 = vunpack.c.h.b16 %v597
        %v694 = vunpack.c.l.b16 %v598
        %v695 = vunpack.c.h.b16 %v598
        %v696 = vunpack.c.l.b16 %v599
        %v697 = vunpack.c.h.b16 %v599
        %v698 = vunpack.c.l.b16 %v600
        %v699 = vunpack.c.h.b16 %v600
        %v700 = vunpack.c.l.b16 %v601
        %v701 = vunpack.c.h.b16 %v601
        %v702 = vunpack.c.l.b16 %v602
        %v703 = vunpack.c.h.b16 %v602
        %v704 = vunpack.c.l.b16 %v603
        %v705 = vunpack.c.h.b16 %v603
        %v706 = vunpack.c.l.b16 %v604
        %v707 = vunpack.c.h.b16 %v604
        %v708 = vunpack.c.l.b16 %v605
        %v709 = vunpack.c.h.b16 %v605
        %v710 = vunpack.c.l.b16 %v606
        %v711 = vunpack.c.h.b16 %v606
        %v712 = vunpack.c.l.b16 %v607
        %v713 = vunpack.c.h.b16 %v607
        %v714 = vpack.c.b16 %v692, %v690
        %v715 = vpack.c.b16 %v693, %v691
        %v716 = vpack.c.b16 %v696, %v694
        %v717 = vpack.c.b16 %v697, %v695
        %v718 = vpack.c.b16 %v700, %v698
        %v719 = vpack.c.b16 %v701, %v699
        %v720 = vpack.c.b16 %v704, %v702
        %v721 = vpack.c.b16 %v705, %v703
        %v722 = vpack.c.b16 %v708, %v706
        %v723 = vpack.c.b16 %v709, %v707
        %v724 = vpack.c.b16 %v712, %v710
        %v725 = vpack.c.b16 %v713, %v711
        %vm738 = vcmask 785408
        %v740 = vsel %vm738, %v664, 0
        %v743 = vsel %vm738, %v665, 0
        %v746 = vsel %vm738, %v666, 0
        %v749 = vsel %vm738, %v667, 0
        %v752 = vsel %vm738, %v668, 0
        %v755 = vsel %vm738, %v669, 0
        %v758 = vsel %vm738, %v670, 0
        %v761 = vsel %vm738, %v671, 0
        %v764 = vsel %vm738, %v672, 0
        %v767 = vsel %vm738, %v673, 0
        %v770 = vsel %vm738, %v674, 0
        %v773 = vsel %vm738, %v675, 0
        %v776 = vsel %vm738, %v676, 0
        %v779 = vsel %vm738, %v677, 0
        %781 = vmatprep.subr.bf16.mxu0 %v715
        %782 = vmatpush1.bf16.msra.mxu0 %v714
        %783 = vmatprep.subr.bf16.mxu0 %v717
        %784 = vmatpush1.bf16.msra.mxu0 %v716
        %785 = vmatprep.subr.bf16.mxu0 %v719
        %786 = vmatpush1.bf16.msra.mxu0 %v718
        %787 = vmatprep.subr.bf16.mxu0 %v721
        %788 = vmatpush1.bf16.msra.mxu0 %v720
        %789 = vmatprep.subr.bf16.mxu0 %v723
        %790 = vmatpush1.bf16.msra.mxu0 %v722
        %791 = vmatprep.subr.bf16.mxu0 %v725
        %792 = vmatpush1.bf16.msra.mxu0 %v724
        %793 = vmatprep.subr.bf16.mxu0 0
        %794 = vmatpush1.bf16.msra.mxu0 0
        %795 = vmatprep.subr.bf16.mxu0 0
        %796 = vmatpush1.bf16.msra.mxu0 0
        %797 = vmatprep.subr.bf16.mxu0 0
        %798 = vmatpush1.bf16.msra.mxu0 0
        %799 = vmatprep.subr.bf16.mxu0 0
        %800 = vmatpush1.bf16.msra.mxu0 0
        %801 = vmatprep.subr.bf16.mxu0 0
        %802 = vmatpush1.bf16.msra.mxu0 0
        %803 = vmatprep.subr.bf16.mxu0 0
        %804 = vmatpush1.bf16.msra.mxu0 0
        %805 = vmatprep.subr.bf16.mxu0 0
        %806 = vmatpush1.bf16.msra.mxu0 0
        %807 = vmatprep.subr.bf16.mxu0 0
        %808 = vmatpush1.bf16.msra.mxu0 0
        %809 = vmatprep.subr.bf16.mxu0 0
        %810 = vmatpush1.bf16.msra.mxu0 0
        %811 = vmatprep.subr.bf16.mxu0 0
        %812 = vmatpush1.bf16.msra.mxu0 0
        %813 = vmatprep.mubr.bf16.mxu0 0
        %814 = vmatmul.mubr.bf16.gmra.mrb[0].mxu0 %v740
        %v815 = vpop.f32.mrb[0].mxu0
        %v816 = vadd.f32 0.0, %v815
        %v817 = vpop.f32.mrb[0].mxu0
        %v818 = vadd.f32 0.0, %v817
        %v819 = vpop.f32.mrb[0].mxu0
        %v820 = vadd.f32 0.0, %v819
        %v821 = vpop.f32.mrb[0].mxu0
        %v822 = vadd.f32 0.0, %v821
        %823 = vmatprep.mubr.bf16.mxu0 0
        %824 = vmatmul.mubr.bf16.gmra.mrb[0].mxu0 %v743
        %v825 = vpop.f32.mrb[0].mxu0
        %v826 = vadd.f32 0.0, %v825
        %v827 = vpop.f32.mrb[0].mxu0
        %v828 = vadd.f32 0.0, %v827
        %v829 = vpop.f32.mrb[0].mxu0
        %v830 = vadd.f32 0.0, %v829
        %v831 = vpop.f32.mrb[0].mxu0
        %v832 = vadd.f32 0.0, %v831
        %833 = vmatprep.mubr.bf16.mxu0 0
        %834 = vmatmul.mubr.bf16.gmra.mrb[0].mxu0 %v746
        %v835 = vpop.f32.mrb[0].mxu0
        %v836 = vadd.f32 0.0, %v835
        %v837 = vpop.f32.mrb[0].mxu0
        %v838 = vadd.f32 0.0, %v837
        %v839 = vpop.f32.mrb[0].mxu0
        %v840 = vadd.f32 0.0, %v839
        %v841 = vpop.f32.mrb[0].mxu0
        %v842 = vadd.f32 0.0, %v841
        %843 = vmatprep.mubr.bf16.mxu0 0
        %844 = vmatmul.mubr.bf16.gmra.mrb[0].mxu0 %v749
        %v845 = vpop.f32.mrb[0].mxu0
        %v846 = vadd.f32 0.0, %v845
        %v847 = vpop.f32.mrb[0].mxu0
        %v848 = vadd.f32 0.0, %v847
        %v849 = vpop.f32.mrb[0].mxu0
        %v850 = vadd.f32 0.0, %v849
        %v851 = vpop.f32.mrb[0].mxu0
        %v852 = vadd.f32 0.0, %v851
        %853 = vmatprep.mubr.bf16.mxu0 0
        %854 = vmatmul.mubr.bf16.gmra.mrb[0].mxu0 %v752
        %v855 = vpop.f32.mrb[0].mxu0
        %v856 = vadd.f32 0.0, %v855
        %v857 = vpop.f32.mrb[0].mxu0
        %v858 = vadd.f32 0.0, %v857
        %v859 = vpop.f32.mrb[0].mxu0
        %v860 = vadd.f32 0.0, %v859
        %v861 = vpop.f32.mrb[0].mxu0
        %v862 = vadd.f32 0.0, %v861
        %863 = vmatprep.mubr.bf16.mxu0 0
        %864 = vmatmul.mubr.bf16.gmra.mrb[0].mxu0 %v755
        %v865 = vpop.f32.mrb[0].mxu0
        %v866 = vadd.f32 0.0, %v865
        %v867 = vpop.f32.mrb[0].mxu0
        %v868 = vadd.f32 0.0, %v867
        %v869 = vpop.f32.mrb[0].mxu0
        %v870 = vadd.f32 0.0, %v869
        %v871 = vpop.f32.mrb[0].mxu0
        %v872 = vadd.f32 0.0, %v871
        %873 = vmatprep.mubr.bf16.mxu0 0
        %874 = vmatmul.mubr.bf16.gmra.mrb[0].mxu0 %v758
        %v875 = vpop.f32.mrb[0].mxu0
        %v876 = vadd.f32 0.0, %v875
        %v877 = vpop.f32.mrb[0].mxu0
        %v878 = vadd.f32 0.0, %v877
        %v879 = vpop.f32.mrb[0].mxu0
        %v880 = vadd.f32 0.0, %v879
        %v881 = vpop.f32.mrb[0].mxu0
        %v882 = vadd.f32 0.0, %v881
        %883 = vmatprep.mubr.bf16.mxu0 0
        %884 = vmatmul.mubr.bf16.gmra.mrb[0].mxu0 %v761
        %v885 = vpop.f32.mrb[0].mxu0
        %v886 = vadd.f32 0.0, %v885
        %v887 = vpop.f32.mrb[0].mxu0
        %v888 = vadd.f32 0.0, %v887
        %v889 = vpop.f32.mrb[0].mxu0
        %v890 = vadd.f32 0.0, %v889
        %v891 = vpop.f32.mrb[0].mxu0
        %v892 = vadd.f32 0.0, %v891
        %893 = vmatprep.mubr.bf16.mxu0 0
        %894 = vmatmul.mubr.bf16.gmra.mrb[0].mxu0 %v764
        %v895 = vpop.f32.mrb[0].mxu0
        %v896 = vadd.f32 0.0, %v895
        %v897 = vpop.f32.mrb[0].mxu0
        %v898 = vadd.f32 0.0, %v897
        %v899 = vpop.f32.mrb[0].mxu0
        %v900 = vadd.f32 0.0, %v899
        %v901 = vpop.f32.mrb[0].mxu0
        %v902 = vadd.f32 0.0, %v901
        %903 = vmatprep.mubr.bf16.mxu0 0
        %904 = vmatmul.mubr.bf16.gmra.mrb[0].mxu0 %v767
        %v905 = vpop.f32.mrb[0].mxu0
        %v906 = vadd.f32 0.0, %v905
        %v907 = vpop.f32.mrb[0].mxu0
        %v908 = vadd.f32 0.0, %v907
        %v909 = vpop.f32.mrb[0].mxu0
        %v910 = vadd.f32 0.0, %v909
        %v911 = vpop.f32.mrb[0].mxu0
        %v912 = vadd.f32 0.0, %v911
        %913 = vmatprep.mubr.bf16.mxu0 0
        %914 = vmatmul.mubr.bf16.gmra.mrb[0].mxu0 %v770
        %v915 = vpop.f32.mrb[0].mxu0
        %v916 = vadd.f32 0.0, %v915
        %v917 = vpop.f32.mrb[0].mxu0
        %v918 = vadd.f32 0.0, %v917
        %v919 = vpop.f32.mrb[0].mxu0
        %v920 = vadd.f32 0.0, %v919
        %v921 = vpop.f32.mrb[0].mxu0
        %v922 = vadd.f32 0.0, %v921
        %923 = vmatprep.mubr.bf16.mxu0 0
        %924 = vmatmul.mubr.bf16.gmra.mrb[0].mxu0 %v773
        %v925 = vpop.f32.mrb[0].mxu0
        %v926 = vadd.f32 0.0, %v925
        %v927 = vpop.f32.mrb[0].mxu0
        %v928 = vadd.f32 0.0, %v927
        %v929 = vpop.f32.mrb[0].mxu0
        %v930 = vadd.f32 0.0, %v929
        %v931 = vpop.f32.mrb[0].mxu0
        %v932 = vadd.f32 0.0, %v931
        %933 = vmatprep.mubr.bf16.mxu0 0
        %934 = vmatmul.mubr.bf16.gmra.mrb[0].mxu0 %v776
        %v935 = vpop.f32.mrb[0].mxu0
        %v936 = vadd.f32 0.0, %v935
        %v937 = vpop.f32.mrb[0].mxu0
        %v938 = vadd.f32 0.0, %v937
        %v939 = vpop.f32.mrb[0].mxu0
        %v940 = vadd.f32 0.0, %v939
        %v941 = vpop.f32.mrb[0].mxu0
        %v942 = vadd.f32 0.0, %v941
        %943 = vmatprep.mubr.bf16.mxu0 0
        %944 = vmatmul.mubr.bf16.gmra.mrb[0].mxu0 %v779
        %v945 = vpop.f32.mrb[0].mxu0
        %v946 = vadd.f32 0.0, %v945
        %v947 = vpop.f32.mrb[0].mxu0
        %v948 = vadd.f32 0.0, %v947
        %v949 = vpop.f32.mrb[0].mxu0
        %v950 = vadd.f32 0.0, %v949
        %v951 = vpop.f32.mrb[0].mxu0
        %v952 = vadd.f32 0.0, %v951
        %953 = vdwg.mxu0
        %v955 = vunpack.c.l.b16 %v551
        %v956 = vpack.c.b16 %v636, %v955
        %v957 = vpack.c.b16 %v638, %v637
        %v958 = vpack.c.b16 %v640, %v639
        %v959 = vpack.c.b16 %v642, %v641
        %v960 = vpack.c.b16 %v644, %v643
        %v961 = vpack.c.b16 %v646, %v645
        %v962 = vpack.c.b16 %v648, %v647
        %v963 = vpack.c.b16 %v650, %v649
        %v964 = vpack.c.b16 %v652, %v651
        %v965 = vpack.c.b16 %v654, %v653
        %v966 = vpack.c.b16 %v656, %v655
        %v967 = vpack.c.b16 %v658, %v657
        %v968 = vpack.c.b16 %v660, %v659
        %v969 = vpack.c.b16 %v662, %v661
        %v982 = vunpack.c.l.b16 %v583
        %v983 = vunpack.c.h.b16 %v583
        %v984 = vunpack.c.l.b16 %v584
        %v985 = vunpack.c.h.b16 %v584
        %v986 = vunpack.c.l.b16 %v585
        %v987 = vunpack.c.h.b16 %v585
        %v988 = vunpack.c.l.b16 %v586
        %v989 = vunpack.c.h.b16 %v586
        %v990 = vunpack.c.l.b16 %v587
        %v991 = vunpack.c.h.b16 %v587
        %v992 = vunpack.c.l.b16 %v588
        %v993 = vunpack.c.h.b16 %v588
        %v994 = vunpack.c.l.b16 %v589
        %v995 = vunpack.c.h.b16 %v589
        %v996 = vunpack.c.l.b16 %v590
        %v997 = vunpack.c.h.b16 %v590
        %v998 = vunpack.c.l.b16 %v591
        %v999 = vunpack.c.h.b16 %v591
        %v1000 = vunpack.c.l.b16 %v592
        %v1001 = vunpack.c.h.b16 %v592
        %v1002 = vunpack.c.l.b16 %v593
        %v1003 = vunpack.c.h.b16 %v593
        %v1004 = vunpack.c.l.b16 %v594
        %v1005 = vunpack.c.h.b16 %v594
        %v1006 = vpack.c.b16 %v984, %v982
        %v1007 = vpack.c.b16 %v985, %v983
        %v1008 = vpack.c.b16 %v988, %v986
        %v1009 = vpack.c.b16 %v989, %v987
        %v1010 = vpack.c.b16 %v992, %v990
        %v1011 = vpack.c.b16 %v993, %v991
        %v1012 = vpack.c.b16 %v996, %v994
        %v1013 = vpack.c.b16 %v997, %v995
        %v1014 = vpack.c.b16 %v1000, %v998
        %v1015 = vpack.c.b16 %v1001, %v999
        %v1016 = vpack.c.b16 %v1004, %v1002
        %v1017 = vpack.c.b16 %v1005, %v1003
        %v1031 = vsel %vm738, %v956, 0
        %v1034 = vsel %vm738, %v957, 0
        %v1037 = vsel %vm738, %v958, 0
        %v1040 = vsel %vm738, %v959, 0
        %v1043 = vsel %vm738, %v960, 0
        %v1046 = vsel %vm738, %v961, 0
        %v1049 = vsel %vm738, %v962, 0
        %v1052 = vsel %vm738, %v963, 0
        %v1055 = vsel %vm738, %v964, 0
        %v1058 = vsel %vm738, %v965, 0
        %v1061 = vsel %vm738, %v966, 0
        %v1064 = vsel %vm738, %v967, 0
        %v1067 = vsel %vm738, %v968, 0
        %v1070 = vsel %vm738, %v969, 0
        %1072 = vmatprep.subr.bf16.mxu0 %v1007
        %1073 = vmatpush1.bf16.msra.mxu0 %v1006
        %1074 = vmatprep.subr.bf16.mxu0 %v1009
        %1075 = vmatpush1.bf16.msra.mxu0 %v1008
        %1076 = vmatprep.subr.bf16.mxu0 %v1011
        %1077 = vmatpush1.bf16.msra.mxu0 %v1010
        %1078 = vmatprep.subr.bf16.mxu0 %v1013
        %1079 = vmatpush1.bf16.msra.mxu0 %v1012
        %1080 = vmatprep.subr.bf16.mxu0 %v1015
        %1081 = vmatpush1.bf16.msra.mxu0 %v1014
        %1082 = vmatprep.subr.bf16.mxu0 %v1017
        %1083 = vmatpush1.bf16.msra.mxu0 %v1016
        %1084 = vmatprep.subr.bf16.mxu0 0
        %1085 = vmatpush1.bf16.msra.mxu0 0
        %1086 = vmatprep.subr.bf16.mxu0 0
        %1087 = vmatpush1.bf16.msra.mxu0 0
        %1088 = vmatprep.subr.bf16.mxu0 0
        %1089 = vmatpush1.bf16.msra.mxu0 0
        %1090 = vmatprep.subr.bf16.mxu0 0
        %1091 = vmatpush1.bf16.msra.mxu0 0
        %1092 = vmatprep.subr.bf16.mxu0 0
        %1093 = vmatpush1.bf16.msra.mxu0 0
        %1094 = vmatprep.subr.bf16.mxu0 0
        %1095 = vmatpush1.bf16.msra.mxu0 0
        %1096 = vmatprep.subr.bf16.mxu0 0
        %1097 = vmatpush1.bf16.msra.mxu0 0
        %1098 = vmatprep.subr.bf16.mxu0 0
        %1099 = vmatpush1.bf16.msra.mxu0 0
        %1100 = vmatprep.subr.bf16.mxu0 0
        %1101 = vmatpush1.bf16.msra.mxu0 0
        %1102 = vmatprep.subr.bf16.mxu0 0
        %1103 = vmatpush1.bf16.msra.mxu0 0
        %1104 = vmatprep.mubr.bf16.mxu0 0
        %1105 = vmatmul.mubr.bf16.gmra.mrb[0].mxu0 %v1031
        %v1106 = vpop.f32.mrb[0].mxu0
        %v1107 = vadd.f32 %v816, %v1106
        %v1108 = vpop.f32.mrb[0].mxu0
        %v1109 = vadd.f32 %v818, %v1108
        %v1110 = vpop.f32.mrb[0].mxu0
        %v1111 = vadd.f32 %v820, %v1110
        %v1112 = vpop.f32.mrb[0].mxu0
        %v1113 = vadd.f32 %v822, %v1112
        %1114 = vmatprep.mubr.bf16.mxu0 0
        %1115 = vmatmul.mubr.bf16.gmra.mrb[0].mxu0 %v1034
        %v1116 = vpop.f32.mrb[0].mxu0
        %v1117 = vadd.f32 %v826, %v1116
        %v1118 = vpop.f32.mrb[0].mxu0
        %v1119 = vadd.f32 %v828, %v1118
        %v1120 = vpop.f32.mrb[0].mxu0
        %v1121 = vadd.f32 %v830, %v1120
        %v1122 = vpop.f32.mrb[0].mxu0
        %v1123 = vadd.f32 %v832, %v1122
        %1124 = vmatprep.mubr.bf16.mxu0 0
        %1125 = vmatmul.mubr.bf16.gmra.mrb[0].mxu0 %v1037
        %v1126 = vpop.f32.mrb[0].mxu0
        %v1127 = vadd.f32 %v836, %v1126
        %v1128 = vpop.f32.mrb[0].mxu0
        %v1129 = vadd.f32 %v838, %v1128
        %v1130 = vpop.f32.mrb[0].mxu0
        %v1131 = vadd.f32 %v840, %v1130
        %v1132 = vpop.f32.mrb[0].mxu0
        %v1133 = vadd.f32 %v842, %v1132
        %1134 = vmatprep.mubr.bf16.mxu0 0
        %1135 = vmatmul.mubr.bf16.gmra.mrb[0].mxu0 %v1040
        %v1136 = vpop.f32.mrb[0].mxu0
        %v1137 = vadd.f32 %v846, %v1136
        %v1138 = vpop.f32.mrb[0].mxu0
        %v1139 = vadd.f32 %v848, %v1138
        %v1140 = vpop.f32.mrb[0].mxu0
        %v1141 = vadd.f32 %v850, %v1140
        %v1142 = vpop.f32.mrb[0].mxu0
        %v1143 = vadd.f32 %v852, %v1142
        %1144 = vmatprep.mubr.bf16.mxu0 0
        %1145 = vmatmul.mubr.bf16.gmra.mrb[0].mxu0 %v1043
        %v1146 = vpop.f32.mrb[0].mxu0
        %v1147 = vadd.f32 %v856, %v1146
        %v1148 = vpop.f32.mrb[0].mxu0
        %v1149 = vadd.f32 %v858, %v1148
        %v1150 = vpop.f32.mrb[0].mxu0
        %v1151 = vadd.f32 %v860, %v1150
        %v1152 = vpop.f32.mrb[0].mxu0
        %v1153 = vadd.f32 %v862, %v1152
        %1154 = vmatprep.mubr.bf16.mxu0 0
        %1155 = vmatmul.mubr.bf16.gmra.mrb[0].mxu0 %v1046
        %v1156 = vpop.f32.mrb[0].mxu0
        %v1157 = vadd.f32 %v866, %v1156
        %v1158 = vpop.f32.mrb[0].mxu0
        %v1159 = vadd.f32 %v868, %v1158
        %v1160 = vpop.f32.mrb[0].mxu0
        %v1161 = vadd.f32 %v870, %v1160
        %v1162 = vpop.f32.mrb[0].mxu0
        %v1163 = vadd.f32 %v872, %v1162
        %1164 = vmatprep.mubr.bf16.mxu0 0
        %1165 = vmatmul.mubr.bf16.gmra.mrb[0].mxu0 %v1049
        %v1166 = vpop.f32.mrb[0].mxu0
        %v1167 = vadd.f32 %v876, %v1166
        %v1168 = vpop.f32.mrb[0].mxu0
        %v1169 = vadd.f32 %v878, %v1168
        %v1170 = vpop.f32.mrb[0].mxu0
        %v1171 = vadd.f32 %v880, %v1170
        %v1172 = vpop.f32.mrb[0].mxu0
        %v1173 = vadd.f32 %v882, %v1172
        %1174 = vmatprep.mubr.bf16.mxu0 0
        %1175 = vmatmul.mubr.bf16.gmra.mrb[0].mxu0 %v1052
        %v1176 = vpop.f32.mrb[0].mxu0
        %v1177 = vadd.f32 %v886, %v1176
        %v1178 = vpop.f32.mrb[0].mxu0
        %v1179 = vadd.f32 %v888, %v1178
        %v1180 = vpop.f32.mrb[0].mxu0
        %v1181 = vadd.f32 %v890, %v1180
        %v1182 = vpop.f32.mrb[0].mxu0
        %v1183 = vadd.f32 %v892, %v1182
        %1184 = vmatprep.mubr.bf16.mxu0 0
        %1185 = vmatmul.mubr.bf16.gmra.mrb[0].mxu0 %v1055
        %v1186 = vpop.f32.mrb[0].mxu0
        %v1187 = vadd.f32 %v896, %v1186
        %v1188 = vpop.f32.mrb[0].mxu0
        %v1189 = vadd.f32 %v898, %v1188
        %v1190 = vpop.f32.mrb[0].mxu0
        %v1191 = vadd.f32 %v900, %v1190
        %v1192 = vpop.f32.mrb[0].mxu0
        %v1193 = vadd.f32 %v902, %v1192
        %1194 = vmatprep.mubr.bf16.mxu0 0
        %1195 = vmatmul.mubr.bf16.gmra.mrb[0].mxu0 %v1058
        %v1196 = vpop.f32.mrb[0].mxu0
        %v1197 = vadd.f32 %v906, %v1196
        %v1198 = vpop.f32.mrb[0].mxu0
        %v1199 = vadd.f32 %v908, %v1198
        %v1200 = vpop.f32.mrb[0].mxu0
        %v1201 = vadd.f32 %v910, %v1200
        %v1202 = vpop.f32.mrb[0].mxu0
        %v1203 = vadd.f32 %v912, %v1202
        %1204 = vmatprep.mubr.bf16.mxu0 0
        %1205 = vmatmul.mubr.bf16.gmra.mrb[0].mxu0 %v1061
        %v1206 = vpop.f32.mrb[0].mxu0
        %v1207 = vadd.f32 %v916, %v1206
        %v1208 = vpop.f32.mrb[0].mxu0
        %v1209 = vadd.f32 %v918, %v1208
        %v1210 = vpop.f32.mrb[0].mxu0
        %v1211 = vadd.f32 %v920, %v1210
        %v1212 = vpop.f32.mrb[0].mxu0
        %v1213 = vadd.f32 %v922, %v1212
        %1214 = vmatprep.mubr.bf16.mxu0 0
        %1215 = vmatmul.mubr.bf16.gmra.mrb[0].mxu0 %v1064
        %v1216 = vpop.f32.mrb[0].mxu0
        %v1217 = vadd.f32 %v926, %v1216
        %v1218 = vpop.f32.mrb[0].mxu0
        %v1219 = vadd.f32 %v928, %v1218
        %v1220 = vpop.f32.mrb[0].mxu0
        %v1221 = vadd.f32 %v930, %v1220
        %v1222 = vpop.f32.mrb[0].mxu0
        %v1223 = vadd.f32 %v932, %v1222
        %1224 = vmatprep.mubr.bf16.mxu0 0
        %1225 = vmatmul.mubr.bf16.gmra.mrb[0].mxu0 %v1067
        %v1226 = vpop.f32.mrb[0].mxu0
        %v1227 = vadd.f32 %v936, %v1226
        %v1228 = vpop.f32.mrb[0].mxu0
        %v1229 = vadd.f32 %v938, %v1228
        %v1230 = vpop.f32.mrb[0].mxu0
        %v1231 = vadd.f32 %v940, %v1230
        %v1232 = vpop.f32.mrb[0].mxu0
        %v1233 = vadd.f32 %v942, %v1232
        %1234 = vmatprep.mubr.bf16.mxu0 0
        %1235 = vmatmul.mubr.bf16.gmra.mrb[0].mxu0 %v1070
        %v1236 = vpop.f32.mrb[0].mxu0
        %v1237 = vadd.f32 %v946, %v1236
        %v1238 = vpop.f32.mrb[0].mxu0
        %v1239 = vadd.f32 %v948, %v1238
        %v1240 = vpop.f32.mrb[0].mxu0
        %v1241 = vadd.f32 %v950, %v1240
        %v1242 = vpop.f32.mrb[0].mxu0
        %v1243 = vadd.f32 %v952, %v1242
        %1244 = vdwg.mxu0
        %s1245 = scalar_lea.vmem %s1, 192
        %v1246 = vld [vmem:[%s1245] sm:$0xff]
        %v1247 = vld [vmem:[%s1245 + $0x8] sm:$0xff]
        %v1248 = vld [vmem:[%s1245 + $0x10] sm:$0xff]
        %v1249 = vld [vmem:[%s1245 + $0x18] sm:$0xff]
        %v1250 = vld [vmem:[%s1245 + $0x20] sm:$0xff]
        %v1251 = vld [vmem:[%s1245 + $0x28] sm:$0xff]
        %v1252 = vld [vmem:[%s1245 + $0x30] sm:$0xff]
        %v1253 = vld [vmem:[%s1245 + $0x38] sm:$0xff]
        %v1254 = vld [vmem:[%s1245 + $0x40] sm:$0xff]
        %v1255 = vld [vmem:[%s1245 + $0x48] sm:$0xff]
        %v1256 = vld [vmem:[%s1245 + $0x50] sm:$0xff]
        %v1257 = vld [vmem:[%s1245 + $0x58] sm:$0xff]
        %v1259 = vunpack.c.l.b16 %v580
        %v1260 = vpack.c.b16 %v1259, %v663
        %v1273 = vunpack.c.l.b16 %v1246
        %v1274 = vunpack.c.h.b16 %v1246
        %v1275 = vunpack.c.l.b16 %v1247
        %v1276 = vunpack.c.h.b16 %v1247
        %v1277 = vunpack.c.l.b16 %v1248
        %v1278 = vunpack.c.h.b16 %v1248
        %v1279 = vunpack.c.l.b16 %v1249
        %v1280 = vunpack.c.h.b16 %v1249
        %v1281 = vunpack.c.l.b16 %v1250
        %v1282 = vunpack.c.h.b16 %v1250
        %v1283 = vunpack.c.l.b16 %v1251
        %v1284 = vunpack.c.h.b16 %v1251
        %v1285 = vunpack.c.l.b16 %v1252
        %v1286 = vunpack.c.h.b16 %v1252
        %v1287 = vunpack.c.l.b16 %v1253
        %v1288 = vunpack.c.h.b16 %v1253
        %v1289 = vunpack.c.l.b16 %v1254
        %v1290 = vunpack.c.h.b16 %v1254
        %v1291 = vunpack.c.l.b16 %v1255
        %v1292 = vunpack.c.h.b16 %v1255
        %v1293 = vunpack.c.l.b16 %v1256
        %v1294 = vunpack.c.h.b16 %v1256
        %v1295 = vunpack.c.l.b16 %v1257
        %v1296 = vunpack.c.h.b16 %v1257
        %v1297 = vpack.c.b16 %v1275, %v1273
        %v1298 = vpack.c.b16 %v1276, %v1274
        %v1299 = vpack.c.b16 %v1279, %v1277
        %v1300 = vpack.c.b16 %v1280, %v1278
        %v1301 = vpack.c.b16 %v1283, %v1281
        %v1302 = vpack.c.b16 %v1284, %v1282
        %v1303 = vpack.c.b16 %v1287, %v1285
        %v1304 = vpack.c.b16 %v1288, %v1286
        %v1305 = vpack.c.b16 %v1291, %v1289
        %v1306 = vpack.c.b16 %v1292, %v1290
        %v1307 = vpack.c.b16 %v1295, %v1293
        %v1308 = vpack.c.b16 %v1296, %v1294
        %v1322 = vsel %vm738, %v1260, 0
        %1324 = vmatprep.subr.bf16.mxu0 %v1298
        %1325 = vmatpush1.bf16.msra.mxu0 %v1297
        %1326 = vmatprep.subr.bf16.mxu0 %v1300
        %1327 = vmatpush1.bf16.msra.mxu0 %v1299
        %1328 = vmatprep.subr.bf16.mxu0 %v1302
        %1329 = vmatpush1.bf16.msra.mxu0 %v1301
        %1330 = vmatprep.subr.bf16.mxu0 %v1304
        %1331 = vmatpush1.bf16.msra.mxu0 %v1303
        %1332 = vmatprep.subr.bf16.mxu0 %v1306
        %1333 = vmatpush1.bf16.msra.mxu0 %v1305
        %1334 = vmatprep.subr.bf16.mxu0 %v1308
        %1335 = vmatpush1.bf16.msra.mxu0 %v1307
        %1336 = vmatprep.subr.bf16.mxu0 0
        %1337 = vmatpush1.bf16.msra.mxu0 0
        %1338 = vmatprep.subr.bf16.mxu0 0
        %1339 = vmatpush1.bf16.msra.mxu0 0
        %1340 = vmatprep.subr.bf16.mxu0 0
        %1341 = vmatpush1.bf16.msra.mxu0 0
        %1342 = vmatprep.subr.bf16.mxu0 0
        %1343 = vmatpush1.bf16.msra.mxu0 0
        %1344 = vmatprep.subr.bf16.mxu0 0
        %1345 = vmatpush1.bf16.msra.mxu0 0
        %1346 = vmatprep.subr.bf16.mxu0 0
        %1347 = vmatpush1.bf16.msra.mxu0 0
        %1348 = vmatprep.subr.bf16.mxu0 0
        %1349 = vmatpush1.bf16.msra.mxu0 0
        %1350 = vmatprep.subr.bf16.mxu0 0
        %1351 = vmatpush1.bf16.msra.mxu0 0
        %1352 = vmatprep.subr.bf16.mxu0 0
        %1353 = vmatpush1.bf16.msra.mxu0 0
        %1354 = vmatprep.subr.bf16.mxu0 0
        %1355 = vmatpush1.bf16.msra.mxu0 0
        %1356 = vmatprep.mubr.bf16.mxu0 0
        %1357 = vmatmul.mubr.bf16.gmra.mrb[0].mxu0 %v1034
        %v1358 = vpop.f32.mrb[0].mxu0
        %v1359 = vadd.f32 0.0, %v1358
        %v1360 = vpop.f32.mrb[0].mxu0
        %v1361 = vadd.f32 0.0, %v1360
        %v1362 = vpop.f32.mrb[0].mxu0
        %v1363 = vadd.f32 0.0, %v1362
        %v1364 = vpop.f32.mrb[0].mxu0
        %v1365 = vadd.f32 0.0, %v1364
        %1366 = vmatprep.mubr.bf16.mxu0 0
        %1367 = vmatmul.mubr.bf16.gmra.mrb[0].mxu0 %v1037
        %v1368 = vpop.f32.mrb[0].mxu0
        %v1369 = vadd.f32 0.0, %v1368
        %v1370 = vpop.f32.mrb[0].mxu0
        %v1371 = vadd.f32 0.0, %v1370
        %v1372 = vpop.f32.mrb[0].mxu0
        %v1373 = vadd.f32 0.0, %v1372
        %v1374 = vpop.f32.mrb[0].mxu0
        %v1375 = vadd.f32 0.0, %v1374
        %1376 = vmatprep.mubr.bf16.mxu0 0
        %1377 = vmatmul.mubr.bf16.gmra.mrb[0].mxu0 %v1040
        %v1378 = vpop.f32.mrb[0].mxu0
        %v1379 = vadd.f32 0.0, %v1378
        %v1380 = vpop.f32.mrb[0].mxu0
        %v1381 = vadd.f32 0.0, %v1380
        %v1382 = vpop.f32.mrb[0].mxu0
        %v1383 = vadd.f32 0.0, %v1382
        %v1384 = vpop.f32.mrb[0].mxu0
        %v1385 = vadd.f32 0.0, %v1384
        %1386 = vmatprep.mubr.bf16.mxu0 0
        %1387 = vmatmul.mubr.bf16.gmra.mrb[0].mxu0 %v1043
        %v1388 = vpop.f32.mrb[0].mxu0
        %v1389 = vadd.f32 0.0, %v1388
        %v1390 = vpop.f32.mrb[0].mxu0
        %v1391 = vadd.f32 0.0, %v1390
        %v1392 = vpop.f32.mrb[0].mxu0
        %v1393 = vadd.f32 0.0, %v1392
        %v1394 = vpop.f32.mrb[0].mxu0
        %v1395 = vadd.f32 0.0, %v1394
        %1396 = vmatprep.mubr.bf16.mxu0 0
        %1397 = vmatmul.mubr.bf16.gmra.mrb[0].mxu0 %v1046
        %v1398 = vpop.f32.mrb[0].mxu0
        %v1399 = vadd.f32 0.0, %v1398
        %v1400 = vpop.f32.mrb[0].mxu0
        %v1401 = vadd.f32 0.0, %v1400
        %v1402 = vpop.f32.mrb[0].mxu0
        %v1403 = vadd.f32 0.0, %v1402
        %v1404 = vpop.f32.mrb[0].mxu0
        %v1405 = vadd.f32 0.0, %v1404
        %1406 = vmatprep.mubr.bf16.mxu0 0
        %1407 = vmatmul.mubr.bf16.gmra.mrb[0].mxu0 %v1049
        %v1408 = vpop.f32.mrb[0].mxu0
        %v1409 = vadd.f32 0.0, %v1408
        %v1410 = vpop.f32.mrb[0].mxu0
        %v1411 = vadd.f32 0.0, %v1410
        %v1412 = vpop.f32.mrb[0].mxu0
        %v1413 = vadd.f32 0.0, %v1412
        %v1414 = vpop.f32.mrb[0].mxu0
        %v1415 = vadd.f32 0.0, %v1414
        %1416 = vmatprep.mubr.bf16.mxu0 0
        %1417 = vmatmul.mubr.bf16.gmra.mrb[0].mxu0 %v1052
        %v1418 = vpop.f32.mrb[0].mxu0
        %v1419 = vadd.f32 0.0, %v1418
        %v1420 = vpop.f32.mrb[0].mxu0
        %v1421 = vadd.f32 0.0, %v1420
        %v1422 = vpop.f32.mrb[0].mxu0
        %v1423 = vadd.f32 0.0, %v1422
        %v1424 = vpop.f32.mrb[0].mxu0
        %v1425 = vadd.f32 0.0, %v1424
        %1426 = vmatprep.mubr.bf16.mxu0 0
        %1427 = vmatmul.mubr.bf16.gmra.mrb[0].mxu0 %v1055
        %v1428 = vpop.f32.mrb[0].mxu0
        %v1429 = vadd.f32 0.0, %v1428
        %v1430 = vpop.f32.mrb[0].mxu0
        %v1431 = vadd.f32 0.0, %v1430
        %v1432 = vpop.f32.mrb[0].mxu0
        %v1433 = vadd.f32 0.0, %v1432
        %v1434 = vpop.f32.mrb[0].mxu0
        %v1435 = vadd.f32 0.0, %v1434
        %1436 = vmatprep.mubr.bf16.mxu0 0
        %1437 = vmatmul.mubr.bf16.gmra.mrb[0].mxu0 %v1058
        %v1438 = vpop.f32.mrb[0].mxu0
        %v1439 = vadd.f32 0.0, %v1438
        %v1440 = vpop.f32.mrb[0].mxu0
        %v1441 = vadd.f32 0.0, %v1440
        %v1442 = vpop.f32.mrb[0].mxu0
        %v1443 = vadd.f32 0.0, %v1442
        %v1444 = vpop.f32.mrb[0].mxu0
        %v1445 = vadd.f32 0.0, %v1444
        %1446 = vmatprep.mubr.bf16.mxu0 0
        %1447 = vmatmul.mubr.bf16.gmra.mrb[0].mxu0 %v1061
        %v1448 = vpop.f32.mrb[0].mxu0
        %v1449 = vadd.f32 0.0, %v1448
        %v1450 = vpop.f32.mrb[0].mxu0
        %v1451 = vadd.f32 0.0, %v1450
        %v1452 = vpop.f32.mrb[0].mxu0
        %v1453 = vadd.f32 0.0, %v1452
        %v1454 = vpop.f32.mrb[0].mxu0
        %v1455 = vadd.f32 0.0, %v1454
        %1456 = vmatprep.mubr.bf16.mxu0 0
        %1457 = vmatmul.mubr.bf16.gmra.mrb[0].mxu0 %v1064
        %v1458 = vpop.f32.mrb[0].mxu0
        %v1459 = vadd.f32 0.0, %v1458
        %v1460 = vpop.f32.mrb[0].mxu0
        %v1461 = vadd.f32 0.0, %v1460
        %v1462 = vpop.f32.mrb[0].mxu0
        %v1463 = vadd.f32 0.0, %v1462
        %v1464 = vpop.f32.mrb[0].mxu0
        %v1465 = vadd.f32 0.0, %v1464
        %1466 = vmatprep.mubr.bf16.mxu0 0
        %1467 = vmatmul.mubr.bf16.gmra.mrb[0].mxu0 %v1067
        %v1468 = vpop.f32.mrb[0].mxu0
        %v1469 = vadd.f32 0.0, %v1468
        %v1470 = vpop.f32.mrb[0].mxu0
        %v1471 = vadd.f32 0.0, %v1470
        %v1472 = vpop.f32.mrb[0].mxu0
        %v1473 = vadd.f32 0.0, %v1472
        %v1474 = vpop.f32.mrb[0].mxu0
        %v1475 = vadd.f32 0.0, %v1474
        %1476 = vmatprep.mubr.bf16.mxu0 0
        %1477 = vmatmul.mubr.bf16.gmra.mrb[0].mxu0 %v1070
        %v1478 = vpop.f32.mrb[0].mxu0
        %v1479 = vadd.f32 0.0, %v1478
        %v1480 = vpop.f32.mrb[0].mxu0
        %v1481 = vadd.f32 0.0, %v1480
        %v1482 = vpop.f32.mrb[0].mxu0
        %v1483 = vadd.f32 0.0, %v1482
        %v1484 = vpop.f32.mrb[0].mxu0
        %v1485 = vadd.f32 0.0, %v1484
        %1486 = vmatprep.mubr.bf16.mxu0 0
        %1487 = vmatmul.mubr.bf16.gmra.mrb[0].mxu0 %v1322
        %v1488 = vpop.f32.mrb[0].mxu0
        %v1489 = vadd.f32 0.0, %v1488
        %v1490 = vpop.f32.mrb[0].mxu0
        %v1491 = vadd.f32 0.0, %v1490
        %v1492 = vpop.f32.mrb[0].mxu0
        %v1493 = vadd.f32 0.0, %v1492
        %v1494 = vpop.f32.mrb[0].mxu0
        %v1495 = vadd.f32 0.0, %v1494
        %1496 = vdwg.mxu0
        %v1497 = vadd.f32 %v1107, %v1359
        %v1498 = vadd.f32 %v1109, %v1361
        %v1499 = vadd.f32 %v1111, %v1363
        %v1500 = vadd.f32 %v1113, %v1365
        %v1501 = vadd.f32 %v1117, %v1369
        %v1502 = vadd.f32 %v1119, %v1371
        %v1503 = vadd.f32 %v1121, %v1373
        %v1504 = vadd.f32 %v1123, %v1375
        %v1505 = vadd.f32 %v1127, %v1379
        %v1506 = vadd.f32 %v1129, %v1381
        %v1507 = vadd.f32 %v1131, %v1383
        %v1508 = vadd.f32 %v1133, %v1385
        %v1509 = vadd.f32 %v1137, %v1389
        %v1510 = vadd.f32 %v1139, %v1391
        %v1511 = vadd.f32 %v1141, %v1393
        %v1512 = vadd.f32 %v1143, %v1395
        %v1513 = vadd.f32 %v1147, %v1399
        %v1514 = vadd.f32 %v1149, %v1401
        %v1515 = vadd.f32 %v1151, %v1403
        %v1516 = vadd.f32 %v1153, %v1405
        %v1517 = vadd.f32 %v1157, %v1409
        %v1518 = vadd.f32 %v1159, %v1411
        %v1519 = vadd.f32 %v1161, %v1413
        %v1520 = vadd.f32 %v1163, %v1415
        %v1521 = vadd.f32 %v1167, %v1419
        %v1522 = vadd.f32 %v1169, %v1421
        %v1523 = vadd.f32 %v1171, %v1423
        %v1524 = vadd.f32 %v1173, %v1425
        %v1525 = vadd.f32 %v1177, %v1429
        %v1526 = vadd.f32 %v1179, %v1431
        %v1527 = vadd.f32 %v1181, %v1433
        %v1528 = vadd.f32 %v1183, %v1435
        %v1529 = vadd.f32 %v1187, %v1439
        %v1530 = vadd.f32 %v1189, %v1441
        %v1531 = vadd.f32 %v1191, %v1443
        %v1532 = vadd.f32 %v1193, %v1445
        %v1533 = vadd.f32 %v1197, %v1449
        %v1534 = vadd.f32 %v1199, %v1451
        %v1535 = vadd.f32 %v1201, %v1453
        %v1536 = vadd.f32 %v1203, %v1455
        %v1537 = vadd.f32 %v1207, %v1459
        %v1538 = vadd.f32 %v1209, %v1461
        %v1539 = vadd.f32 %v1211, %v1463
        %v1540 = vadd.f32 %v1213, %v1465
        %v1541 = vadd.f32 %v1217, %v1469
        %v1542 = vadd.f32 %v1219, %v1471
        %v1543 = vadd.f32 %v1221, %v1473
        %v1544 = vadd.f32 %v1223, %v1475
        %v1545 = vadd.f32 %v1227, %v1479
        %v1546 = vadd.f32 %v1229, %v1481
        %v1547 = vadd.f32 %v1231, %v1483
        %v1548 = vadd.f32 %v1233, %v1485
        %v1549 = vadd.f32 %v1237, %v1489
        %v1550 = vadd.f32 %v1239, %v1491
        %v1551 = vadd.f32 %v1241, %v1493
        %v1552 = vadd.f32 %v1243, %v1495
        %s1553 = scalar_lea.vmem %s1, 288
        %v1554 = vld [vmem:[%s1553] sm:$0xff]
        %v1555 = vld [vmem:[%s1553 + $0x8] sm:$0xff]
        %v1556 = vld [vmem:[%s1553 + $0x10] sm:$0xff]
        %v1557 = vld [vmem:[%s1553 + $0x18] sm:$0xff]
        %v1558 = vld [vmem:[%s1553 + $0x20] sm:$0xff]
        %v1559 = vld [vmem:[%s1553 + $0x28] sm:$0xff]
        %v1560 = vld [vmem:[%s1553 + $0x30] sm:$0xff]
        %v1561 = vld [vmem:[%s1553 + $0x38] sm:$0xff]
        %v1562 = vld [vmem:[%s1553 + $0x40] sm:$0xff]
        %v1563 = vld [vmem:[%s1553 + $0x48] sm:$0xff]
        %v1564 = vld [vmem:[%s1553 + $0x50] sm:$0xff]
        %v1565 = vld [vmem:[%s1553 + $0x58] sm:$0xff]
        %v1567 = vunpack.c.l.b16 %v581
        %v1568 = vpack.c.b16 %v1567, %v1259
        %v1581 = vunpack.c.l.b16 %v1554
        %v1582 = vunpack.c.h.b16 %v1554
        %v1583 = vunpack.c.l.b16 %v1555
        %v1584 = vunpack.c.h.b16 %v1555
        %v1585 = vunpack.c.l.b16 %v1556
        %v1586 = vunpack.c.h.b16 %v1556
        %v1587 = vunpack.c.l.b16 %v1557
        %v1588 = vunpack.c.h.b16 %v1557
        %v1589 = vunpack.c.l.b16 %v1558
        %v1590 = vunpack.c.h.b16 %v1558
        %v1591 = vunpack.c.l.b16 %v1559
        %v1592 = vunpack.c.h.b16 %v1559
        %v1593 = vunpack.c.l.b16 %v1560
        %v1594 = vunpack.c.h.b16 %v1560
        %v1595 = vunpack.c.l.b16 %v1561
        %v1596 = vunpack.c.h.b16 %v1561
        %v1597 = vunpack.c.l.b16 %v1562
        %v1598 = vunpack.c.h.b16 %v1562
        %v1599 = vunpack.c.l.b16 %v1563
        %v1600 = vunpack.c.h.b16 %v1563
        %v1601 = vunpack.c.l.b16 %v1564
        %v1602 = vunpack.c.h.b16 %v1564
        %v1603 = vunpack.c.l.b16 %v1565
        %v1604 = vunpack.c.h.b16 %v1565
        %v1605 = vpack.c.b16 %v1583, %v1581
        %v1606 = vpack.c.b16 %v1584, %v1582
        %v1607 = vpack.c.b16 %v1587, %v1585
        %v1608 = vpack.c.b16 %v1588, %v1586
        %v1609 = vpack.c.b16 %v1591, %v1589
        %v1610 = vpack.c.b16 %v1592, %v1590
        %v1611 = vpack.c.b16 %v1595, %v1593
        %v1612 = vpack.c.b16 %v1596, %v1594
        %v1613 = vpack.c.b16 %v1599, %v1597
        %v1614 = vpack.c.b16 %v1600, %v1598
        %v1615 = vpack.c.b16 %v1603, %v1601
        %v1616 = vpack.c.b16 %v1604, %v1602
        %v1630 = vsel %vm738, %v1568, 0
        %1632 = vmatprep.subr.bf16.mxu0 %v1606
        %1633 = vmatpush1.bf16.msra.mxu0 %v1605
        %1634 = vmatprep.subr.bf16.mxu0 %v1608
        %1635 = vmatpush1.bf16.msra.mxu0 %v1607
        %1636 = vmatprep.subr.bf16.mxu0 %v1610
        %1637 = vmatpush1.bf16.msra.mxu0 %v1609
        %1638 = vmatprep.subr.bf16.mxu0 %v1612
        %1639 = vmatpush1.bf16.msra.mxu0 %v1611
        %1640 = vmatprep.subr.bf16.mxu0 %v1614
        %1641 = vmatpush1.bf16.msra.mxu0 %v1613
        %1642 = vmatprep.subr.bf16.mxu0 %v1616
        %1643 = vmatpush1.bf16.msra.mxu0 %v1615
        %1644 = vmatprep.subr.bf16.mxu0 0
        %1645 = vmatpush1.bf16.msra.mxu0 0
        %1646 = vmatprep.subr.bf16.mxu0 0
        %1647 = vmatpush1.bf16.msra.mxu0 0
        %1648 = vmatprep.subr.bf16.mxu0 0
        %1649 = vmatpush1.bf16.msra.mxu0 0
        %1650 = vmatprep.subr.bf16.mxu0 0
        %1651 = vmatpush1.bf16.msra.mxu0 0
        %1652 = vmatprep.subr.bf16.mxu0 0
        %1653 = vmatpush1.bf16.msra.mxu0 0
        %1654 = vmatprep.subr.bf16.mxu0 0
        %1655 = vmatpush1.bf16.msra.mxu0 0
        %1656 = vmatprep.subr.bf16.mxu0 0
        %1657 = vmatpush1.bf16.msra.mxu0 0
        %1658 = vmatprep.subr.bf16.mxu0 0
        %1659 = vmatpush1.bf16.msra.mxu0 0
        %1660 = vmatprep.subr.bf16.mxu0 0
        %1661 = vmatpush1.bf16.msra.mxu0 0
        %1662 = vmatprep.subr.bf16.mxu0 0
        %1663 = vmatpush1.bf16.msra.mxu0 0
        %1664 = vmatprep.mubr.bf16.mxu0 0
        %1665 = vmatmul.mubr.bf16.gmra.mrb[0].mxu0 %v743
        %v1666 = vpop.f32.mrb[0].mxu0
        %v1667 = vadd.f32 0.0, %v1666
        %v1668 = vpop.f32.mrb[0].mxu0
        %v1669 = vadd.f32 0.0, %v1668
        %v1670 = vpop.f32.mrb[0].mxu0
        %v1671 = vadd.f32 0.0, %v1670
        %v1672 = vpop.f32.mrb[0].mxu0
        %v1673 = vadd.f32 0.0, %v1672
        %1674 = vmatprep.mubr.bf16.mxu0 0
        %1675 = vmatmul.mubr.bf16.gmra.mrb[0].mxu0 %v746
        %v1676 = vpop.f32.mrb[0].mxu0
        %v1677 = vadd.f32 0.0, %v1676
        %v1678 = vpop.f32.mrb[0].mxu0
        %v1679 = vadd.f32 0.0, %v1678
        %v1680 = vpop.f32.mrb[0].mxu0
        %v1681 = vadd.f32 0.0, %v1680
        %v1682 = vpop.f32.mrb[0].mxu0
        %v1683 = vadd.f32 0.0, %v1682
        %1684 = vmatprep.mubr.bf16.mxu0 0
        %1685 = vmatmul.mubr.bf16.gmra.mrb[0].mxu0 %v749
        %v1686 = vpop.f32.mrb[0].mxu0
        %v1687 = vadd.f32 0.0, %v1686
        %v1688 = vpop.f32.mrb[0].mxu0
        %v1689 = vadd.f32 0.0, %v1688
        %v1690 = vpop.f32.mrb[0].mxu0
        %v1691 = vadd.f32 0.0, %v1690
        %v1692 = vpop.f32.mrb[0].mxu0
        %v1693 = vadd.f32 0.0, %v1692
        %1694 = vmatprep.mubr.bf16.mxu0 0
        %1695 = vmatmul.mubr.bf16.gmra.mrb[0].mxu0 %v752
        %v1696 = vpop.f32.mrb[0].mxu0
        %v1697 = vadd.f32 0.0, %v1696
        %v1698 = vpop.f32.mrb[0].mxu0
        %v1699 = vadd.f32 0.0, %v1698
        %v1700 = vpop.f32.mrb[0].mxu0
        %v1701 = vadd.f32 0.0, %v1700
        %v1702 = vpop.f32.mrb[0].mxu0
        %v1703 = vadd.f32 0.0, %v1702
        %1704 = vmatprep.mubr.bf16.mxu0 0
        %1705 = vmatmul.mubr.bf16.gmra.mrb[0].mxu0 %v755
        %v1706 = vpop.f32.mrb[0].mxu0
        %v1707 = vadd.f32 0.0, %v1706
        %v1708 = vpop.f32.mrb[0].mxu0
        %v1709 = vadd.f32 0.0, %v1708
        %v1710 = vpop.f32.mrb[0].mxu0
        %v1711 = vadd.f32 0.0, %v1710
        %v1712 = vpop.f32.mrb[0].mxu0
        %v1713 = vadd.f32 0.0, %v1712
        %1714 = vmatprep.mubr.bf16.mxu0 0
        %1715 = vmatmul.mubr.bf16.gmra.mrb[0].mxu0 %v758
        %v1716 = vpop.f32.mrb[0].mxu0
        %v1717 = vadd.f32 0.0, %v1716
        %v1718 = vpop.f32.mrb[0].mxu0
        %v1719 = vadd.f32 0.0, %v1718
        %v1720 = vpop.f32.mrb[0].mxu0
        %v1721 = vadd.f32 0.0, %v1720
        %v1722 = vpop.f32.mrb[0].mxu0
        %v1723 = vadd.f32 0.0, %v1722
        %1724 = vmatprep.mubr.bf16.mxu0 0
        %1725 = vmatmul.mubr.bf16.gmra.mrb[0].mxu0 %v761
        %v1726 = vpop.f32.mrb[0].mxu0
        %v1727 = vadd.f32 0.0, %v1726
        %v1728 = vpop.f32.mrb[0].mxu0
        %v1729 = vadd.f32 0.0, %v1728
        %v1730 = vpop.f32.mrb[0].mxu0
        %v1731 = vadd.f32 0.0, %v1730
        %v1732 = vpop.f32.mrb[0].mxu0
        %v1733 = vadd.f32 0.0, %v1732
        %1734 = vmatprep.mubr.bf16.mxu0 0
        %1735 = vmatmul.mubr.bf16.gmra.mrb[0].mxu0 %v764
        %v1736 = vpop.f32.mrb[0].mxu0
        %v1737 = vadd.f32 0.0, %v1736
        %v1738 = vpop.f32.mrb[0].mxu0
        %v1739 = vadd.f32 0.0, %v1738
        %v1740 = vpop.f32.mrb[0].mxu0
        %v1741 = vadd.f32 0.0, %v1740
        %v1742 = vpop.f32.mrb[0].mxu0
        %v1743 = vadd.f32 0.0, %v1742
        %1744 = vmatprep.mubr.bf16.mxu0 0
        %1745 = vmatmul.mubr.bf16.gmra.mrb[0].mxu0 %v767
        %v1746 = vpop.f32.mrb[0].mxu0
        %v1747 = vadd.f32 0.0, %v1746
        %v1748 = vpop.f32.mrb[0].mxu0
        %v1749 = vadd.f32 0.0, %v1748
        %v1750 = vpop.f32.mrb[0].mxu0
        %v1751 = vadd.f32 0.0, %v1750
        %v1752 = vpop.f32.mrb[0].mxu0
        %v1753 = vadd.f32 0.0, %v1752
        %1754 = vmatprep.mubr.bf16.mxu0 0
        %1755 = vmatmul.mubr.bf16.gmra.mrb[0].mxu0 %v770
        %v1756 = vpop.f32.mrb[0].mxu0
        %v1757 = vadd.f32 0.0, %v1756
        %v1758 = vpop.f32.mrb[0].mxu0
        %v1759 = vadd.f32 0.0, %v1758
        %v1760 = vpop.f32.mrb[0].mxu0
        %v1761 = vadd.f32 0.0, %v1760
        %v1762 = vpop.f32.mrb[0].mxu0
        %v1763 = vadd.f32 0.0, %v1762
        %1764 = vmatprep.mubr.bf16.mxu0 0
        %1765 = vmatmul.mubr.bf16.gmra.mrb[0].mxu0 %v773
        %v1766 = vpop.f32.mrb[0].mxu0
        %v1767 = vadd.f32 0.0, %v1766
        %v1768 = vpop.f32.mrb[0].mxu0
        %v1769 = vadd.f32 0.0, %v1768
        %v1770 = vpop.f32.mrb[0].mxu0
        %v1771 = vadd.f32 0.0, %v1770
        %v1772 = vpop.f32.mrb[0].mxu0
        %v1773 = vadd.f32 0.0, %v1772
        %1774 = vmatprep.mubr.bf16.mxu0 0
        %1775 = vmatmul.mubr.bf16.gmra.mrb[0].mxu0 %v776
        %v1776 = vpop.f32.mrb[0].mxu0
        %v1777 = vadd.f32 0.0, %v1776
        %v1778 = vpop.f32.mrb[0].mxu0
        %v1779 = vadd.f32 0.0, %v1778
        %v1780 = vpop.f32.mrb[0].mxu0
        %v1781 = vadd.f32 0.0, %v1780
        %v1782 = vpop.f32.mrb[0].mxu0
        %v1783 = vadd.f32 0.0, %v1782
        %1784 = vmatprep.mubr.bf16.mxu0 0
        %1785 = vmatmul.mubr.bf16.gmra.mrb[0].mxu0 %v779
        %v1786 = vpop.f32.mrb[0].mxu0
        %v1787 = vadd.f32 0.0, %v1786
        %v1788 = vpop.f32.mrb[0].mxu0
        %v1789 = vadd.f32 0.0, %v1788
        %v1790 = vpop.f32.mrb[0].mxu0
        %v1791 = vadd.f32 0.0, %v1790
        %v1792 = vpop.f32.mrb[0].mxu0
        %v1793 = vadd.f32 0.0, %v1792
        %1794 = vmatprep.mubr.bf16.mxu0 0
        %1795 = vmatmul.mubr.bf16.gmra.mrb[0].mxu0 %v1630
        %v1796 = vpop.f32.mrb[0].mxu0
        %v1797 = vadd.f32 0.0, %v1796
        %v1798 = vpop.f32.mrb[0].mxu0
        %v1799 = vadd.f32 0.0, %v1798
        %v1800 = vpop.f32.mrb[0].mxu0
        %v1801 = vadd.f32 0.0, %v1800
        %v1802 = vpop.f32.mrb[0].mxu0
        %v1803 = vadd.f32 0.0, %v1802
        %1804 = vdwg.mxu0
        %v1805 = vadd.f32 %v1497, %v1667
        %v1806 = vadd.f32 %v1498, %v1669
        %v1807 = vadd.f32 %v1499, %v1671
        %v1808 = vadd.f32 %v1500, %v1673
        %v1809 = vadd.f32 %v1501, %v1677
        %v1810 = vadd.f32 %v1502, %v1679
        %v1811 = vadd.f32 %v1503, %v1681
        %v1812 = vadd.f32 %v1504, %v1683
        %v1813 = vadd.f32 %v1505, %v1687
        %v1814 = vadd.f32 %v1506, %v1689
        %v1815 = vadd.f32 %v1507, %v1691
        %v1816 = vadd.f32 %v1508, %v1693
        %v1817 = vadd.f32 %v1509, %v1697
        %v1818 = vadd.f32 %v1510, %v1699
        %v1819 = vadd.f32 %v1511, %v1701
        %v1820 = vadd.f32 %v1512, %v1703
        %v1821 = vadd.f32 %v1513, %v1707
        %v1822 = vadd.f32 %v1514, %v1709
        %v1823 = vadd.f32 %v1515, %v1711
        %v1824 = vadd.f32 %v1516, %v1713
        %v1825 = vadd.f32 %v1517, %v1717
        %v1826 = vadd.f32 %v1518, %v1719
        %v1827 = vadd.f32 %v1519, %v1721
        %v1828 = vadd.f32 %v1520, %v1723
        %v1829 = vadd.f32 %v1521, %v1727
        %v1830 = vadd.f32 %v1522, %v1729
        %v1831 = vadd.f32 %v1523, %v1731
        %v1832 = vadd.f32 %v1524, %v1733
        %v1833 = vadd.f32 %v1525, %v1737
        %v1834 = vadd.f32 %v1526, %v1739
        %v1835 = vadd.f32 %v1527, %v1741
        %v1836 = vadd.f32 %v1528, %v1743
        %v1837 = vadd.f32 %v1529, %v1747
        %v1838 = vadd.f32 %v1530, %v1749
        %v1839 = vadd.f32 %v1531, %v1751
        %v1840 = vadd.f32 %v1532, %v1753
        %v1841 = vadd.f32 %v1533, %v1757
        %v1842 = vadd.f32 %v1534, %v1759
        %v1843 = vadd.f32 %v1535, %v1761
        %v1844 = vadd.f32 %v1536, %v1763
        %v1845 = vadd.f32 %v1537, %v1767
        %v1846 = vadd.f32 %v1538, %v1769
        %v1847 = vadd.f32 %v1539, %v1771
        %v1848 = vadd.f32 %v1540, %v1773
        %v1849 = vadd.f32 %v1541, %v1777
        %v1850 = vadd.f32 %v1542, %v1779
        %v1851 = vadd.f32 %v1543, %v1781
        %v1852 = vadd.f32 %v1544, %v1783
        %v1853 = vadd.f32 %v1545, %v1787
        %v1854 = vadd.f32 %v1546, %v1789
        %v1855 = vadd.f32 %v1547, %v1791
        %v1856 = vadd.f32 %v1548, %v1793
        %v1857 = vadd.f32 %v1549, %v1797
        %v1858 = vadd.f32 %v1550, %v1799
        %v1859 = vadd.f32 %v1551, %v1801
        %v1860 = vadd.f32 %v1552, %v1803
        %s1861 = scalar_lea.vmem %s1, 384
        %v1862 = vld [vmem:[%s1861] sm:$0xff]
        %v1863 = vld [vmem:[%s1861 + $0x8] sm:$0xff]
        %v1864 = vld [vmem:[%s1861 + $0x10] sm:$0xff]
        %v1865 = vld [vmem:[%s1861 + $0x18] sm:$0xff]
        %v1866 = vld [vmem:[%s1861 + $0x20] sm:$0xff]
        %v1867 = vld [vmem:[%s1861 + $0x28] sm:$0xff]
        %v1868 = vld [vmem:[%s1861 + $0x30] sm:$0xff]
        %v1869 = vld [vmem:[%s1861 + $0x38] sm:$0xff]
        %v1870 = vld [vmem:[%s1861 + $0x40] sm:$0xff]
        %v1871 = vld [vmem:[%s1861 + $0x48] sm:$0xff]
        %v1872 = vld [vmem:[%s1861 + $0x50] sm:$0xff]
        %v1873 = vld [vmem:[%s1861 + $0x58] sm:$0xff]
        %v1875 = vunpack.c.l.b16 %v582
        %v1876 = vpack.c.b16 %v1875, %v1567
        %v1889 = vunpack.c.l.b16 %v1862
        %v1890 = vunpack.c.h.b16 %v1862
        %v1891 = vunpack.c.l.b16 %v1863
        %v1892 = vunpack.c.h.b16 %v1863
        %v1893 = vunpack.c.l.b16 %v1864
        %v1894 = vunpack.c.h.b16 %v1864
        %v1895 = vunpack.c.l.b16 %v1865
        %v1896 = vunpack.c.h.b16 %v1865
        %v1897 = vunpack.c.l.b16 %v1866
        %v1898 = vunpack.c.h.b16 %v1866
        %v1899 = vunpack.c.l.b16 %v1867
        %v1900 = vunpack.c.h.b16 %v1867
        %v1901 = vunpack.c.l.b16 %v1868
        %v1902 = vunpack.c.h.b16 %v1868
        %v1903 = vunpack.c.l.b16 %v1869
        %v1904 = vunpack.c.h.b16 %v1869
        %v1905 = vunpack.c.l.b16 %v1870
        %v1906 = vunpack.c.h.b16 %v1870
        %v1907 = vunpack.c.l.b16 %v1871
        %v1908 = vunpack.c.h.b16 %v1871
        %v1909 = vunpack.c.l.b16 %v1872
        %v1910 = vunpack.c.h.b16 %v1872
        %v1911 = vunpack.c.l.b16 %v1873
        %v1912 = vunpack.c.h.b16 %v1873
        %v1913 = vpack.c.b16 %v1891, %v1889
        %v1914 = vpack.c.b16 %v1892, %v1890
        %v1915 = vpack.c.b16 %v1895, %v1893
        %v1916 = vpack.c.b16 %v1896, %v1894
        %v1917 = vpack.c.b16 %v1899, %v1897
        %v1918 = vpack.c.b16 %v1900, %v1898
        %v1919 = vpack.c.b16 %v1903, %v1901
        %v1920 = vpack.c.b16 %v1904, %v1902
        %v1921 = vpack.c.b16 %v1907, %v1905
        %v1922 = vpack.c.b16 %v1908, %v1906
        %v1923 = vpack.c.b16 %v1911, %v1909
        %v1924 = vpack.c.b16 %v1912, %v1910
        %v1938 = vsel %vm738, %v1876, 0
        %1940 = vmatprep.subr.bf16.mxu0 %v1914
        %1941 = vmatpush1.bf16.msra.mxu0 %v1913
        %1942 = vmatprep.subr.bf16.mxu0 %v1916
        %1943 = vmatpush1.bf16.msra.mxu0 %v1915
        %1944 = vmatprep.subr.bf16.mxu0 %v1918
        %1945 = vmatpush1.bf16.msra.mxu0 %v1917
        %1946 = vmatprep.subr.bf16.mxu0 %v1920
        %1947 = vmatpush1.bf16.msra.mxu0 %v1919
        %1948 = vmatprep.subr.bf16.mxu0 %v1922
        %1949 = vmatpush1.bf16.msra.mxu0 %v1921
        %1950 = vmatprep.subr.bf16.mxu0 %v1924
        %1951 = vmatpush1.bf16.msra.mxu0 %v1923
        %1952 = vmatprep.subr.bf16.mxu0 0
        %1953 = vmatpush1.bf16.msra.mxu0 0
        %1954 = vmatprep.subr.bf16.mxu0 0
        %1955 = vmatpush1.bf16.msra.mxu0 0
        %1956 = vmatprep.subr.bf16.mxu0 0
        %1957 = vmatpush1.bf16.msra.mxu0 0
        %1958 = vmatprep.subr.bf16.mxu0 0
        %1959 = vmatpush1.bf16.msra.mxu0 0
        %1960 = vmatprep.subr.bf16.mxu0 0
        %1961 = vmatpush1.bf16.msra.mxu0 0
        %1962 = vmatprep.subr.bf16.mxu0 0
        %1963 = vmatpush1.bf16.msra.mxu0 0
        %1964 = vmatprep.subr.bf16.mxu0 0
        %1965 = vmatpush1.bf16.msra.mxu0 0
        %1966 = vmatprep.subr.bf16.mxu0 0
        %1967 = vmatpush1.bf16.msra.mxu0 0
        %1968 = vmatprep.subr.bf16.mxu0 0
        %1969 = vmatpush1.bf16.msra.mxu0 0
        %1970 = vmatprep.subr.bf16.mxu0 0
        %1971 = vmatpush1.bf16.msra.mxu0 0
        %1972 = vmatprep.mubr.bf16.mxu0 0
        %1973 = vmatmul.mubr.bf16.gmra.mrb[0].mxu0 %v1037
        %v1974 = vpop.f32.mrb[0].mxu0
        %v1975 = vadd.f32 0.0, %v1974
        %v1976 = vpop.f32.mrb[0].mxu0
        %v1977 = vadd.f32 0.0, %v1976
        %v1978 = vpop.f32.mrb[0].mxu0
        %v1979 = vadd.f32 0.0, %v1978
        %v1980 = vpop.f32.mrb[0].mxu0
        %v1981 = vadd.f32 0.0, %v1980
        %1982 = vmatprep.mubr.bf16.mxu0 0
        %1983 = vmatmul.mubr.bf16.gmra.mrb[0].mxu0 %v1040
        %v1984 = vpop.f32.mrb[0].mxu0
        %v1985 = vadd.f32 0.0, %v1984
        %v1986 = vpop.f32.mrb[0].mxu0
        %v1987 = vadd.f32 0.0, %v1986
        %v1988 = vpop.f32.mrb[0].mxu0
        %v1989 = vadd.f32 0.0, %v1988
        %v1990 = vpop.f32.mrb[0].mxu0
        %v1991 = vadd.f32 0.0, %v1990
        %1992 = vmatprep.mubr.bf16.mxu0 0
        %1993 = vmatmul.mubr.bf16.gmra.mrb[0].mxu0 %v1043
        %v1994 = vpop.f32.mrb[0].mxu0
        %v1995 = vadd.f32 0.0, %v1994
        %v1996 = vpop.f32.mrb[0].mxu0
        %v1997 = vadd.f32 0.0, %v1996
        %v1998 = vpop.f32.mrb[0].mxu0
        %v1999 = vadd.f32 0.0, %v1998
        %v2000 = vpop.f32.mrb[0].mxu0
        %v2001 = vadd.f32 0.0, %v2000
        %2002 = vmatprep.mubr.bf16.mxu0 0
        %2003 = vmatmul.mubr.bf16.gmra.mrb[0].mxu0 %v1046
        %v2004 = vpop.f32.mrb[0].mxu0
        %v2005 = vadd.f32 0.0, %v2004
        %v2006 = vpop.f32.mrb[0].mxu0
        %v2007 = vadd.f32 0.0, %v2006
        %v2008 = vpop.f32.mrb[0].mxu0
        %v2009 = vadd.f32 0.0, %v2008
        %v2010 = vpop.f32.mrb[0].mxu0
        %v2011 = vadd.f32 0.0, %v2010
        %2012 = vmatprep.mubr.bf16.mxu0 0
        %2013 = vmatmul.mubr.bf16.gmra.mrb[0].mxu0 %v1049
        %v2014 = vpop.f32.mrb[0].mxu0
        %v2015 = vadd.f32 0.0, %v2014
        %v2016 = vpop.f32.mrb[0].mxu0
        %v2017 = vadd.f32 0.0, %v2016
        %v2018 = vpop.f32.mrb[0].mxu0
        %v2019 = vadd.f32 0.0, %v2018
        %v2020 = vpop.f32.mrb[0].mxu0
        %v2021 = vadd.f32 0.0, %v2020
        %2022 = vmatprep.mubr.bf16.mxu0 0
        %2023 = vmatmul.mubr.bf16.gmra.mrb[0].mxu0 %v1052
        %v2024 = vpop.f32.mrb[0].mxu0
        %v2025 = vadd.f32 0.0, %v2024
        %v2026 = vpop.f32.mrb[0].mxu0
        %v2027 = vadd.f32 0.0, %v2026
        %v2028 = vpop.f32.mrb[0].mxu0
        %v2029 = vadd.f32 0.0, %v2028
        %v2030 = vpop.f32.mrb[0].mxu0
        %v2031 = vadd.f32 0.0, %v2030
        %2032 = vmatprep.mubr.bf16.mxu0 0
        %2033 = vmatmul.mubr.bf16.gmra.mrb[0].mxu0 %v1055
        %v2034 = vpop.f32.mrb[0].mxu0
        %v2035 = vadd.f32 0.0, %v2034
        %v2036 = vpop.f32.mrb[0].mxu0
        %v2037 = vadd.f32 0.0, %v2036
        %v2038 = vpop.f32.mrb[0].mxu0
        %v2039 = vadd.f32 0.0, %v2038
        %v2040 = vpop.f32.mrb[0].mxu0
        %v2041 = vadd.f32 0.0, %v2040
        %2042 = vmatprep.mubr.bf16.mxu0 0
        %2043 = vmatmul.mubr.bf16.gmra.mrb[0].mxu0 %v1058
        %v2044 = vpop.f32.mrb[0].mxu0
        %v2045 = vadd.f32 0.0, %v2044
        %v2046 = vpop.f32.mrb[0].mxu0
        %v2047 = vadd.f32 0.0, %v2046
        %v2048 = vpop.f32.mrb[0].mxu0
        %v2049 = vadd.f32 0.0, %v2048
        %v2050 = vpop.f32.mrb[0].mxu0
        %v2051 = vadd.f32 0.0, %v2050
        %2052 = vmatprep.mubr.bf16.mxu0 0
        %2053 = vmatmul.mubr.bf16.gmra.mrb[0].mxu0 %v1061
        %v2054 = vpop.f32.mrb[0].mxu0
        %v2055 = vadd.f32 0.0, %v2054
        %v2056 = vpop.f32.mrb[0].mxu0
        %v2057 = vadd.f32 0.0, %v2056
        %v2058 = vpop.f32.mrb[0].mxu0
        %v2059 = vadd.f32 0.0, %v2058
        %v2060 = vpop.f32.mrb[0].mxu0
        %v2061 = vadd.f32 0.0, %v2060
        %2062 = vmatprep.mubr.bf16.mxu0 0
        %2063 = vmatmul.mubr.bf16.gmra.mrb[0].mxu0 %v1064
        %v2064 = vpop.f32.mrb[0].mxu0
        %v2065 = vadd.f32 0.0, %v2064
        %v2066 = vpop.f32.mrb[0].mxu0
        %v2067 = vadd.f32 0.0, %v2066
        %v2068 = vpop.f32.mrb[0].mxu0
        %v2069 = vadd.f32 0.0, %v2068
        %v2070 = vpop.f32.mrb[0].mxu0
        %v2071 = vadd.f32 0.0, %v2070
        %2072 = vmatprep.mubr.bf16.mxu0 0
        %2073 = vmatmul.mubr.bf16.gmra.mrb[0].mxu0 %v1067
        %v2074 = vpop.f32.mrb[0].mxu0
        %v2075 = vadd.f32 0.0, %v2074
        %v2076 = vpop.f32.mrb[0].mxu0
        %v2077 = vadd.f32 0.0, %v2076
        %v2078 = vpop.f32.mrb[0].mxu0
        %v2079 = vadd.f32 0.0, %v2078
        %v2080 = vpop.f32.mrb[0].mxu0
        %v2081 = vadd.f32 0.0, %v2080
        %2082 = vmatprep.mubr.bf16.mxu0 0
        %2083 = vmatmul.mubr.bf16.gmra.mrb[0].mxu0 %v1070
        %v2084 = vpop.f32.mrb[0].mxu0
        %v2085 = vadd.f32 0.0, %v2084
        %v2086 = vpop.f32.mrb[0].mxu0
        %v2087 = vadd.f32 0.0, %v2086
        %v2088 = vpop.f32.mrb[0].mxu0
        %v2089 = vadd.f32 0.0, %v2088
        %v2090 = vpop.f32.mrb[0].mxu0
        %v2091 = vadd.f32 0.0, %v2090
        %2092 = vmatprep.mubr.bf16.mxu0 0
        %2093 = vmatmul.mubr.bf16.gmra.mrb[0].mxu0 %v1322
        %v2094 = vpop.f32.mrb[0].mxu0
        %v2095 = vadd.f32 0.0, %v2094
        %v2096 = vpop.f32.mrb[0].mxu0
        %v2097 = vadd.f32 0.0, %v2096
        %v2098 = vpop.f32.mrb[0].mxu0
        %v2099 = vadd.f32 0.0, %v2098
        %v2100 = vpop.f32.mrb[0].mxu0
        %v2101 = vadd.f32 0.0, %v2100
        %2102 = vmatprep.mubr.bf16.mxu0 0
        %2103 = vmatmul.mubr.bf16.gmra.mrb[0].mxu0 %v1938
        %v2104 = vpop.f32.mrb[0].mxu0
        %v2105 = vadd.f32 0.0, %v2104
        %v2106 = vpop.f32.mrb[0].mxu0
        %v2107 = vadd.f32 0.0, %v2106
        %v2108 = vpop.f32.mrb[0].mxu0
        %v2109 = vadd.f32 0.0, %v2108
        %v2110 = vpop.f32.mrb[0].mxu0
        %v2111 = vadd.f32 0.0, %v2110
        %2112 = vdwg.mxu0
        %v2113 = vadd.f32 %v1805, %v1975
        %v2114 = vadd.f32 %v1806, %v1977
        %v2115 = vadd.f32 %v1807, %v1979
        %v2116 = vadd.f32 %v1808, %v1981
        %v2117 = vadd.f32 %v1809, %v1985
        %v2118 = vadd.f32 %v1810, %v1987
        %v2119 = vadd.f32 %v1811, %v1989
        %v2120 = vadd.f32 %v1812, %v1991
        %v2121 = vadd.f32 %v1813, %v1995
        %v2122 = vadd.f32 %v1814, %v1997
        %v2123 = vadd.f32 %v1815, %v1999
        %v2124 = vadd.f32 %v1816, %v2001
        %v2125 = vadd.f32 %v1817, %v2005
        %v2126 = vadd.f32 %v1818, %v2007
        %v2127 = vadd.f32 %v1819, %v2009
        %v2128 = vadd.f32 %v1820, %v2011
        %v2129 = vadd.f32 %v1821, %v2015
        %v2130 = vadd.f32 %v1822, %v2017
        %v2131 = vadd.f32 %v1823, %v2019
        %v2132 = vadd.f32 %v1824, %v2021
        %v2133 = vadd.f32 %v1825, %v2025
        %v2134 = vadd.f32 %v1826, %v2027
        %v2135 = vadd.f32 %v1827, %v2029
        %v2136 = vadd.f32 %v1828, %v2031
        %v2137 = vadd.f32 %v1829, %v2035
        %v2138 = vadd.f32 %v1830, %v2037
        %v2139 = vadd.f32 %v1831, %v2039
        %v2140 = vadd.f32 %v1832, %v2041
        %v2141 = vadd.f32 %v1833, %v2045
        %v2142 = vadd.f32 %v1834, %v2047
        %v2143 = vadd.f32 %v1835, %v2049
        %v2144 = vadd.f32 %v1836, %v2051
        %v2145 = vadd.f32 %v1837, %v2055
        %v2146 = vadd.f32 %v1838, %v2057
        %v2147 = vadd.f32 %v1839, %v2059
        %v2148 = vadd.f32 %v1840, %v2061
        %v2149 = vadd.f32 %v1841, %v2065
        %v2150 = vadd.f32 %v1842, %v2067
        %v2151 = vadd.f32 %v1843, %v2069
        %v2152 = vadd.f32 %v1844, %v2071
        %v2153 = vadd.f32 %v1845, %v2075
        %v2154 = vadd.f32 %v1846, %v2077
        %v2155 = vadd.f32 %v1847, %v2079
        %v2156 = vadd.f32 %v1848, %v2081
        %v2157 = vadd.f32 %v1849, %v2085
        %v2158 = vadd.f32 %v1850, %v2087
        %v2159 = vadd.f32 %v1851, %v2089
        %v2160 = vadd.f32 %v1852, %v2091
        %v2161 = vadd.f32 %v1853, %v2095
        %v2162 = vadd.f32 %v1854, %v2097
        %v2163 = vadd.f32 %v1855, %v2099
        %v2164 = vadd.f32 %v1856, %v2101
        %v2165 = vadd.f32 %v1857, %v2105
        %v2166 = vadd.f32 %v1858, %v2107
        %v2167 = vadd.f32 %v1859, %v2109
        %v2168 = vadd.f32 %v1860, %v2111
        %v2169 = vld [vmem:[%s2] sm:$0x3]
        %v2171 = vlaneseq
        %v2172 = vshrl.u32 %v2171, 7
        %v2173 = vsub.s32 0, %v2172
        %v2174 = vrot.slane %v2169, %v2173
        %v2175 = vlaneseq
        %v2176 = vshrl.u32 %v2175, 7
        %v2177 = vsub.s32 1, %v2176
        %v2178 = vrot.slane %v2169, %v2177
        %v2181 = vadd.f32 %v2113, %v2174
        %v2182 = vadd.f32 %v2114, %v2178
        %v2183 = vadd.f32 %v2115, %v2174
        %v2184 = vadd.f32 %v2116, %v2178
        %v2185 = vadd.f32 %v2117, %v2174
        %v2186 = vadd.f32 %v2118, %v2178
        %v2187 = vadd.f32 %v2119, %v2174
        %v2188 = vadd.f32 %v2120, %v2178
        %v2189 = vadd.f32 %v2121, %v2174
        %v2190 = vadd.f32 %v2122, %v2178
        %v2191 = vadd.f32 %v2123, %v2174
        %v2192 = vadd.f32 %v2124, %v2178
        %v2193 = vadd.f32 %v2125, %v2174
        %v2194 = vadd.f32 %v2126, %v2178
        %v2195 = vadd.f32 %v2127, %v2174
        %v2196 = vadd.f32 %v2128, %v2178
        %v2197 = vadd.f32 %v2129, %v2174
        %v2198 = vadd.f32 %v2130, %v2178
        %v2199 = vadd.f32 %v2131, %v2174
        %v2200 = vadd.f32 %v2132, %v2178
        %v2201 = vadd.f32 %v2133, %v2174
        %v2202 = vadd.f32 %v2134, %v2178
        %v2203 = vadd.f32 %v2135, %v2174
        %v2204 = vadd.f32 %v2136, %v2178
        %v2205 = vadd.f32 %v2137, %v2174
        %v2206 = vadd.f32 %v2138, %v2178
        %v2207 = vadd.f32 %v2139, %v2174
        %v2208 = vadd.f32 %v2140, %v2178
        %v2209 = vadd.f32 %v2141, %v2174
        %v2210 = vadd.f32 %v2142, %v2178
        %v2211 = vadd.f32 %v2143, %v2174
        %v2212 = vadd.f32 %v2144, %v2178
        %v2213 = vadd.f32 %v2145, %v2174
        %v2214 = vadd.f32 %v2146, %v2178
        %v2215 = vadd.f32 %v2147, %v2174
        %v2216 = vadd.f32 %v2148, %v2178
        %v2217 = vadd.f32 %v2149, %v2174
        %v2218 = vadd.f32 %v2150, %v2178
        %v2219 = vadd.f32 %v2151, %v2174
        %v2220 = vadd.f32 %v2152, %v2178
        %v2221 = vadd.f32 %v2153, %v2174
        %v2222 = vadd.f32 %v2154, %v2178
        %v2223 = vadd.f32 %v2155, %v2174
        %v2224 = vadd.f32 %v2156, %v2178
        %v2225 = vadd.f32 %v2157, %v2174
        %v2226 = vadd.f32 %v2158, %v2178
        %v2227 = vadd.f32 %v2159, %v2174
        %v2228 = vadd.f32 %v2160, %v2178
        %v2229 = vadd.f32 %v2161, %v2174
        %v2230 = vadd.f32 %v2162, %v2178
        %v2231 = vadd.f32 %v2163, %v2174
        %v2232 = vadd.f32 %v2164, %v2178
        %v2233 = vadd.f32 %v2165, %v2174
        %v2234 = vadd.f32 %v2166, %v2178
        %v2235 = vadd.f32 %v2167, %v2174
        %v2236 = vadd.f32 %v2168, %v2178
        %v2237 = vmax.f32 %v2181, 0.0
        %v2238 = vmax.f32 %v2182, 0.0
        %v2239 = vmax.f32 %v2183, 0.0
        %v2240 = vmax.f32 %v2184, 0.0
        %v2241 = vmax.f32 %v2185, 0.0
        %v2242 = vmax.f32 %v2186, 0.0
        %v2243 = vmax.f32 %v2187, 0.0
        %v2244 = vmax.f32 %v2188, 0.0
        %v2245 = vmax.f32 %v2189, 0.0
        %v2246 = vmax.f32 %v2190, 0.0
        %v2247 = vmax.f32 %v2191, 0.0
        %v2248 = vmax.f32 %v2192, 0.0
        %v2249 = vmax.f32 %v2193, 0.0
        %v2250 = vmax.f32 %v2194, 0.0
        %v2251 = vmax.f32 %v2195, 0.0
        %v2252 = vmax.f32 %v2196, 0.0
        %v2253 = vmax.f32 %v2197, 0.0
        %v2254 = vmax.f32 %v2198, 0.0
        %v2255 = vmax.f32 %v2199, 0.0
        %v2256 = vmax.f32 %v2200, 0.0
        %v2257 = vmax.f32 %v2201, 0.0
        %v2258 = vmax.f32 %v2202, 0.0
        %v2259 = vmax.f32 %v2203, 0.0
        %v2260 = vmax.f32 %v2204, 0.0
        %v2261 = vmax.f32 %v2205, 0.0
        %v2262 = vmax.f32 %v2206, 0.0
        %v2263 = vmax.f32 %v2207, 0.0
        %v2264 = vmax.f32 %v2208, 0.0
        %v2265 = vmax.f32 %v2209, 0.0
        %v2266 = vmax.f32 %v2210, 0.0
        %v2267 = vmax.f32 %v2211, 0.0
        %v2268 = vmax.f32 %v2212, 0.0
        %v2269 = vmax.f32 %v2213, 0.0
        %v2270 = vmax.f32 %v2214, 0.0
        %v2271 = vmax.f32 %v2215, 0.0
        %v2272 = vmax.f32 %v2216, 0.0
        %v2273 = vmax.f32 %v2217, 0.0
        %v2274 = vmax.f32 %v2218, 0.0
        %v2275 = vmax.f32 %v2219, 0.0
        %v2276 = vmax.f32 %v2220, 0.0
        %v2277 = vmax.f32 %v2221, 0.0
        %v2278 = vmax.f32 %v2222, 0.0
        %v2279 = vmax.f32 %v2223, 0.0
        %v2280 = vmax.f32 %v2224, 0.0
        %v2281 = vmax.f32 %v2225, 0.0
        %v2282 = vmax.f32 %v2226, 0.0
        %v2283 = vmax.f32 %v2227, 0.0
        %v2284 = vmax.f32 %v2228, 0.0
        %v2285 = vmax.f32 %v2229, 0.0
        %v2286 = vmax.f32 %v2230, 0.0
        %v2287 = vmax.f32 %v2231, 0.0
        %v2288 = vmax.f32 %v2232, 0.0
        %v2289 = vmax.f32 %v2233, 0.0
        %v2290 = vmax.f32 %v2234, 0.0
        %v2291 = vmax.f32 %v2235, 0.0
        %v2292 = vmax.f32 %v2236, 0.0
        %v2293 = vmax.f32 %v2237, %v2239
        %v2294 = vmax.f32 %v2238, %v2240
        %v2295 = vmax.f32 %v2241, %v2243
        %v2296 = vmax.f32 %v2242, %v2244
        %v2297 = vmax.f32 %v2245, %v2247
        %v2298 = vmax.f32 %v2246, %v2248
        %v2299 = vmax.f32 %v2249, %v2251
        %v2300 = vmax.f32 %v2250, %v2252
        %v2301 = vmax.f32 %v2253, %v2255
        %v2302 = vmax.f32 %v2254, %v2256
        %v2303 = vmax.f32 %v2257, %v2259
        %v2304 = vmax.f32 %v2258, %v2260
        %v2305 = vmax.f32 %v2261, %v2263
        %v2306 = vmax.f32 %v2262, %v2264
        %v2307 = vmax.f32 %v2265, %v2267
        %v2308 = vmax.f32 %v2266, %v2268
        %v2309 = vmax.f32 %v2269, %v2271
        %v2310 = vmax.f32 %v2270, %v2272
        %v2311 = vmax.f32 %v2273, %v2275
        %v2312 = vmax.f32 %v2274, %v2276
        %v2313 = vmax.f32 %v2277, %v2279
        %v2314 = vmax.f32 %v2278, %v2280
        %v2315 = vmax.f32 %v2281, %v2283
        %v2316 = vmax.f32 %v2282, %v2284
        %v2317 = vmax.f32 %v2285, %v2287
        %v2318 = vmax.f32 %v2286, %v2288
        %v2319 = vmax.f32 %v2289, %v2291
        %v2320 = vmax.f32 %v2290, %v2292
        %2349 = vrot.lane.b32.xlu0 %v2293, 44
        %v2350 = vpop.permute.xlu0 %2349
        %2351 = vrot.lane.b32.xlu0 %v2294, 44
        %v2352 = vpop.permute.xlu0 %2351
        %2353 = vrot.lane.b32.xlu0 %v2295, 44
        %v2354 = vpop.permute.xlu0 %2353
        %2355 = vrot.lane.b32.xlu0 %v2296, 44
        %v2356 = vpop.permute.xlu0 %2355
        %2357 = vrot.lane.b32.xlu0 %v2297, 44
        %v2358 = vpop.permute.xlu0 %2357
        %2359 = vrot.lane.b32.xlu0 %v2298, 44
        %v2360 = vpop.permute.xlu0 %2359
        %2361 = vrot.lane.b32.xlu0 %v2299, 44
        %v2362 = vpop.permute.xlu0 %2361
        %2363 = vrot.lane.b32.xlu0 %v2300, 44
        %v2364 = vpop.permute.xlu0 %2363
        %2365 = vrot.lane.b32.xlu0 %v2301, 44
        %v2366 = vpop.permute.xlu0 %2365
        %2367 = vrot.lane.b32.xlu0 %v2302, 44
        %v2368 = vpop.permute.xlu0 %2367
        %2369 = vrot.lane.b32.xlu0 %v2303, 44
        %v2370 = vpop.permute.xlu0 %2369
        %2371 = vrot.lane.b32.xlu0 %v2304, 44
        %v2372 = vpop.permute.xlu0 %2371
        %2373 = vrot.lane.b32.xlu0 %v2305, 44
        %v2374 = vpop.permute.xlu0 %2373
        %2375 = vrot.lane.b32.xlu0 %v2306, 44
        %v2376 = vpop.permute.xlu0 %2375
        %2377 = vrot.lane.b32.xlu0 %v2307, 44
        %v2378 = vpop.permute.xlu0 %2377
        %2379 = vrot.lane.b32.xlu0 %v2308, 44
        %v2380 = vpop.permute.xlu0 %2379
        %2381 = vrot.lane.b32.xlu0 %v2309, 44
        %v2382 = vpop.permute.xlu0 %2381
        %2383 = vrot.lane.b32.xlu0 %v2310, 44
        %v2384 = vpop.permute.xlu0 %2383
        %2385 = vrot.lane.b32.xlu0 %v2311, 44
        %v2386 = vpop.permute.xlu0 %2385
        %2387 = vrot.lane.b32.xlu0 %v2312, 44
        %v2388 = vpop.permute.xlu0 %2387
        %2389 = vrot.lane.b32.xlu0 %v2313, 44
        %v2390 = vpop.permute.xlu0 %2389
        %2391 = vrot.lane.b32.xlu0 %v2314, 44
        %v2392 = vpop.permute.xlu0 %2391
        %2393 = vrot.lane.b32.xlu0 %v2315, 44
        %v2394 = vpop.permute.xlu0 %2393
        %2395 = vrot.lane.b32.xlu0 %v2316, 44
        %v2396 = vpop.permute.xlu0 %2395
        %2397 = vrot.lane.b32.xlu0 %v2317, 44
        %v2398 = vpop.permute.xlu0 %2397
        %2399 = vrot.lane.b32.xlu0 %v2318, 44
        %v2400 = vpop.permute.xlu0 %2399
        %2401 = vrot.lane.b32.xlu0 %v2319, 44
        %v2402 = vpop.permute.xlu0 %2401
        %2403 = vrot.lane.b32.xlu0 %v2320, 44
        %v2404 = vpop.permute.xlu0 %2403
        %vm2405 = vcmask 359424
        %v2406 = vsel %vm2405, %v2350, %v2352
        %v2407 = vsel %vm2405, %v2354, %v2356
        %v2408 = vsel %vm2405, %v2358, %v2360
        %v2409 = vsel %vm2405, %v2362, %v2364
        %v2410 = vsel %vm2405, %v2366, %v2368
        %v2411 = vsel %vm2405, %v2370, %v2372
        %v2412 = vsel %vm2405, %v2374, %v2376
        %v2413 = vsel %vm2405, %v2378, %v2380
        %v2414 = vsel %vm2405, %v2382, %v2384
        %v2415 = vsel %vm2405, %v2386, %v2388
        %v2416 = vsel %vm2405, %v2390, %v2392
        %v2417 = vsel %vm2405, %v2394, %v2396
        %v2418 = vsel %vm2405, %v2398, %v2400
        %v2419 = vsel %vm2405, %v2402, %v2404
        %v2434 = vmax.f32 %v2293, %v2406
        %v2435 = vmax.f32 %v2295, %v2407
        %v2436 = vmax.f32 %v2297, %v2408
        %v2437 = vmax.f32 %v2299, %v2409
        %v2438 = vmax.f32 %v2301, %v2410
        %v2439 = vmax.f32 %v2303, %v2411
        %v2440 = vmax.f32 %v2305, %v2412
        %v2441 = vmax.f32 %v2307, %v2413
        %v2442 = vmax.f32 %v2309, %v2414
        %v2443 = vmax.f32 %v2311, %v2415
        %v2444 = vmax.f32 %v2313, %v2416
        %v2445 = vmax.f32 %v2315, %v2417
        %v2446 = vmax.f32 %v2317, %v2418
        %v2447 = vmax.f32 %v2319, %v2419
        %v2448 = vpack.c.bf16 %v2434, %v2434
        %v2449 = vpack.c.bf16 %v2435, %v2435
        %v2450 = vpack.c.bf16 %v2436, %v2436
        %v2451 = vpack.c.bf16 %v2437, %v2437
        %v2452 = vpack.c.bf16 %v2438, %v2438
        %v2453 = vpack.c.bf16 %v2439, %v2439
        %v2454 = vpack.c.bf16 %v2440, %v2440
        %v2455 = vpack.c.bf16 %v2441, %v2441
        %v2456 = vpack.c.bf16 %v2442, %v2442
        %v2457 = vpack.c.bf16 %v2443, %v2443
        %v2458 = vpack.c.bf16 %v2444, %v2444
        %v2459 = vpack.c.bf16 %v2445, %v2445
        %v2460 = vpack.c.bf16 %v2446, %v2446
        %v2461 = vpack.c.bf16 %v2447, %v2447
        %v2462 = vld [vmem:[%s3] sm:$0xff]
        %v2463 = vld [vmem:[%s3 + $0x8] sm:$0xff]
        %v2464 = vld [vmem:[%s3 + $0x10] sm:$0xff]
        %v2465 = vld [vmem:[%s3 + $0x18] sm:$0xff]
        %v2466 = vld [vmem:[%s3 + $0x20] sm:$0xff]
        %v2467 = vld [vmem:[%s3 + $0x28] sm:$0xff]
        %v2468 = vld [vmem:[%s3 + $0x30] sm:$0xff]
        %v2469 = vld [vmem:[%s3 + $0x38] sm:$0xff]
        %v2470 = vld [vmem:[%s3 + $0x40] sm:$0xff]
        %v2471 = vld [vmem:[%s3 + $0x48] sm:$0xff]
        %v2472 = vld [vmem:[%s3 + $0x50] sm:$0x33]
        %s2473 = scalar_lea.vmem %s3, 88
        %v2474 = vld [vmem:[%s2473] sm:$0xff]
        %v2475 = vld [vmem:[%s2473 + $0x8] sm:$0xff]
        %v2476 = vld [vmem:[%s2473 + $0x10] sm:$0xff]
        %v2477 = vld [vmem:[%s2473 + $0x18] sm:$0xff]
        %v2478 = vld [vmem:[%s2473 + $0x20] sm:$0xff]
        %v2479 = vld [vmem:[%s2473 + $0x28] sm:$0xff]
        %v2480 = vld [vmem:[%s2473 + $0x30] sm:$0xff]
        %v2481 = vld [vmem:[%s2473 + $0x38] sm:$0xff]
        %v2482 = vld [vmem:[%s2473 + $0x40] sm:$0xff]
        %v2483 = vld [vmem:[%s2473 + $0x48] sm:$0xff]
        %v2484 = vld [vmem:[%s2473 + $0x50] sm:$0x33]
        %v2495 = vunpack.c.l.b16 %v2449
        %v2496 = vunpack.c.l.b16 %v2450
        %v2497 = vunpack.c.l.b16 %v2451
        %v2498 = vunpack.c.l.b16 %v2452
        %v2499 = vunpack.c.l.b16 %v2453
        %v2500 = vunpack.c.l.b16 %v2454
        %v2501 = vunpack.c.l.b16 %v2455
        %v2502 = vunpack.c.l.b16 %v2456
        %v2503 = vunpack.c.l.b16 %v2457
        %v2504 = vunpack.c.l.b16 %v2458
        %v2505 = vpack.c.b16 %v2496, %v2495
        %v2506 = vpack.c.b16 %v2498, %v2497
        %v2507 = vpack.c.b16 %v2500, %v2499
        %v2508 = vpack.c.b16 %v2502, %v2501
        %v2509 = vpack.c.b16 %v2504, %v2503
        %v2521 = vunpack.c.l.b16 %v2474
        %v2522 = vunpack.c.h.b16 %v2474
        %v2523 = vunpack.c.l.b16 %v2475
        %v2524 = vunpack.c.h.b16 %v2475
        %v2525 = vunpack.c.l.b16 %v2476
        %v2526 = vunpack.c.h.b16 %v2476
        %v2527 = vunpack.c.l.b16 %v2477
        %v2528 = vunpack.c.h.b16 %v2477
        %v2529 = vunpack.c.l.b16 %v2478
        %v2530 = vunpack.c.h.b16 %v2478
        %v2531 = vunpack.c.l.b16 %v2479
        %v2532 = vunpack.c.h.b16 %v2479
        %v2533 = vunpack.c.l.b16 %v2480
        %v2534 = vunpack.c.h.b16 %v2480
        %v2535 = vunpack.c.l.b16 %v2481
        %v2536 = vunpack.c.h.b16 %v2481
        %v2537 = vunpack.c.l.b16 %v2482
        %v2538 = vunpack.c.h.b16 %v2482
        %v2539 = vunpack.c.l.b16 %v2483
        %v2540 = vunpack.c.h.b16 %v2483
        %v2541 = vunpack.c.l.b16 %v2484
        %v2542 = vunpack.c.h.b16 %v2484
        %v2543 = vpack.c.b16 %v2523, %v2521
        %v2544 = vpack.c.b16 %v2524, %v2522
        %v2545 = vpack.c.b16 %v2527, %v2525
        %v2546 = vpack.c.b16 %v2528, %v2526
        %v2547 = vpack.c.b16 %v2531, %v2529
        %v2548 = vpack.c.b16 %v2532, %v2530
        %v2549 = vpack.c.b16 %v2535, %v2533
        %v2550 = vpack.c.b16 %v2536, %v2534
        %v2551 = vpack.c.b16 %v2539, %v2537
        %v2552 = vpack.c.b16 %v2540, %v2538
        %v2553 = vpack.c.b16 %v2541, %v2541
        %v2554 = vpack.c.b16 %v2542, %v2542
        %vm2565 = vcmask 687104
        %v2567 = vsel %vm2565, %v2505, 0
        %v2570 = vsel %vm2565, %v2506, 0
        %v2573 = vsel %vm2565, %v2507, 0
        %v2576 = vsel %vm2565, %v2508, 0
        %v2579 = vsel %vm2565, %v2509, 0
        %vm2581 = vcmask 1041408
        %v2583 = vsel %vm2581, %v2553, 0
        %v2586 = vsel %vm2581, %v2554, 0
        %2588 = vmatprep.subr.bf16.mxu0 %v2544
        %2589 = vmatpush1.bf16.msra.mxu0 %v2543
        %2590 = vmatprep.subr.bf16.mxu0 %v2546
        %2591 = vmatpush1.bf16.msra.mxu0 %v2545
        %2592 = vmatprep.subr.bf16.mxu0 %v2548
        %2593 = vmatpush1.bf16.msra.mxu0 %v2547
        %2594 = vmatprep.subr.bf16.mxu0 %v2550
        %2595 = vmatpush1.bf16.msra.mxu0 %v2549
        %2596 = vmatprep.subr.bf16.mxu0 %v2552
        %2597 = vmatpush1.bf16.msra.mxu0 %v2551
        %2598 = vmatprep.subr.bf16.mxu0 %v2586
        %2599 = vmatpush1.bf16.msra.mxu0 %v2583
        %2600 = vmatprep.subr.bf16.mxu0 0
        %2601 = vmatpush1.bf16.msra.mxu0 0
        %2602 = vmatprep.subr.bf16.mxu0 0
        %2603 = vmatpush1.bf16.msra.mxu0 0
        %2604 = vmatprep.subr.bf16.mxu0 0
        %2605 = vmatpush1.bf16.msra.mxu0 0
        %2606 = vmatprep.subr.bf16.mxu0 0
        %2607 = vmatpush1.bf16.msra.mxu0 0
        %2608 = vmatprep.subr.bf16.mxu0 0
        %2609 = vmatpush1.bf16.msra.mxu0 0
        %2610 = vmatprep.subr.bf16.mxu0 0
        %2611 = vmatpush1.bf16.msra.mxu0 0
        %2612 = vmatprep.subr.bf16.mxu0 0
        %2613 = vmatpush1.bf16.msra.mxu0 0
        %2614 = vmatprep.subr.bf16.mxu0 0
        %2615 = vmatpush1.bf16.msra.mxu0 0
        %2616 = vmatprep.subr.bf16.mxu0 0
        %2617 = vmatpush1.bf16.msra.mxu0 0
        %2618 = vmatprep.subr.bf16.mxu0 0
        %2619 = vmatpush1.bf16.msra.mxu0 0
        %2620 = vmatprep.mubr.bf16.mxu0 0
        %2621 = vmatmul.mubr.bf16.gmra.mrb[0].mxu0 %v2567
        %v2622 = vpop.f32.mrb[0].mxu0
        %v2623 = vadd.f32 0.0, %v2622
        %v2624 = vpop.f32.mrb[0].mxu0
        %v2625 = vadd.f32 0.0, %v2624
        %v2626 = vpop.f32.mrb[0].mxu0
        %v2627 = vadd.f32 0.0, %v2626
        %v2628 = vpop.f32.mrb[0].mxu0
        %v2629 = vadd.f32 0.0, %v2628
        %2630 = vmatprep.mubr.bf16.mxu0 0
        %2631 = vmatmul.mubr.bf16.gmra.mrb[0].mxu0 %v2570
        %v2632 = vpop.f32.mrb[0].mxu0
        %v2633 = vadd.f32 0.0, %v2632
        %v2634 = vpop.f32.mrb[0].mxu0
        %v2635 = vadd.f32 0.0, %v2634
        %v2636 = vpop.f32.mrb[0].mxu0
        %v2637 = vadd.f32 0.0, %v2636
        %v2638 = vpop.f32.mrb[0].mxu0
        %v2639 = vadd.f32 0.0, %v2638
        %2640 = vmatprep.mubr.bf16.mxu0 0
        %2641 = vmatmul.mubr.bf16.gmra.mrb[0].mxu0 %v2573
        %v2642 = vpop.f32.mrb[0].mxu0
        %v2643 = vadd.f32 0.0, %v2642
        %v2644 = vpop.f32.mrb[0].mxu0
        %v2645 = vadd.f32 0.0, %v2644
        %v2646 = vpop.f32.mrb[0].mxu0
        %v2647 = vadd.f32 0.0, %v2646
        %v2648 = vpop.f32.mrb[0].mxu0
        %v2649 = vadd.f32 0.0, %v2648
        %2650 = vmatprep.mubr.bf16.mxu0 0
        %2651 = vmatmul.mubr.bf16.gmra.mrb[0].mxu0 %v2576
        %v2652 = vpop.f32.mrb[0].mxu0
        %v2653 = vadd.f32 0.0, %v2652
        %v2654 = vpop.f32.mrb[0].mxu0
        %v2655 = vadd.f32 0.0, %v2654
        %v2656 = vpop.f32.mrb[0].mxu0
        %v2657 = vadd.f32 0.0, %v2656
        %v2658 = vpop.f32.mrb[0].mxu0
        %v2659 = vadd.f32 0.0, %v2658
        %2660 = vmatprep.mubr.bf16.mxu0 0
        %2661 = vmatmul.mubr.bf16.gmra.mrb[0].mxu0 %v2579
        %v2662 = vpop.f32.mrb[0].mxu0
        %v2663 = vadd.f32 0.0, %v2662
        %v2664 = vpop.f32.mrb[0].mxu0
        %v2665 = vadd.f32 0.0, %v2664
        %v2666 = vpop.f32.mrb[0].mxu0
        %v2667 = vadd.f32 0.0, %v2666
        %v2668 = vpop.f32.mrb[0].mxu0
        %v2669 = vadd.f32 0.0, %v2668
        %2670 = vdwg.mxu0
        %v2672 = vunpack.c.l.b16 %v2448
        %v2673 = vpack.c.b16 %v2495, %v2672
        %v2674 = vpack.c.b16 %v2497, %v2496
        %v2675 = vpack.c.b16 %v2499, %v2498
        %v2676 = vpack.c.b16 %v2501, %v2500
        %v2677 = vpack.c.b16 %v2503, %v2502
        %v2689 = vunpack.c.l.b16 %v2462
        %v2690 = vunpack.c.h.b16 %v2462
        %v2691 = vunpack.c.l.b16 %v2463
        %v2692 = vunpack.c.h.b16 %v2463
        %v2693 = vunpack.c.l.b16 %v2464
        %v2694 = vunpack.c.h.b16 %v2464
        %v2695 = vunpack.c.l.b16 %v2465
        %v2696 = vunpack.c.h.b16 %v2465
        %v2697 = vunpack.c.l.b16 %v2466
        %v2698 = vunpack.c.h.b16 %v2466
        %v2699 = vunpack.c.l.b16 %v2467
        %v2700 = vunpack.c.h.b16 %v2467
        %v2701 = vunpack.c.l.b16 %v2468
        %v2702 = vunpack.c.h.b16 %v2468
        %v2703 = vunpack.c.l.b16 %v2469
        %v2704 = vunpack.c.h.b16 %v2469
        %v2705 = vunpack.c.l.b16 %v2470
        %v2706 = vunpack.c.h.b16 %v2470
        %v2707 = vunpack.c.l.b16 %v2471
        %v2708 = vunpack.c.h.b16 %v2471
        %v2709 = vunpack.c.l.b16 %v2472
        %v2710 = vunpack.c.h.b16 %v2472
        %v2711 = vpack.c.b16 %v2691, %v2689
        %v2712 = vpack.c.b16 %v2692, %v2690
        %v2713 = vpack.c.b16 %v2695, %v2693
        %v2714 = vpack.c.b16 %v2696, %v2694
        %v2715 = vpack.c.b16 %v2699, %v2697
        %v2716 = vpack.c.b16 %v2700, %v2698
        %v2717 = vpack.c.b16 %v2703, %v2701
        %v2718 = vpack.c.b16 %v2704, %v2702
        %v2719 = vpack.c.b16 %v2707, %v2705
        %v2720 = vpack.c.b16 %v2708, %v2706
        %v2721 = vpack.c.b16 %v2709, %v2709
        %v2722 = vpack.c.b16 %v2710, %v2710
        %v2734 = vsel %vm2565, %v2673, 0
        %v2737 = vsel %vm2565, %v2674, 0
        %v2740 = vsel %vm2565, %v2675, 0
        %v2743 = vsel %vm2565, %v2676, 0
        %v2746 = vsel %vm2565, %v2677, 0
        %v2749 = vsel %vm2581, %v2721, 0
        %v2752 = vsel %vm2581, %v2722, 0
        %2754 = vmatprep.subr.bf16.mxu0 %v2712
        %2755 = vmatpush1.bf16.msra.mxu0 %v2711
        %2756 = vmatprep.subr.bf16.mxu0 %v2714
        %2757 = vmatpush1.bf16.msra.mxu0 %v2713
        %2758 = vmatprep.subr.bf16.mxu0 %v2716
        %2759 = vmatpush1.bf16.msra.mxu0 %v2715
        %2760 = vmatprep.subr.bf16.mxu0 %v2718
        %2761 = vmatpush1.bf16.msra.mxu0 %v2717
        %2762 = vmatprep.subr.bf16.mxu0 %v2720
        %2763 = vmatpush1.bf16.msra.mxu0 %v2719
        %2764 = vmatprep.subr.bf16.mxu0 %v2752
        %2765 = vmatpush1.bf16.msra.mxu0 %v2749
        %2766 = vmatprep.subr.bf16.mxu0 0
        %2767 = vmatpush1.bf16.msra.mxu0 0
        %2768 = vmatprep.subr.bf16.mxu0 0
        %2769 = vmatpush1.bf16.msra.mxu0 0
        %2770 = vmatprep.subr.bf16.mxu0 0
        %2771 = vmatpush1.bf16.msra.mxu0 0
        %2772 = vmatprep.subr.bf16.mxu0 0
        %2773 = vmatpush1.bf16.msra.mxu0 0
        %2774 = vmatprep.subr.bf16.mxu0 0
        %2775 = vmatpush1.bf16.msra.mxu0 0
        %2776 = vmatprep.subr.bf16.mxu0 0
        %2777 = vmatpush1.bf16.msra.mxu0 0
        %2778 = vmatprep.subr.bf16.mxu0 0
        %2779 = vmatpush1.bf16.msra.mxu0 0
        %2780 = vmatprep.subr.bf16.mxu0 0
        %2781 = vmatpush1.bf16.msra.mxu0 0
        %2782 = vmatprep.subr.bf16.mxu0 0
        %2783 = vmatpush1.bf16.msra.mxu0 0
        %2784 = vmatprep.subr.bf16.mxu0 0
        %2785 = vmatpush1.bf16.msra.mxu0 0
        %2786 = vmatprep.mubr.bf16.mxu0 0
        %2787 = vmatmul.mubr.bf16.gmra.mrb[0].mxu0 %v2734
        %v2788 = vpop.f32.mrb[0].mxu0
        %v2789 = vadd.f32 %v2623, %v2788
        %v2790 = vpop.f32.mrb[0].mxu0
        %v2791 = vadd.f32 %v2625, %v2790
        %v2792 = vpop.f32.mrb[0].mxu0
        %v2793 = vadd.f32 %v2627, %v2792
        %v2794 = vpop.f32.mrb[0].mxu0
        %v2795 = vadd.f32 %v2629, %v2794
        %2796 = vmatprep.mubr.bf16.mxu0 0
        %2797 = vmatmul.mubr.bf16.gmra.mrb[0].mxu0 %v2737
        %v2798 = vpop.f32.mrb[0].mxu0
        %v2799 = vadd.f32 %v2633, %v2798
        %v2800 = vpop.f32.mrb[0].mxu0
        %v2801 = vadd.f32 %v2635, %v2800
        %v2802 = vpop.f32.mrb[0].mxu0
        %v2803 = vadd.f32 %v2637, %v2802
        %v2804 = vpop.f32.mrb[0].mxu0
        %v2805 = vadd.f32 %v2639, %v2804
        %2806 = vmatprep.mubr.bf16.mxu0 0
        %2807 = vmatmul.mubr.bf16.gmra.mrb[0].mxu0 %v2740
        %v2808 = vpop.f32.mrb[0].mxu0
        %v2809 = vadd.f32 %v2643, %v2808
        %v2810 = vpop.f32.mrb[0].mxu0
        %v2811 = vadd.f32 %v2645, %v2810
        %v2812 = vpop.f32.mrb[0].mxu0
        %v2813 = vadd.f32 %v2647, %v2812
        %v2814 = vpop.f32.mrb[0].mxu0
        %v2815 = vadd.f32 %v2649, %v2814
        %2816 = vmatprep.mubr.bf16.mxu0 0
        %2817 = vmatmul.mubr.bf16.gmra.mrb[0].mxu0 %v2743
        %v2818 = vpop.f32.mrb[0].mxu0
        %v2819 = vadd.f32 %v2653, %v2818
        %v2820 = vpop.f32.mrb[0].mxu0
        %v2821 = vadd.f32 %v2655, %v2820
        %v2822 = vpop.f32.mrb[0].mxu0
        %v2823 = vadd.f32 %v2657, %v2822
        %v2824 = vpop.f32.mrb[0].mxu0
        %v2825 = vadd.f32 %v2659, %v2824
        %2826 = vmatprep.mubr.bf16.mxu0 0
        %2827 = vmatmul.mubr.bf16.gmra.mrb[0].mxu0 %v2746
        %v2828 = vpop.f32.mrb[0].mxu0
        %v2829 = vadd.f32 %v2663, %v2828
        %v2830 = vpop.f32.mrb[0].mxu0
        %v2831 = vadd.f32 %v2665, %v2830
        %v2832 = vpop.f32.mrb[0].mxu0
        %v2833 = vadd.f32 %v2667, %v2832
        %v2834 = vpop.f32.mrb[0].mxu0
        %v2835 = vadd.f32 %v2669, %v2834
        %2836 = vdwg.mxu0
        %s2837 = scalar_lea.vmem %s3, 176
        %v2838 = vld [vmem:[%s2837] sm:$0xff]
        %v2839 = vld [vmem:[%s2837 + $0x8] sm:$0xff]
        %v2840 = vld [vmem:[%s2837 + $0x10] sm:$0xff]
        %v2841 = vld [vmem:[%s2837 + $0x18] sm:$0xff]
        %v2842 = vld [vmem:[%s2837 + $0x20] sm:$0xff]
        %v2843 = vld [vmem:[%s2837 + $0x28] sm:$0xff]
        %v2844 = vld [vmem:[%s2837 + $0x30] sm:$0xff]
        %v2845 = vld [vmem:[%s2837 + $0x38] sm:$0xff]
        %v2846 = vld [vmem:[%s2837 + $0x40] sm:$0xff]
        %v2847 = vld [vmem:[%s2837 + $0x48] sm:$0xff]
        %v2848 = vld [vmem:[%s2837 + $0x50] sm:$0x33]
        %v2850 = vunpack.c.l.b16 %v2459
        %v2851 = vpack.c.b16 %v2850, %v2504
        %v2863 = vunpack.c.l.b16 %v2838
        %v2864 = vunpack.c.h.b16 %v2838
        %v2865 = vunpack.c.l.b16 %v2839
        %v2866 = vunpack.c.h.b16 %v2839
        %v2867 = vunpack.c.l.b16 %v2840
        %v2868 = vunpack.c.h.b16 %v2840
        %v2869 = vunpack.c.l.b16 %v2841
        %v2870 = vunpack.c.h.b16 %v2841
        %v2871 = vunpack.c.l.b16 %v2842
        %v2872 = vunpack.c.h.b16 %v2842
        %v2873 = vunpack.c.l.b16 %v2843
        %v2874 = vunpack.c.h.b16 %v2843
        %v2875 = vunpack.c.l.b16 %v2844
        %v2876 = vunpack.c.h.b16 %v2844
        %v2877 = vunpack.c.l.b16 %v2845
        %v2878 = vunpack.c.h.b16 %v2845
        %v2879 = vunpack.c.l.b16 %v2846
        %v2880 = vunpack.c.h.b16 %v2846
        %v2881 = vunpack.c.l.b16 %v2847
        %v2882 = vunpack.c.h.b16 %v2847
        %v2883 = vunpack.c.l.b16 %v2848
        %v2884 = vunpack.c.h.b16 %v2848
        %v2885 = vpack.c.b16 %v2865, %v2863
        %v2886 = vpack.c.b16 %v2866, %v2864
        %v2887 = vpack.c.b16 %v2869, %v2867
        %v2888 = vpack.c.b16 %v2870, %v2868
        %v2889 = vpack.c.b16 %v2873, %v2871
        %v2890 = vpack.c.b16 %v2874, %v2872
        %v2891 = vpack.c.b16 %v2877, %v2875
        %v2892 = vpack.c.b16 %v2878, %v2876
        %v2893 = vpack.c.b16 %v2881, %v2879
        %v2894 = vpack.c.b16 %v2882, %v2880
        %v2895 = vpack.c.b16 %v2883, %v2883
        %v2896 = vpack.c.b16 %v2884, %v2884
        %v2908 = vsel %vm2565, %v2851, 0
        %v2911 = vsel %vm2581, %v2895, 0
        %v2914 = vsel %vm2581, %v2896, 0
        %2916 = vmatprep.subr.bf16.mxu0 %v2886
        %2917 = vmatpush1.bf16.msra.mxu0 %v2885
        %2918 = vmatprep.subr.bf16.mxu0 %v2888
        %2919 = vmatpush1.bf16.msra.mxu0 %v2887
        %2920 = vmatprep.subr.bf16.mxu0 %v2890
        %2921 = vmatpush1.bf16.msra.mxu0 %v2889
        %2922 = vmatprep.subr.bf16.mxu0 %v2892
        %2923 = vmatpush1.bf16.msra.mxu0 %v2891
        %2924 = vmatprep.subr.bf16.mxu0 %v2894
        %2925 = vmatpush1.bf16.msra.mxu0 %v2893
        %2926 = vmatprep.subr.bf16.mxu0 %v2914
        %2927 = vmatpush1.bf16.msra.mxu0 %v2911
        %2928 = vmatprep.subr.bf16.mxu0 0
        %2929 = vmatpush1.bf16.msra.mxu0 0
        %2930 = vmatprep.subr.bf16.mxu0 0
        %2931 = vmatpush1.bf16.msra.mxu0 0
        %2932 = vmatprep.subr.bf16.mxu0 0
        %2933 = vmatpush1.bf16.msra.mxu0 0
        %2934 = vmatprep.subr.bf16.mxu0 0
        %2935 = vmatpush1.bf16.msra.mxu0 0
        %2936 = vmatprep.subr.bf16.mxu0 0
        %2937 = vmatpush1.bf16.msra.mxu0 0
        %2938 = vmatprep.subr.bf16.mxu0 0
        %2939 = vmatpush1.bf16.msra.mxu0 0
        %2940 = vmatprep.subr.bf16.mxu0 0
        %2941 = vmatpush1.bf16.msra.mxu0 0
        %2942 = vmatprep.subr.bf16.mxu0 0
        %2943 = vmatpush1.bf16.msra.mxu0 0
        %2944 = vmatprep.subr.bf16.mxu0 0
        %2945 = vmatpush1.bf16.msra.mxu0 0
        %2946 = vmatprep.subr.bf16.mxu0 0
        %2947 = vmatpush1.bf16.msra.mxu0 0
        %2948 = vmatprep.mubr.bf16.mxu0 0
        %2949 = vmatmul.mubr.bf16.gmra.mrb[0].mxu0 %v2737
        %v2950 = vpop.f32.mrb[0].mxu0
        %v2951 = vadd.f32 0.0, %v2950
        %v2952 = vpop.f32.mrb[0].mxu0
        %v2953 = vadd.f32 0.0, %v2952
        %v2954 = vpop.f32.mrb[0].mxu0
        %v2955 = vadd.f32 0.0, %v2954
        %v2956 = vpop.f32.mrb[0].mxu0
        %v2957 = vadd.f32 0.0, %v2956
        %2958 = vmatprep.mubr.bf16.mxu0 0
        %2959 = vmatmul.mubr.bf16.gmra.mrb[0].mxu0 %v2740
        %v2960 = vpop.f32.mrb[0].mxu0
        %v2961 = vadd.f32 0.0, %v2960
        %v2962 = vpop.f32.mrb[0].mxu0
        %v2963 = vadd.f32 0.0, %v2962
        %v2964 = vpop.f32.mrb[0].mxu0
        %v2965 = vadd.f32 0.0, %v2964
        %v2966 = vpop.f32.mrb[0].mxu0
        %v2967 = vadd.f32 0.0, %v2966
        %2968 = vmatprep.mubr.bf16.mxu0 0
        %2969 = vmatmul.mubr.bf16.gmra.mrb[0].mxu0 %v2743
        %v2970 = vpop.f32.mrb[0].mxu0
        %v2971 = vadd.f32 0.0, %v2970
        %v2972 = vpop.f32.mrb[0].mxu0
        %v2973 = vadd.f32 0.0, %v2972
        %v2974 = vpop.f32.mrb[0].mxu0
        %v2975 = vadd.f32 0.0, %v2974
        %v2976 = vpop.f32.mrb[0].mxu0
        %v2977 = vadd.f32 0.0, %v2976
        %2978 = vmatprep.mubr.bf16.mxu0 0
        %2979 = vmatmul.mubr.bf16.gmra.mrb[0].mxu0 %v2746
        %v2980 = vpop.f32.mrb[0].mxu0
        %v2981 = vadd.f32 0.0, %v2980
        %v2982 = vpop.f32.mrb[0].mxu0
        %v2983 = vadd.f32 0.0, %v2982
        %v2984 = vpop.f32.mrb[0].mxu0
        %v2985 = vadd.f32 0.0, %v2984
        %v2986 = vpop.f32.mrb[0].mxu0
        %v2987 = vadd.f32 0.0, %v2986
        %2988 = vmatprep.mubr.bf16.mxu0 0
        %2989 = vmatmul.mubr.bf16.gmra.mrb[0].mxu0 %v2908
        %v2990 = vpop.f32.mrb[0].mxu0
        %v2991 = vadd.f32 0.0, %v2990
        %v2992 = vpop.f32.mrb[0].mxu0
        %v2993 = vadd.f32 0.0, %v2992
        %v2994 = vpop.f32.mrb[0].mxu0
        %v2995 = vadd.f32 0.0, %v2994
        %v2996 = vpop.f32.mrb[0].mxu0
        %v2997 = vadd.f32 0.0, %v2996
        %2998 = vdwg.mxu0
        %v2999 = vadd.f32 %v2789, %v2951
        %v3000 = vadd.f32 %v2791, %v2953
        %v3001 = vadd.f32 %v2793, %v2955
        %v3002 = vadd.f32 %v2795, %v2957
        %v3003 = vadd.f32 %v2799, %v2961
        %v3004 = vadd.f32 %v2801, %v2963
        %v3005 = vadd.f32 %v2803, %v2965
        %v3006 = vadd.f32 %v2805, %v2967
        %v3007 = vadd.f32 %v2809, %v2971
        %v3008 = vadd.f32 %v2811, %v2973
        %v3009 = vadd.f32 %v2813, %v2975
        %v3010 = vadd.f32 %v2815, %v2977
        %v3011 = vadd.f32 %v2819, %v2981
        %v3012 = vadd.f32 %v2821, %v2983
        %v3013 = vadd.f32 %v2823, %v2985
        %v3014 = vadd.f32 %v2825, %v2987
        %v3015 = vadd.f32 %v2829, %v2991
        %v3016 = vadd.f32 %v2831, %v2993
        %v3017 = vadd.f32 %v2833, %v2995
        %v3018 = vadd.f32 %v2835, %v2997
        %s3019 = scalar_lea.vmem %s3, 264
        %v3020 = vld [vmem:[%s3019] sm:$0xff]
        %v3021 = vld [vmem:[%s3019 + $0x8] sm:$0xff]
        %v3022 = vld [vmem:[%s3019 + $0x10] sm:$0xff]
        %v3023 = vld [vmem:[%s3019 + $0x18] sm:$0xff]
        %v3024 = vld [vmem:[%s3019 + $0x20] sm:$0xff]
        %v3025 = vld [vmem:[%s3019 + $0x28] sm:$0xff]
        %v3026 = vld [vmem:[%s3019 + $0x30] sm:$0xff]
        %v3027 = vld [vmem:[%s3019 + $0x38] sm:$0xff]
        %v3028 = vld [vmem:[%s3019 + $0x40] sm:$0xff]
        %v3029 = vld [vmem:[%s3019 + $0x48] sm:$0xff]
        %v3030 = vld [vmem:[%s3019 + $0x50] sm:$0x33]
        %v3032 = vunpack.c.l.b16 %v2460
        %v3033 = vpack.c.b16 %v3032, %v2850
        %v3045 = vunpack.c.l.b16 %v3020
        %v3046 = vunpack.c.h.b16 %v3020
        %v3047 = vunpack.c.l.b16 %v3021
        %v3048 = vunpack.c.h.b16 %v3021
        %v3049 = vunpack.c.l.b16 %v3022
        %v3050 = vunpack.c.h.b16 %v3022
        %v3051 = vunpack.c.l.b16 %v3023
        %v3052 = vunpack.c.h.b16 %v3023
        %v3053 = vunpack.c.l.b16 %v3024
        %v3054 = vunpack.c.h.b16 %v3024
        %v3055 = vunpack.c.l.b16 %v3025
        %v3056 = vunpack.c.h.b16 %v3025
        %v3057 = vunpack.c.l.b16 %v3026
        %v3058 = vunpack.c.h.b16 %v3026
        %v3059 = vunpack.c.l.b16 %v3027
        %v3060 = vunpack.c.h.b16 %v3027
        %v3061 = vunpack.c.l.b16 %v3028
        %v3062 = vunpack.c.h.b16 %v3028
        %v3063 = vunpack.c.l.b16 %v3029
        %v3064 = vunpack.c.h.b16 %v3029
        %v3065 = vunpack.c.l.b16 %v3030
        %v3066 = vunpack.c.h.b16 %v3030
        %v3067 = vpack.c.b16 %v3047, %v3045
        %v3068 = vpack.c.b16 %v3048, %v3046
        %v3069 = vpack.c.b16 %v3051, %v3049
        %v3070 = vpack.c.b16 %v3052, %v3050
        %v3071 = vpack.c.b16 %v3055, %v3053
        %v3072 = vpack.c.b16 %v3056, %v3054
        %v3073 = vpack.c.b16 %v3059, %v3057
        %v3074 = vpack.c.b16 %v3060, %v3058
        %v3075 = vpack.c.b16 %v3063, %v3061
        %v3076 = vpack.c.b16 %v3064, %v3062
        %v3077 = vpack.c.b16 %v3065, %v3065
        %v3078 = vpack.c.b16 %v3066, %v3066
        %v3090 = vsel %vm2565, %v3033, 0
        %v3093 = vsel %vm2581, %v3077, 0
        %v3096 = vsel %vm2581, %v3078, 0
        %3098 = vmatprep.subr.bf16.mxu0 %v3068
        %3099 = vmatpush1.bf16.msra.mxu0 %v3067
        %3100 = vmatprep.subr.bf16.mxu0 %v3070
        %3101 = vmatpush1.bf16.msra.mxu0 %v3069
        %3102 = vmatprep.subr.bf16.mxu0 %v3072
        %3103 = vmatpush1.bf16.msra.mxu0 %v3071
        %3104 = vmatprep.subr.bf16.mxu0 %v3074
        %3105 = vmatpush1.bf16.msra.mxu0 %v3073
        %3106 = vmatprep.subr.bf16.mxu0 %v3076
        %3107 = vmatpush1.bf16.msra.mxu0 %v3075
        %3108 = vmatprep.subr.bf16.mxu0 %v3096
        %3109 = vmatpush1.bf16.msra.mxu0 %v3093
        %3110 = vmatprep.subr.bf16.mxu0 0
        %3111 = vmatpush1.bf16.msra.mxu0 0
        %3112 = vmatprep.subr.bf16.mxu0 0
        %3113 = vmatpush1.bf16.msra.mxu0 0
        %3114 = vmatprep.subr.bf16.mxu0 0
        %3115 = vmatpush1.bf16.msra.mxu0 0
        %3116 = vmatprep.subr.bf16.mxu0 0
        %3117 = vmatpush1.bf16.msra.mxu0 0
        %3118 = vmatprep.subr.bf16.mxu0 0
        %3119 = vmatpush1.bf16.msra.mxu0 0
        %3120 = vmatprep.subr.bf16.mxu0 0
        %3121 = vmatpush1.bf16.msra.mxu0 0
        %3122 = vmatprep.subr.bf16.mxu0 0
        %3123 = vmatpush1.bf16.msra.mxu0 0
        %3124 = vmatprep.subr.bf16.mxu0 0
        %3125 = vmatpush1.bf16.msra.mxu0 0
        %3126 = vmatprep.subr.bf16.mxu0 0
        %3127 = vmatpush1.bf16.msra.mxu0 0
        %3128 = vmatprep.subr.bf16.mxu0 0
        %3129 = vmatpush1.bf16.msra.mxu0 0
        %3130 = vmatprep.mubr.bf16.mxu0 0
        %3131 = vmatmul.mubr.bf16.gmra.mrb[0].mxu0 %v2570
        %v3132 = vpop.f32.mrb[0].mxu0
        %v3133 = vadd.f32 0.0, %v3132
        %v3134 = vpop.f32.mrb[0].mxu0
        %v3135 = vadd.f32 0.0, %v3134
        %v3136 = vpop.f32.mrb[0].mxu0
        %v3137 = vadd.f32 0.0, %v3136
        %v3138 = vpop.f32.mrb[0].mxu0
        %v3139 = vadd.f32 0.0, %v3138
        %3140 = vmatprep.mubr.bf16.mxu0 0
        %3141 = vmatmul.mubr.bf16.gmra.mrb[0].mxu0 %v2573
        %v3142 = vpop.f32.mrb[0].mxu0
        %v3143 = vadd.f32 0.0, %v3142
        %v3144 = vpop.f32.mrb[0].mxu0
        %v3145 = vadd.f32 0.0, %v3144
        %v3146 = vpop.f32.mrb[0].mxu0
        %v3147 = vadd.f32 0.0, %v3146
        %v3148 = vpop.f32.mrb[0].mxu0
        %v3149 = vadd.f32 0.0, %v3148
        %3150 = vmatprep.mubr.bf16.mxu0 0
        %3151 = vmatmul.mubr.bf16.gmra.mrb[0].mxu0 %v2576
        %v3152 = vpop.f32.mrb[0].mxu0
        %v3153 = vadd.f32 0.0, %v3152
        %v3154 = vpop.f32.mrb[0].mxu0
        %v3155 = vadd.f32 0.0, %v3154
        %v3156 = vpop.f32.mrb[0].mxu0
        %v3157 = vadd.f32 0.0, %v3156
        %v3158 = vpop.f32.mrb[0].mxu0
        %v3159 = vadd.f32 0.0, %v3158
        %3160 = vmatprep.mubr.bf16.mxu0 0
        %3161 = vmatmul.mubr.bf16.gmra.mrb[0].mxu0 %v2579
        %v3162 = vpop.f32.mrb[0].mxu0
        %v3163 = vadd.f32 0.0, %v3162
        %v3164 = vpop.f32.mrb[0].mxu0
        %v3165 = vadd.f32 0.0, %v3164
        %v3166 = vpop.f32.mrb[0].mxu0
        %v3167 = vadd.f32 0.0, %v3166
        %v3168 = vpop.f32.mrb[0].mxu0
        %v3169 = vadd.f32 0.0, %v3168
        %3170 = vmatprep.mubr.bf16.mxu0 0
        %3171 = vmatmul.mubr.bf16.gmra.mrb[0].mxu0 %v3090
        %v3172 = vpop.f32.mrb[0].mxu0
        %v3173 = vadd.f32 0.0, %v3172
        %v3174 = vpop.f32.mrb[0].mxu0
        %v3175 = vadd.f32 0.0, %v3174
        %v3176 = vpop.f32.mrb[0].mxu0
        %v3177 = vadd.f32 0.0, %v3176
        %v3178 = vpop.f32.mrb[0].mxu0
        %v3179 = vadd.f32 0.0, %v3178
        %3180 = vdwg.mxu0
        %v3181 = vadd.f32 %v2999, %v3133
        %v3182 = vadd.f32 %v3000, %v3135
        %v3183 = vadd.f32 %v3001, %v3137
        %v3184 = vadd.f32 %v3002, %v3139
        %v3185 = vadd.f32 %v3003, %v3143
        %v3186 = vadd.f32 %v3004, %v3145
        %v3187 = vadd.f32 %v3005, %v3147
        %v3188 = vadd.f32 %v3006, %v3149
        %v3189 = vadd.f32 %v3007, %v3153
        %v3190 = vadd.f32 %v3008, %v3155
        %v3191 = vadd.f32 %v3009, %v3157
        %v3192 = vadd.f32 %v3010, %v3159
        %v3193 = vadd.f32 %v3011, %v3163
        %v3194 = vadd.f32 %v3012, %v3165
        %v3195 = vadd.f32 %v3013, %v3167
        %v3196 = vadd.f32 %v3014, %v3169
        %v3197 = vadd.f32 %v3015, %v3173
        %v3198 = vadd.f32 %v3016, %v3175
        %v3199 = vadd.f32 %v3017, %v3177
        %v3200 = vadd.f32 %v3018, %v3179
        %s3201 = scalar_lea.vmem %s3, 352
        %v3202 = vld [vmem:[%s3201] sm:$0xff]
        %v3203 = vld [vmem:[%s3201 + $0x8] sm:$0xff]
        %v3204 = vld [vmem:[%s3201 + $0x10] sm:$0xff]
        %v3205 = vld [vmem:[%s3201 + $0x18] sm:$0xff]
        %v3206 = vld [vmem:[%s3201 + $0x20] sm:$0xff]
        %v3207 = vld [vmem:[%s3201 + $0x28] sm:$0xff]
        %v3208 = vld [vmem:[%s3201 + $0x30] sm:$0xff]
        %v3209 = vld [vmem:[%s3201 + $0x38] sm:$0xff]
        %v3210 = vld [vmem:[%s3201 + $0x40] sm:$0xff]
        %v3211 = vld [vmem:[%s3201 + $0x48] sm:$0xff]
        %v3212 = vld [vmem:[%s3201 + $0x50] sm:$0x33]
        %v3214 = vunpack.c.l.b16 %v2461
        %v3215 = vpack.c.b16 %v3214, %v3032
        %v3227 = vunpack.c.l.b16 %v3202
        %v3228 = vunpack.c.h.b16 %v3202
        %v3229 = vunpack.c.l.b16 %v3203
        %v3230 = vunpack.c.h.b16 %v3203
        %v3231 = vunpack.c.l.b16 %v3204
        %v3232 = vunpack.c.h.b16 %v3204
        %v3233 = vunpack.c.l.b16 %v3205
        %v3234 = vunpack.c.h.b16 %v3205
        %v3235 = vunpack.c.l.b16 %v3206
        %v3236 = vunpack.c.h.b16 %v3206
        %v3237 = vunpack.c.l.b16 %v3207
        %v3238 = vunpack.c.h.b16 %v3207
        %v3239 = vunpack.c.l.b16 %v3208
        %v3240 = vunpack.c.h.b16 %v3208
        %v3241 = vunpack.c.l.b16 %v3209
        %v3242 = vunpack.c.h.b16 %v3209
        %v3243 = vunpack.c.l.b16 %v3210
        %v3244 = vunpack.c.h.b16 %v3210
        %v3245 = vunpack.c.l.b16 %v3211
        %v3246 = vunpack.c.h.b16 %v3211
        %v3247 = vunpack.c.l.b16 %v3212
        %v3248 = vunpack.c.h.b16 %v3212
        %v3249 = vpack.c.b16 %v3229, %v3227
        %v3250 = vpack.c.b16 %v3230, %v3228
        %v3251 = vpack.c.b16 %v3233, %v3231
        %v3252 = vpack.c.b16 %v3234, %v3232
        %v3253 = vpack.c.b16 %v3237, %v3235
        %v3254 = vpack.c.b16 %v3238, %v3236
        %v3255 = vpack.c.b16 %v3241, %v3239
        %v3256 = vpack.c.b16 %v3242, %v3240
        %v3257 = vpack.c.b16 %v3245, %v3243
        %v3258 = vpack.c.b16 %v3246, %v3244
        %v3259 = vpack.c.b16 %v3247, %v3247
        %v3260 = vpack.c.b16 %v3248, %v3248
        %v3272 = vsel %vm2565, %v3215, 0
        %v3275 = vsel %vm2581, %v3259, 0
        %v3278 = vsel %vm2581, %v3260, 0
        %3280 = vmatprep.subr.bf16.mxu0 %v3250
        %3281 = vmatpush1.bf16.msra.mxu0 %v3249
        %3282 = vmatprep.subr.bf16.mxu0 %v3252
        %3283 = vmatpush1.bf16.msra.mxu0 %v3251
        %3284 = vmatprep.subr.bf16.mxu0 %v3254
        %3285 = vmatpush1.bf16.msra.mxu0 %v3253
        %3286 = vmatprep.subr.bf16.mxu0 %v3256
        %3287 = vmatpush1.bf16.msra.mxu0 %v3255
        %3288 = vmatprep.subr.bf16.mxu0 %v3258
        %3289 = vmatpush1.bf16.msra.mxu0 %v3257
        %3290 = vmatprep.subr.bf16.mxu0 %v3278
        %3291 = vmatpush1.bf16.msra.mxu0 %v3275
        %3292 = vmatprep.subr.bf16.mxu0 0
        %3293 = vmatpush1.bf16.msra.mxu0 0
        %3294 = vmatprep.subr.bf16.mxu0 0
        %3295 = vmatpush1.bf16.msra.mxu0 0
        %3296 = vmatprep.subr.bf16.mxu0 0
        %3297 = vmatpush1.bf16.msra.mxu0 0
        %3298 = vmatprep.subr.bf16.mxu0 0
        %3299 = vmatpush1.bf16.msra.mxu0 0
        %3300 = vmatprep.subr.bf16.mxu0 0
        %3301 = vmatpush1.bf16.msra.mxu0 0
        %3302 = vmatprep.subr.bf16.mxu0 0
        %3303 = vmatpush1.bf16.msra.mxu0 0
        %3304 = vmatprep.subr.bf16.mxu0 0
        %3305 = vmatpush1.bf16.msra.mxu0 0
        %3306 = vmatprep.subr.bf16.mxu0 0
        %3307 = vmatpush1.bf16.msra.mxu0 0
        %3308 = vmatprep.subr.bf16.mxu0 0
        %3309 = vmatpush1.bf16.msra.mxu0 0
        %3310 = vmatprep.subr.bf16.mxu0 0
        %3311 = vmatpush1.bf16.msra.mxu0 0
        %3312 = vmatprep.mubr.bf16.mxu0 0
        %3313 = vmatmul.mubr.bf16.gmra.mrb[0].mxu0 %v2740
        %v3314 = vpop.f32.mrb[0].mxu0
        %v3315 = vadd.f32 0.0, %v3314
        %v3316 = vpop.f32.mrb[0].mxu0
        %v3317 = vadd.f32 0.0, %v3316
        %v3318 = vpop.f32.mrb[0].mxu0
        %v3319 = vadd.f32 0.0, %v3318
        %v3320 = vpop.f32.mrb[0].mxu0
        %v3321 = vadd.f32 0.0, %v3320
        %3322 = vmatprep.mubr.bf16.mxu0 0
        %3323 = vmatmul.mubr.bf16.gmra.mrb[0].mxu0 %v2743
        %v3324 = vpop.f32.mrb[0].mxu0
        %v3325 = vadd.f32 0.0, %v3324
        %v3326 = vpop.f32.mrb[0].mxu0
        %v3327 = vadd.f32 0.0, %v3326
        %v3328 = vpop.f32.mrb[0].mxu0
        %v3329 = vadd.f32 0.0, %v3328
        %v3330 = vpop.f32.mrb[0].mxu0
        %v3331 = vadd.f32 0.0, %v3330
        %3332 = vmatprep.mubr.bf16.mxu0 0
        %3333 = vmatmul.mubr.bf16.gmra.mrb[0].mxu0 %v2746
        %v3334 = vpop.f32.mrb[0].mxu0
        %v3335 = vadd.f32 0.0, %v3334
        %v3336 = vpop.f32.mrb[0].mxu0
        %v3337 = vadd.f32 0.0, %v3336
        %v3338 = vpop.f32.mrb[0].mxu0
        %v3339 = vadd.f32 0.0, %v3338
        %v3340 = vpop.f32.mrb[0].mxu0
        %v3341 = vadd.f32 0.0, %v3340
        %3342 = vmatprep.mubr.bf16.mxu0 0
        %3343 = vmatmul.mubr.bf16.gmra.mrb[0].mxu0 %v2908
        %v3344 = vpop.f32.mrb[0].mxu0
        %v3345 = vadd.f32 0.0, %v3344
        %v3346 = vpop.f32.mrb[0].mxu0
        %v3347 = vadd.f32 0.0, %v3346
        %v3348 = vpop.f32.mrb[0].mxu0
        %v3349 = vadd.f32 0.0, %v3348
        %v3350 = vpop.f32.mrb[0].mxu0
        %v3351 = vadd.f32 0.0, %v3350
        %3352 = vmatprep.mubr.bf16.mxu0 0
        %3353 = vmatmul.mubr.bf16.gmra.mrb[0].mxu0 %v3272
        %v3354 = vpop.f32.mrb[0].mxu0
        %v3355 = vadd.f32 0.0, %v3354
        %v3356 = vpop.f32.mrb[0].mxu0
        %v3357 = vadd.f32 0.0, %v3356
        %v3358 = vpop.f32.mrb[0].mxu0
        %v3359 = vadd.f32 0.0, %v3358
        %v3360 = vpop.f32.mrb[0].mxu0
        %v3361 = vadd.f32 0.0, %v3360
        %3362 = vdwg.mxu0
        %v3363 = vadd.f32 %v3181, %v3315
        %v3364 = vadd.f32 %v3182, %v3317
        %v3365 = vadd.f32 %v3183, %v3319
        %v3366 = vadd.f32 %v3184, %v3321
        %v3367 = vadd.f32 %v3185, %v3325
        %v3368 = vadd.f32 %v3186, %v3327
        %v3369 = vadd.f32 %v3187, %v3329
        %v3370 = vadd.f32 %v3188, %v3331
        %v3371 = vadd.f32 %v3189, %v3335
        %v3372 = vadd.f32 %v3190, %v3337
        %v3373 = vadd.f32 %v3191, %v3339
        %v3374 = vadd.f32 %v3192, %v3341
        %v3375 = vadd.f32 %v3193, %v3345
        %v3376 = vadd.f32 %v3194, %v3347
        %v3377 = vadd.f32 %v3195, %v3349
        %v3378 = vadd.f32 %v3196, %v3351
        %v3379 = vadd.f32 %v3197, %v3355
        %v3380 = vadd.f32 %v3198, %v3357
        %v3381 = vadd.f32 %v3199, %v3359
        %v3382 = vadd.f32 %v3200, %v3361
        %v3383 = vld [vmem:[%s4] sm:$0x3]
        %v3385 = vlaneseq
        %v3386 = vshrl.u32 %v3385, 7
        %v3387 = vsub.s32 0, %v3386
        %v3388 = vrot.slane %v3383, %v3387
        %v3389 = vlaneseq
        %v3390 = vshrl.u32 %v3389, 7
        %v3391 = vsub.s32 1, %v3390
        %v3392 = vrot.slane %v3383, %v3391
        %v3395 = vadd.f32 %v3363, %v3388
        %v3396 = vadd.f32 %v3364, %v3392
        %v3397 = vadd.f32 %v3365, %v3388
        %v3398 = vadd.f32 %v3366, %v3392
        %v3399 = vadd.f32 %v3367, %v3388
        %v3400 = vadd.f32 %v3368, %v3392
        %v3401 = vadd.f32 %v3369, %v3388
        %v3402 = vadd.f32 %v3370, %v3392
        %v3403 = vadd.f32 %v3371, %v3388
        %v3404 = vadd.f32 %v3372, %v3392
        %v3405 = vadd.f32 %v3373, %v3388
        %v3406 = vadd.f32 %v3374, %v3392
        %v3407 = vadd.f32 %v3375, %v3388
        %v3408 = vadd.f32 %v3376, %v3392
        %v3409 = vadd.f32 %v3377, %v3388
        %v3410 = vadd.f32 %v3378, %v3392
        %v3411 = vadd.f32 %v3379, %v3388
        %v3412 = vadd.f32 %v3380, %v3392
        %v3413 = vadd.f32 %v3381, %v3388
        %v3414 = vadd.f32 %v3382, %v3392
        %v3415 = vmax.f32 %v3395, 0.0
        %v3416 = vmax.f32 %v3396, 0.0
        %v3417 = vmax.f32 %v3397, 0.0
        %v3418 = vmax.f32 %v3398, 0.0
        %v3419 = vmax.f32 %v3399, 0.0
        %v3420 = vmax.f32 %v3400, 0.0
        %v3421 = vmax.f32 %v3401, 0.0
        %v3422 = vmax.f32 %v3402, 0.0
        %v3423 = vmax.f32 %v3403, 0.0
        %v3424 = vmax.f32 %v3404, 0.0
        %v3425 = vmax.f32 %v3405, 0.0
        %v3426 = vmax.f32 %v3406, 0.0
        %v3427 = vmax.f32 %v3407, 0.0
        %v3428 = vmax.f32 %v3408, 0.0
        %v3429 = vmax.f32 %v3409, 0.0
        %v3430 = vmax.f32 %v3410, 0.0
        %v3431 = vmax.f32 %v3411, 0.0
        %v3432 = vmax.f32 %v3412, 0.0
        %v3433 = vmax.f32 %v3413, 0.0
        %v3434 = vmax.f32 %v3414, 0.0
        %v3435 = vmax.f32 %v3415, %v3417
        %v3436 = vmax.f32 %v3416, %v3418
        %v3437 = vmax.f32 %v3419, %v3421
        %v3438 = vmax.f32 %v3420, %v3422
        %v3439 = vmax.f32 %v3423, %v3425
        %v3440 = vmax.f32 %v3424, %v3426
        %v3441 = vmax.f32 %v3427, %v3429
        %v3442 = vmax.f32 %v3428, %v3430
        %v3443 = vmax.f32 %v3431, %v3433
        %v3444 = vmax.f32 %v3432, %v3434
        %3455 = vrot.lane.b32.xlu0 %v3435, 48
        %v3456 = vpop.permute.xlu0 %3455
        %3457 = vrot.lane.b32.xlu0 %v3436, 48
        %v3458 = vpop.permute.xlu0 %3457
        %3459 = vrot.lane.b32.xlu0 %v3437, 48
        %v3460 = vpop.permute.xlu0 %3459
        %3461 = vrot.lane.b32.xlu0 %v3438, 48
        %v3462 = vpop.permute.xlu0 %3461
        %3463 = vrot.lane.b32.xlu0 %v3439, 48
        %v3464 = vpop.permute.xlu0 %3463
        %3465 = vrot.lane.b32.xlu0 %v3440, 48
        %v3466 = vpop.permute.xlu0 %3465
        %3467 = vrot.lane.b32.xlu0 %v3441, 48
        %v3468 = vpop.permute.xlu0 %3467
        %3469 = vrot.lane.b32.xlu0 %v3442, 48
        %v3470 = vpop.permute.xlu0 %3469
        %3471 = vrot.lane.b32.xlu0 %v3443, 48
        %v3472 = vpop.permute.xlu0 %3471
        %3473 = vrot.lane.b32.xlu0 %v3444, 48
        %v3474 = vpop.permute.xlu0 %3473
        %vm3475 = vcmask 392192
        %v3476 = vsel %vm3475, %v3456, %v3458
        %v3477 = vsel %vm3475, %v3460, %v3462
        %v3478 = vsel %vm3475, %v3464, %v3466
        %v3479 = vsel %vm3475, %v3468, %v3470
        %v3480 = vsel %vm3475, %v3472, %v3474
        %v3486 = vmax.f32 %v3435, %v3476
        %v3487 = vmax.f32 %v3437, %v3477
        %v3488 = vmax.f32 %v3439, %v3478
        %v3489 = vmax.f32 %v3441, %v3479
        %v3490 = vmax.f32 %v3443, %v3480
        %v3491 = vpack.c.bf16 %v3486, %v3486
        %v3492 = vpack.c.bf16 %v3487, %v3487
        %v3493 = vpack.c.bf16 %v3488, %v3488
        %v3494 = vpack.c.bf16 %v3489, %v3489
        %v3495 = vpack.c.bf16 %v3490, %v3490
        %3497 = vrot.lane.b32.xlu0 %v3492, 80
        %v3498 = vpop.permute.xlu0 %3497
        %3500 = vrot.lane.b32.xlu0 %v3493, 32
        %v3501 = vpop.permute.xlu0 %3500
        %3503 = vrot.lane.b32.xlu0 %v3494, 112
        %v3504 = vpop.permute.xlu0 %3503
        %3506 = vrot.lane.b32.xlu0 %v3495, 64
        %v3507 = vpop.permute.xlu0 %3506
        %vm3508 = vcmask 654336
        %v3511 = vsel %vm3508, %v3491, %v3498
        %vm3513 = vcmask 261120
        %v3515 = vsel %vm3513, %v3498, %v3501
        %vm3516 = vcmask 916480
        %v3518 = vsel %vm3516, %v3515, %v3504
        %vm3520 = vcmask 523264
        %v3522 = vsel %vm3520, %v3504, %v3507
        %v3524 = vld [vmem:[%s5] sm:$0xf]
        %v3525 = vld [vmem:[%s5 + $0x4] sm:$0xf]
        %v3526 = vld [vmem:[%s5 + $0x8] sm:$0xf]
        %v3527 = vld [vmem:[%s5 + $0xc] sm:$0xf]
        %v3528 = vld [vmem:[%s5 + $0x10] sm:$0xf]
        %v3529 = vld [vmem:[%s5 + $0x14] sm:$0xf]
        %v3530 = vld [vmem:[%s5 + $0x18] sm:$0xf]
        %v3531 = vld [vmem:[%s5 + $0x1c] sm:$0xf]
        %v3532 = vld [vmem:[%s5 + $0x20] sm:$0xf]
        %v3533 = vld [vmem:[%s5 + $0x24] sm:$0xf]
        %v3534 = vld [vmem:[%s5 + $0x28] sm:$0xf]
        %v3535 = vld [vmem:[%s5 + $0x2c] sm:$0xf]
        %v3536 = vld [vmem:[%s5 + $0x30] sm:$0xf]
        %v3537 = vld [vmem:[%s5 + $0x34] sm:$0xf]
        %v3538 = vld [vmem:[%s5 + $0x38] sm:$0xf]
        %v3539 = vld [vmem:[%s5 + $0x3c] sm:$0xf]
        %v3540 = vld [vmem:[%s5 + $0x40] sm:$0xf]
        %v3541 = vld [vmem:[%s5 + $0x44] sm:$0xf]
        %v3542 = vld [vmem:[%s5 + $0x48] sm:$0xf]
        %v3543 = vld [vmem:[%s5 + $0x4c] sm:$0xf]
        %v3544 = vld [vmem:[%s5 + $0x50] sm:$0xf]
        %v3545 = vld [vmem:[%s5 + $0x54] sm:$0xf]
        %v3546 = vld [vmem:[%s5 + $0x58] sm:$0xf]
        %v3547 = vld [vmem:[%s5 + $0x5c] sm:$0xf]
        %v3548 = vld [vmem:[%s5 + $0x60] sm:$0xf]
        %v3549 = vld [vmem:[%s5 + $0x64] sm:$0xf]
        %v3550 = vld [vmem:[%s5 + $0x68] sm:$0xf]
        %v3551 = vld [vmem:[%s5 + $0x6c] sm:$0xf]
        %v3552 = vld [vmem:[%s5 + $0x70] sm:$0xf]
        %v3553 = vld [vmem:[%s5 + $0x74] sm:$0xf]
        %v3554 = vld [vmem:[%s5 + $0x78] sm:$0xf]
        %v3555 = vld [vmem:[%s5 + $0x7c] sm:$0xf]
        %v3556 = vld [vmem:[%s5 + $0x80] sm:$0xf]
        %v3557 = vld [vmem:[%s5 + $0x84] sm:$0xf]
        %v3558 = vld [vmem:[%s5 + $0x88] sm:$0xf]
        %v3559 = vld [vmem:[%s5 + $0x8c] sm:$0xf]
        %v3560 = vld [vmem:[%s5 + $0x90] sm:$0xf]
        %v3561 = vld [vmem:[%s5 + $0x94] sm:$0xf]
        %v3562 = vld [vmem:[%s5 + $0x98] sm:$0xf]
        %v3563 = vld [vmem:[%s5 + $0x9c] sm:$0xf]
        %v3564 = vld [vmem:[%s5 + $0xa0] sm:$0xf]
        %v3565 = vld [vmem:[%s5 + $0xa4] sm:$0xf]
        %v3566 = vld [vmem:[%s5 + $0xa8] sm:$0xf]
        %v3567 = vld [vmem:[%s5 + $0xac] sm:$0xf]
        %v3568 = vld [vmem:[%s5 + $0xb0] sm:$0xf]
        %v3569 = vld [vmem:[%s5 + $0xb4] sm:$0xf]
        %v3570 = vld [vmem:[%s5 + $0xb8] sm:$0xf]
        %v3571 = vld [vmem:[%s5 + $0xbc] sm:$0xf]
        %v3572 = vld [vmem:[%s5 + $0xc0] sm:$0xf]
        %v3573 = vld [vmem:[%s5 + $0xc4] sm:$0xf]
        %v3574 = vld [vmem:[%s6] sm:$0x1]
        %v3576 = vlaneseq
        %v3577 = vshrl.u32 %v3576, 7
        %v3578 = vsub.s32 0, %v3577
        %v3579 = vrot.slane %v3574, %v3578
        %v3631 = vunpack.c.l.b16 %v3524
        %v3632 = vunpack.c.l.b16 %v3525
        %v3633 = vunpack.c.l.b16 %v3526
        %v3634 = vunpack.c.l.b16 %v3527
        %v3635 = vunpack.c.l.b16 %v3528
        %v3636 = vunpack.c.l.b16 %v3529
        %v3637 = vunpack.c.l.b16 %v3530
        %v3638 = vunpack.c.l.b16 %v3531
        %v3639 = vunpack.c.l.b16 %v3532
        %v3640 = vunpack.c.l.b16 %v3533
        %v3641 = vunpack.c.l.b16 %v3534
        %v3642 = vunpack.c.l.b16 %v3535
        %v3643 = vunpack.c.l.b16 %v3536
        %v3644 = vunpack.c.l.b16 %v3537
        %v3645 = vunpack.c.l.b16 %v3538
        %v3646 = vunpack.c.l.b16 %v3539
        %v3647 = vunpack.c.l.b16 %v3540
        %v3648 = vunpack.c.l.b16 %v3541
        %v3649 = vunpack.c.l.b16 %v3542
        %v3650 = vunpack.c.l.b16 %v3543
        %v3651 = vunpack.c.l.b16 %v3544
        %v3652 = vunpack.c.l.b16 %v3545
        %v3653 = vunpack.c.l.b16 %v3546
        %v3654 = vunpack.c.l.b16 %v3547
        %v3655 = vunpack.c.l.b16 %v3548
        %v3656 = vunpack.c.l.b16 %v3549
        %v3657 = vunpack.c.l.b16 %v3550
        %v3658 = vunpack.c.l.b16 %v3551
        %v3659 = vunpack.c.l.b16 %v3552
        %v3660 = vunpack.c.l.b16 %v3553
        %v3661 = vunpack.c.l.b16 %v3554
        %v3662 = vunpack.c.l.b16 %v3555
        %v3663 = vunpack.c.l.b16 %v3556
        %v3664 = vunpack.c.l.b16 %v3557
        %v3665 = vunpack.c.l.b16 %v3558
        %v3666 = vunpack.c.l.b16 %v3559
        %v3667 = vunpack.c.l.b16 %v3560
        %v3668 = vunpack.c.l.b16 %v3561
        %v3669 = vunpack.c.l.b16 %v3562
        %v3670 = vunpack.c.l.b16 %v3563
        %v3671 = vunpack.c.l.b16 %v3564
        %v3672 = vunpack.c.l.b16 %v3565
        %v3673 = vunpack.c.l.b16 %v3566
        %v3674 = vunpack.c.l.b16 %v3567
        %v3675 = vunpack.c.l.b16 %v3568
        %v3676 = vunpack.c.l.b16 %v3569
        %v3677 = vunpack.c.l.b16 %v3570
        %v3678 = vunpack.c.l.b16 %v3571
        %v3679 = vunpack.c.l.b16 %v3572
        %v3680 = vunpack.c.l.b16 %v3573
        %v3681 = vpack.c.b16 %v3632, %v3631
        %v3682 = vpack.c.b16 %v3634, %v3633
        %v3683 = vpack.c.b16 %v3636, %v3635
        %v3684 = vpack.c.b16 %v3638, %v3637
        %v3685 = vpack.c.b16 %v3640, %v3639
        %v3686 = vpack.c.b16 %v3642, %v3641
        %v3687 = vpack.c.b16 %v3644, %v3643
        %v3688 = vpack.c.b16 %v3646, %v3645
        %v3689 = vpack.c.b16 %v3648, %v3647
        %v3690 = vpack.c.b16 %v3650, %v3649
        %v3691 = vpack.c.b16 %v3652, %v3651
        %v3692 = vpack.c.b16 %v3654, %v3653
        %v3693 = vpack.c.b16 %v3656, %v3655
        %v3694 = vpack.c.b16 %v3658, %v3657
        %v3695 = vpack.c.b16 %v3660, %v3659
        %v3696 = vpack.c.b16 %v3662, %v3661
        %v3697 = vpack.c.b16 %v3664, %v3663
        %v3698 = vpack.c.b16 %v3666, %v3665
        %v3699 = vpack.c.b16 %v3668, %v3667
        %v3700 = vpack.c.b16 %v3670, %v3669
        %v3701 = vpack.c.b16 %v3672, %v3671
        %v3702 = vpack.c.b16 %v3674, %v3673
        %v3703 = vpack.c.b16 %v3676, %v3675
        %v3704 = vpack.c.b16 %v3678, %v3677
        %v3705 = vpack.c.b16 %v3680, %v3679
        %vm3731 = vcmask 130048
        %v3732 = vsel %vm3731, %v3507, 0
        %3734 = vmatprep.subr.bf16.mxu0 0
        %3735 = vmatpush1.bf16.msra.mxu0 %v3681
        %3736 = vmatprep.subr.bf16.mxu0 0
        %3737 = vmatpush1.bf16.msra.mxu0 %v3682
        %3738 = vmatprep.subr.bf16.mxu0 0
        %3739 = vmatpush1.bf16.msra.mxu0 %v3683
        %3740 = vmatprep.subr.bf16.mxu0 0
        %3741 = vmatpush1.bf16.msra.mxu0 %v3684
        %3742 = vmatprep.subr.bf16.mxu0 0
        %3743 = vmatpush1.bf16.msra.mxu0 %v3685
        %3744 = vmatprep.subr.bf16.mxu0 0
        %3745 = vmatpush1.bf16.msra.mxu0 %v3686
        %3746 = vmatprep.subr.bf16.mxu0 0
        %3747 = vmatpush1.bf16.msra.mxu0 %v3687
        %3748 = vmatprep.subr.bf16.mxu0 0
        %3749 = vmatpush1.bf16.msra.mxu0 %v3688
        %3750 = vmatprep.subr.bf16.mxu0 0
        %3751 = vmatpush1.bf16.msra.mxu0 %v3689
        %3752 = vmatprep.subr.bf16.mxu0 0
        %3753 = vmatpush1.bf16.msra.mxu0 %v3690
        %3754 = vmatprep.subr.bf16.mxu0 0
        %3755 = vmatpush1.bf16.msra.mxu0 %v3691
        %3756 = vmatprep.subr.bf16.mxu0 0
        %3757 = vmatpush1.bf16.msra.mxu0 %v3692
        %3758 = vmatprep.subr.bf16.mxu0 0
        %3759 = vmatpush1.bf16.msra.mxu0 %v3693
        %3760 = vmatprep.subr.bf16.mxu0 0
        %3761 = vmatpush1.bf16.msra.mxu0 %v3694
        %3762 = vmatprep.subr.bf16.mxu0 0
        %3763 = vmatpush1.bf16.msra.mxu0 %v3695
        %3764 = vmatprep.subr.bf16.mxu0 0
        %3765 = vmatpush1.bf16.msra.mxu0 %v3696
        %3766 = vmatprep.mubr.bf16.mxu0 %v3518
        %3767 = vmatmul.mubr.bf16.gmra.mrb[0].mxu0 %v3511
        %v3768 = vpop.f32.mrb[0].mxu0
        %v3769 = vadd.f32 %v3579, %v3768
        %v3770 = vpop.f32.mrb[0].mxu0
        %v3771 = vpop.f32.mrb[0].mxu0
        %v3772 = vpop.f32.mrb[0].mxu0
        %3773 = vdwg.mxu0
        %3774 = vmatprep.subr.bf16.mxu0 0
        %3775 = vmatpush1.bf16.msra.mxu0 %v3697
        %3776 = vmatprep.subr.bf16.mxu0 0
        %3777 = vmatpush1.bf16.msra.mxu0 %v3698
        %3778 = vmatprep.subr.bf16.mxu0 0
        %3779 = vmatpush1.bf16.msra.mxu0 %v3699
        %3780 = vmatprep.subr.bf16.mxu0 0
        %3781 = vmatpush1.bf16.msra.mxu0 %v3700
        %3782 = vmatprep.subr.bf16.mxu0 0
        %3783 = vmatpush1.bf16.msra.mxu0 %v3701
        %3784 = vmatprep.subr.bf16.mxu0 0
        %3785 = vmatpush1.bf16.msra.mxu0 %v3702
        %3786 = vmatprep.subr.bf16.mxu0 0
        %3787 = vmatpush1.bf16.msra.mxu0 %v3703
        %3788 = vmatprep.subr.bf16.mxu0 0
        %3789 = vmatpush1.bf16.msra.mxu0 %v3704
        %3790 = vmatprep.subr.bf16.mxu0 0
        %3791 = vmatpush1.bf16.msra.mxu0 %v3705
        %3792 = vmatprep.subr.bf16.mxu0 0
        %3793 = vmatpush1.bf16.msra.mxu0 0
        %3794 = vmatprep.subr.bf16.mxu0 0
        %3795 = vmatpush1.bf16.msra.mxu0 0
        %3796 = vmatprep.subr.bf16.mxu0 0
        %3797 = vmatpush1.bf16.msra.mxu0 0
        %3798 = vmatprep.subr.bf16.mxu0 0
        %3799 = vmatpush1.bf16.msra.mxu0 0
        %3800 = vmatprep.subr.bf16.mxu0 0
        %3801 = vmatpush1.bf16.msra.mxu0 0
        %3802 = vmatprep.subr.bf16.mxu0 0
        %3803 = vmatpush1.bf16.msra.mxu0 0
        %3804 = vmatprep.subr.bf16.mxu0 0
        %3805 = vmatpush1.bf16.msra.mxu0 0
        %3806 = vmatprep.mubr.bf16.mxu0 %v3732
        %3807 = vmatmul.mubr.bf16.gmra.mrb[0].mxu0 %v3522
        %v3808 = vpop.f32.mrb[0].mxu0
        %v3809 = vadd.f32 %v3769, %v3808
        %v3810 = vpop.f32.mrb[0].mxu0
        %v3811 = vpop.f32.mrb[0].mxu0
        %v3812 = vpop.f32.mrb[0].mxu0
        %3813 = vdwg.mxu0
        %v3814 = vmax.f32 %v3809, 0.0
        %v3815 = vpack.c.bf16 %v3814, %v3814
        %v3816 = vld [vmem:[%s7] sm:$0xf]
        %v3817 = vld [vmem:[%s7 + $0x4] sm:$0xf]
        %v3818 = vld [vmem:[%s7 + $0x8] sm:$0xf]
        %v3819 = vld [vmem:[%s7 + $0xc] sm:$0xf]
        %v3820 = vld [vmem:[%s7 + $0x10] sm:$0xf]
        %v3821 = vld [vmem:[%s7 + $0x14] sm:$0xf]
        %v3822 = vld [vmem:[%s7 + $0x18] sm:$0xf]
        %v3823 = vld [vmem:[%s7 + $0x1c] sm:$0xf]
        %v3824 = vld [vmem:[%s7 + $0x20] sm:$0xf]
        %v3825 = vld [vmem:[%s7 + $0x24] sm:$0xf]
        %v3826 = vld [vmem:[%s7 + $0x28] sm:$0xf]
        %v3827 = vld [vmem:[%s7 + $0x2c] sm:$0xf]
        %v3828 = vld [vmem:[%s7 + $0x30] sm:$0xf]
        %v3829 = vld [vmem:[%s7 + $0x34] sm:$0xf]
        %v3830 = vld [vmem:[%s7 + $0x38] sm:$0xf]
        %v3831 = vld [vmem:[%s8] sm:$0x1]
        %v3833 = vlaneseq
        %v3834 = vshrl.u32 %v3833, 7
        %v3835 = vsub.s32 0, %v3834
        %v3836 = vrot.slane %v3831, %v3835
        %v3853 = vunpack.c.l.b16 %v3816
        %v3854 = vunpack.c.l.b16 %v3817
        %v3855 = vunpack.c.l.b16 %v3818
        %v3856 = vunpack.c.l.b16 %v3819
        %v3857 = vunpack.c.l.b16 %v3820
        %v3858 = vunpack.c.l.b16 %v3821
        %v3859 = vunpack.c.l.b16 %v3822
        %v3860 = vunpack.c.l.b16 %v3823
        %v3861 = vunpack.c.l.b16 %v3824
        %v3862 = vunpack.c.l.b16 %v3825
        %v3863 = vunpack.c.l.b16 %v3826
        %v3864 = vunpack.c.l.b16 %v3827
        %v3865 = vunpack.c.l.b16 %v3828
        %v3866 = vunpack.c.l.b16 %v3829
        %v3867 = vunpack.c.l.b16 %v3830
        %v3868 = vpack.c.b16 %v3854, %v3853
        %v3869 = vpack.c.b16 %v3856, %v3855
        %v3870 = vpack.c.b16 %v3858, %v3857
        %v3871 = vpack.c.b16 %v3860, %v3859
        %v3872 = vpack.c.b16 %v3862, %v3861
        %v3873 = vpack.c.b16 %v3864, %v3863
        %v3874 = vpack.c.b16 %v3866, %v3865
        %v3875 = vpack.c.b16 %v3867, %v3867
        %vm3883 = vcmask 982016
        %v3885 = vsel %vm3883, %v3815, 0
        %vm3887 = vcmask 1043456
        %v3889 = vsel %vm3887, %v3875, 0
        %3891 = vmatprep.subr.bf16.mxu0 0
        %3892 = vmatpush1.bf16.msra.mxu0 %v3868
        %3893 = vmatprep.subr.bf16.mxu0 0
        %3894 = vmatpush1.bf16.msra.mxu0 %v3869
        %3895 = vmatprep.subr.bf16.mxu0 0
        %3896 = vmatpush1.bf16.msra.mxu0 %v3870
        %3897 = vmatprep.subr.bf16.mxu0 0
        %3898 = vmatpush1.bf16.msra.mxu0 %v3871
        %3899 = vmatprep.subr.bf16.mxu0 0
        %3900 = vmatpush1.bf16.msra.mxu0 %v3872
        %3901 = vmatprep.subr.bf16.mxu0 0
        %3902 = vmatpush1.bf16.msra.mxu0 %v3873
        %3903 = vmatprep.subr.bf16.mxu0 0
        %3904 = vmatpush1.bf16.msra.mxu0 %v3874
        %3905 = vmatprep.subr.bf16.mxu0 0
        %3906 = vmatpush1.bf16.msra.mxu0 %v3889
        %3907 = vmatprep.subr.bf16.mxu0 0
        %3908 = vmatpush1.bf16.msra.mxu0 0
        %3909 = vmatprep.subr.bf16.mxu0 0
        %3910 = vmatpush1.bf16.msra.mxu0 0
        %3911 = vmatprep.subr.bf16.mxu0 0
        %3912 = vmatpush1.bf16.msra.mxu0 0
        %3913 = vmatprep.subr.bf16.mxu0 0
        %3914 = vmatpush1.bf16.msra.mxu0 0
        %3915 = vmatprep.subr.bf16.mxu0 0
        %3916 = vmatpush1.bf16.msra.mxu0 0
        %3917 = vmatprep.subr.bf16.mxu0 0
        %3918 = vmatpush1.bf16.msra.mxu0 0
        %3919 = vmatprep.subr.bf16.mxu0 0
        %3920 = vmatpush1.bf16.msra.mxu0 0
        %3921 = vmatprep.subr.bf16.mxu0 0
        %3922 = vmatpush1.bf16.msra.mxu0 0
        %3923 = vmatprep.mubr.bf16.mxu0 0
        %3924 = vmatmul.mubr.bf16.gmra.mrb[0].mxu0 %v3885
        %v3925 = vpop.f32.mrb[0].mxu0
        %v3926 = vadd.f32 %v3836, %v3925
        %v3927 = vpop.f32.mrb[0].mxu0
        %v3928 = vpop.f32.mrb[0].mxu0
        %v3929 = vpop.f32.mrb[0].mxu0
        %3930 = vdwg.mxu0
        %v3931 = vmax.f32 %v3926, 0.0
        %v3932 = vpack.c.bf16 %v3931, %v3931
        %v3933 = vld [vmem:[%s9] sm:$0xf]
        %v3934 = vld [vmem:[%s9 + $0x4] sm:$0xf]
        %v3935 = vld [vmem:[%s9 + $0x8] sm:$0xf]
        %v3936 = vld [vmem:[%s9 + $0xc] sm:$0xf]
        %v3937 = vld [vmem:[%s9 + $0x10] sm:$0xf]
        %v3938 = vld [vmem:[%s9 + $0x14] sm:$0xf]
        %v3939 = vld [vmem:[%s9 + $0x18] sm:$0xf]
        %v3940 = vld [vmem:[%s9 + $0x1c] sm:$0xf]
        %v3941 = vld [vmem:[%s9 + $0x20] sm:$0xf]
        %v3942 = vld [vmem:[%s9 + $0x24] sm:$0xf]
        %v3943 = vld [vmem:[%s9 + $0x28] sm:$0x3]
        %v3944 = vld [vmem:[%s10] sm:$0x1]
        %v3946 = vlaneseq
        %v3947 = vshrl.u32 %v3946, 7
        %v3948 = vsub.s32 0, %v3947
        %v3949 = vrot.slane %v3944, %v3948
        %v3962 = vunpack.c.l.b16 %v3933
        %v3963 = vunpack.c.l.b16 %v3934
        %v3964 = vunpack.c.l.b16 %v3935
        %v3965 = vunpack.c.l.b16 %v3936
        %v3966 = vunpack.c.l.b16 %v3937
        %v3967 = vunpack.c.l.b16 %v3938
        %v3968 = vunpack.c.l.b16 %v3939
        %v3969 = vunpack.c.l.b16 %v3940
        %v3970 = vunpack.c.l.b16 %v3941
        %v3971 = vunpack.c.l.b16 %v3942
        %v3972 = vunpack.c.l.b16 %v3943
        %v3973 = vpack.c.b16 %v3963, %v3962
        %v3974 = vpack.c.b16 %v3965, %v3964
        %v3975 = vpack.c.b16 %v3967, %v3966
        %v3976 = vpack.c.b16 %v3969, %v3968
        %v3977 = vpack.c.b16 %v3971, %v3970
        %v3978 = vpack.c.b16 %v3972, %v3972
        %v3985 = vsel %vm2565, %v3932, 0
        %v3988 = vsel %vm2581, %v3978, 0
        %3990 = vmatprep.subr.bf16.mxu0 0
        %3991 = vmatpush1.bf16.msra.mxu0 %v3973
        %3992 = vmatprep.subr.bf16.mxu0 0
        %3993 = vmatpush1.bf16.msra.mxu0 %v3974
        %3994 = vmatprep.subr.bf16.mxu0 0
        %3995 = vmatpush1.bf16.msra.mxu0 %v3975
        %3996 = vmatprep.subr.bf16.mxu0 0
        %3997 = vmatpush1.bf16.msra.mxu0 %v3976
        %3998 = vmatprep.subr.bf16.mxu0 0
        %3999 = vmatpush1.bf16.msra.mxu0 %v3977
        %4000 = vmatprep.subr.bf16.mxu0 0
        %4001 = vmatpush1.bf16.msra.mxu0 %v3988
        %4002 = vmatprep.subr.bf16.mxu0 0
        %4003 = vmatpush1.bf16.msra.mxu0 0
        %4004 = vmatprep.subr.bf16.mxu0 0
        %4005 = vmatpush1.bf16.msra.mxu0 0
        %4006 = vmatprep.subr.bf16.mxu0 0
        %4007 = vmatpush1.bf16.msra.mxu0 0
        %4008 = vmatprep.subr.bf16.mxu0 0
        %4009 = vmatpush1.bf16.msra.mxu0 0
        %4010 = vmatprep.subr.bf16.mxu0 0
        %4011 = vmatpush1.bf16.msra.mxu0 0
        %4012 = vmatprep.subr.bf16.mxu0 0
        %4013 = vmatpush1.bf16.msra.mxu0 0
        %4014 = vmatprep.subr.bf16.mxu0 0
        %4015 = vmatpush1.bf16.msra.mxu0 0
        %4016 = vmatprep.subr.bf16.mxu0 0
        %4017 = vmatpush1.bf16.msra.mxu0 0
        %4018 = vmatprep.subr.bf16.mxu0 0
        %4019 = vmatpush1.bf16.msra.mxu0 0
        %4020 = vmatprep.subr.bf16.mxu0 0
        %4021 = vmatpush1.bf16.msra.mxu0 0
        %4022 = vmatprep.mubr.bf16.mxu0 0
        %4023 = vmatmul.mubr.bf16.gmra.mrb[0].mxu0 %v3985
        %v4024 = vpop.f32.mrb[0].mxu0
        %v4025 = vadd.f32 %v3949, %v4024
        %v4026 = vpop.f32.mrb[0].mxu0
        %v4027 = vpop.f32.mrb[0].mxu0
        %v4028 = vpop.f32.mrb[0].mxu0
        %4029 = vdwg.mxu0
        %vm4030 = vcmask 80896
        %v4031 = vsel %vm4030, %v4025, -inf
        %4032 = vmax.xlane.f32.xlu0 %v4031
        %v4033 = vpop.xlane.xlu0 %4032
        %v4034 = vsub.f32 %v4025, %v4033
        %v4035 = vmul.f32 %v4034, 1.442695
        %v4036 = vpow.pop %v4035
        %v4037 = vsel %vm4030, %v4036, 0.0
        %4038 = vadd.xlane.f32.xlu0 %v4037
        %v4039 = vpop.xlane.xlu0 %4038
        %v4040 = vlog2.pop %v4039
        %v4041 = vmul.f32 %v4040, 0.6931472
        %v4042 = vsub.f32 %v4034, %v4041
        %4043 = vst.msk [vmem:[%s549] sm:$0xff] %vm4030, %v4042
        %s4044 = sand.u32 %s269, 1
        %s4045 = scalar_lea.sflag [#allocation4], %s4044
        %s4046 = sand.u32 %s269, 1
        %s4047 = smul.addr %s4046, 8
        %s4048 = scalar_lea.vmem [#allocation3], %s4047
        // Predicated region
        $region106: #{cnn_cifar_forward.1} parent=100 // pred_check
          %p4049 = pneg %p279
        $region107: #{cnn_cifar_forward.1} parent=100 // pred_check_branch
          %4051 = sbr.rel (%p4049) target = $region109
        $region108: #{cnn_cifar_forward.1} parent=100 // pred_region
          %s4053 = ssub.s32 128, 128
          %4054 = vsyncadd %s4045, %s4053
          %s4055 = smul.addr %s25, 128
          %s4056 = scalar_lea.hbm %s11, %s4055
          %s4058 = sshll.u32 %s4048, 4
          %s4059 = int_to_ptr.vmem [resolvable:$true] %s4058
          %4061 = dma.vmem_to_hbm [thread:$0]  %s4059, 128, %s4056, %s4045
        $region109: #{cnn_cifar_forward.1} parent=100 // pred_fallthru
          _
      $region101: #{cnn_cifar_forward.1} parent=5 // pred_fallthru
        _
      %p4062 = scmp.le.s32.totalorder 2, %s20
      // Predicated region
      $region110: #{cnn_cifar_forward.1} parent=5 // pred_check
        %p4063 = pneg %p4062
      $region111: #{cnn_cifar_forward.1} parent=5 // pred_check_branch
        %4065 = sbr.rel (%p4063) target = $region113
      $region112: #{cnn_cifar_forward.1} parent=5 // pred_region
        %s4066 = ssub.s32 %s20, 2
        // Predicated region
        $region114: #{cnn_cifar_forward.1} parent=112 // pred_check
          %p4067 = pneg %p285
        $region115: #{cnn_cifar_forward.1} parent=112 // pred_check_branch
          %4069 = sbr.rel (%p4067) target = $region117
        $region116: #{cnn_cifar_forward.1} parent=112 // pred_region
          %s4070 = sand.u32 %s270, 1
          %s4071 = scalar_lea.sflag [#allocation4], %s4070
          %s4072 = sand.u32 %s270, 1
          %s4073 = smul.addr %s4072, 8
          %s4074 = scalar_lea.vmem [#allocation3], %s4073
          %4075 = dma.done %s4071, 128
        $region117: #{cnn_cifar_forward.1} parent=112 // pred_fallthru
          _
      $region113: #{cnn_cifar_forward.1} parent=5 // pred_fallthru
        _
    $region6: #{cnn_cifar_forward.1} parent=1 // loop_footer
      %s24 = sadd.s32 1, %s20
    $region7: #{cnn_cifar_forward.1} parent=1 // loop_footer_branch
      %19 = sbr.rel target = $region3
    $region8: #{cnn_cifar_forward.1} parent=1 // loop_exit
      _
    %4076 = vsyncpa [#allocation4], 1
    %s4077 = scalar_lea.sflag [#allocation4], 1
    %4078 = vsyncpa %s4077, 1

</llo_original>
